<compile_context>
chip_gen: v6e
topology: v6e:2x2x1
jax: 0.10.0
libtpu: 0.0.40
codegen_flags: <defaults>
</compile_context>

<pallas_src>
import math
import functools

import jax
import jax.numpy as jnp
import numpy as np
from jax.experimental import pallas as pl
from jax.experimental.pallas import tpu as pltpu


# -----------------------------------------------------------------------------
# Pallas kernel: residual attention block for a (B, L, D) batch block.
# -----------------------------------------------------------------------------
def _block_kernel(x_ref,            # (B, L, D)   f32
                  w_in_ref,         # (D, 3D)     bf16  in_proj_weight.T (Q cols pre-scaled)
                  b_in_ref,         # (1, 3D)     f32   (Q part pre-scaled)
                  w_out_ref,        # (D, D)      bf16  out_proj.weight.T
                  b_out_ref,        # (1, D)      f32
                  g1_ref, b1_ref,   # (1, D)      f32   ln_1 gamma / beta
                  g2_ref, b2_ref,   # (1, D)      f32   ln_2 gamma / beta
                  w_fc_ref,         # (D, 4D)     bf16  c_fc.weight.T
                  b_fc_ref,         # (1, 4D)     f32
                  w_pr_ref,         # (4D, D)     bf16  c_proj.weight.T
                  b_pr_ref,         # (1, D)      f32
                  o_ref,            # (B, L, D)   f32
                  *, n_head: int):
    B, L, D = x_ref.shape
    H = n_head
    Dh = D // H
    BL = B * L
    eps = 1e-5

    x = x_ref[...].astype(jnp.float32).reshape(BL, D)                 # [BL, D]

    def layernorm(v, g, b):
        mu = jnp.mean(v, axis=-1, keepdims=True)
        var = jnp.mean((v - mu) ** 2, axis=-1, keepdims=True)
        return (v - mu) * jax.lax.rsqrt(var + eps) * g + b

    # ---- x = x + attn(ln_1(x)) -------------------------------------------
    xn = layernorm(x, g1_ref[...], b1_ref[...])                        # [BL, D] f32
    qkv = jnp.dot(xn.astype(jnp.bfloat16), w_in_ref[...],
                  preferred_element_type=jnp.float32) + b_in_ref[...]  # [BL, 3D] f32

    # 1/sqrt(Dh) already folded into the Q columns on the host.
    def to_heads(z):                                                   # [BL, D] -> [B*H, L, Dh]
        return jnp.transpose(z.reshape(B, L, H, Dh), (0, 2, 1, 3)).reshape(B * H, L, Dh)

    qh = to_heads(qkv[:, 0 * D:1 * D]).astype(jnp.bfloat16)
    kh = to_heads(qkv[:, 1 * D:2 * D]).astype(jnp.bfloat16)
    vh = to_heads(qkv[:, 2 * D:3 * D]).astype(jnp.bfloat16)

    s = jnp.einsum('gqd,gkd->gqk', qh, kh,
                   preferred_element_type=jnp.float32)                 # [B*H, L, L] f32
    s = s - jnp.max(s, axis=-1, keepdims=True)
    p = jnp.exp(s)
    p = p / jnp.sum(p, axis=-1, keepdims=True)                         # exact softmax
    ctx = jnp.einsum('gqk,gkd->gqd', p.astype(jnp.bfloat16), vh,
                     preferred_element_type=jnp.float32)               # [B*H, L, Dh]
    ctx = jnp.transpose(ctx.reshape(B, H, L, Dh), (0, 2, 1, 3)).reshape(BL, D)

    attn_out = jnp.dot(ctx.astype(jnp.bfloat16), w_out_ref[...],
                       preferred_element_type=jnp.float32) + b_out_ref[...]
    x = x + attn_out

    # ---- x = x + mlp(ln_2(x)) (unchunked: full [BL, 4D] intermediate) ------
    yn = layernorm(x, g2_ref[...], b2_ref[...]).astype(jnp.bfloat16)   # [BL, D] bf16
    h = jnp.dot(yn, w_fc_ref[...],
                preferred_element_type=jnp.float32) + b_fc_ref[...]    # [BL, 4D] f32
    h = h * jax.nn.sigmoid(1.702 * h)                                  # QuickGELU
    mlp_out = jnp.dot(h.astype(jnp.bfloat16), w_pr_ref[...],
                      preferred_element_type=jnp.float32) + b_pr_ref[...]

    o_ref[...] = (x + mlp_out).reshape(B, L, D).astype(o_ref.dtype)


# -----------------------------------------------------------------------------
# Host-side parameter preparation (call ONCE per layer, reuse across forwards).
# -----------------------------------------------------------------------------
def prepare_block_params(params, n_head):
    (w_in, b_in, w_out, b_out, g1, b1, g2, b2, w_fc, b_fc, w_pr, b_pr) = params
    D = w_in.shape[0]
    Dh = D // n_head
    scale = 1.0 / math.sqrt(Dh)
    # Fold the attention scale into the Q columns of in_proj weight & bias.
    col_scale = jnp.concatenate([jnp.full((D,), scale, jnp.float32),
                                 jnp.ones((2 * D,), jnp.float32)])
    w_in_s = (w_in * col_scale[None, :]).astype(jnp.bfloat16)
    b_in_s = b_in * col_scale[None, :]
    return (w_in_s, b_in_s,
            w_out.astype(jnp.bfloat16), b_out,
            g1, b1, g2, b2,
            w_fc.astype(jnp.bfloat16), b_fc,
            w_pr.astype(jnp.bfloat16), b_pr)


def _choose_batch_block(N, L, target_rows=256):
    """Smallest divisor B of N with B*L >= target_rows; else B = N."""
    divisors = [b for b in range(1, N + 1) if N % b == 0]
    for b in divisors:
        if b * L >= target_rows:
            return b
    return divisors[-1]


def _vmem_limit_bytes():
    try:
        cap = int(pltpu.get_tpu_info().vmem_capacity_bytes)
    except Exception:
        cap = 64 * 1024 * 1024  # conservative fallback (covers v7x)
    # 3/4 of physical VMEM: ~96 MiB on v5e/v6e, ~48 MiB on v7x.
    return max(32 * 1024 * 1024, min((cap * 3) // 4, 112 * 1024 * 1024))


def _run_block_kernel(x_nld, kparams, n_head):
    """x_nld: [N, L, D] -> [N, L, D]. kparams from prepare_block_params()."""
    N, L, D = x_nld.shape
    B = _choose_batch_block(N, L)

    # Grid-invariant parameters: whole-array VMEM residency, not pipelined.
    vmem_spec = pl.BlockSpec(memory_space=pltpu.MemorySpace.VMEM)

    kernel = functools.partial(_block_kernel, n_head=n_head)
    return pl.pallas_call(
        kernel,
        out_shape=jax.ShapeDtypeStruct((N, L, D), x_nld.dtype),
        grid_spec=pltpu.PrefetchScalarGridSpec(
            num_scalar_prefetch=0,
            grid=(N // B,),
            in_specs=[pl.BlockSpec((B, L, D), lambda n: (n, 0, 0))]
                     + [vmem_spec] * len(kparams),
            out_specs=pl.BlockSpec((B, L, D), lambda n: (n, 0, 0)),
        ),
        compiler_params=pltpu.CompilerParams(
            dimension_semantics=("parallel",),
            vmem_limit_bytes=_vmem_limit_bytes(),
        ),
    )(x_nld, *kparams)


# -----------------------------------------------------------------------------
# Module wrapper (prompt-injection glue in plain JAX, hot path in Pallas).
# Takes PREPARED kparams (prepare_block_params), hoisting weight prep out of
# the per-call path.
# -----------------------------------------------------------------------------
def residual_attention_block_maple(inputs, kparams, *, n_head,
                                   compound_prompt_nctx,
                                   first_layer=False, text_layer=False):
    x, compound_prompts_deeper, counter = inputs        # x: [L, N, D]

    if not first_layer and len(compound_prompts_deeper) > 0:
        if not text_layer:
            if not counter > len(compound_prompts_deeper) - 1:
                prefix = x[0:x.shape[0] - compound_prompt_nctx, :, :]
                vc = compound_prompts_deeper[counter]            # [nctx, D]
                vc = jnp.broadcast_to(
                    vc[None, :, :], (x.shape[1], vc.shape[0], vc.shape[1]))
                vc = jnp.transpose(vc, (1, 0, 2))                # [nctx, N, D]
                x = jnp.concatenate([prefix, vc], axis=0)
                counter += 1
        else:
            if not counter > len(compound_prompts_deeper) - 1:
                prefix = x[:1, :, :]
                suffix = x[1 + compound_prompt_nctx:, :, :]
                tc = compound_prompts_deeper[counter]
                tc = jnp.broadcast_to(
                    tc[None, :, :], (x.shape[1], tc.shape[0], tc.shape[1]))
                tc = jnp.transpose(tc, (1, 0, 2))
                x = jnp.concatenate([prefix, tc, suffix], axis=0)
                counter += 1

    # [L,N,D] <-> [N,L,D] transposes kept to match the module's layout contract;
    # a full stack should keep activations batch-major to avoid them per layer.
    x_nld = jnp.transpose(x, (1, 0, 2))                  # [N, L, D]
    out_nld = _run_block_kernel(x_nld, kparams, n_head)
    out = jnp.transpose(out_nld, (1, 0, 2))              # [L, N, D]
    return [out, compound_prompts_deeper, counter]


# -----------------------------------------------------------------------------
# Pure-JAX f32 reference (same math) for correctness checking.
# -----------------------------------------------------------------------------
def _reference_block(x_nld, params, n_head):
    (w_in, b_in, w_out, b_out, g1, b1, g2, b2, w_fc, b_fc, w_pr, b_pr) = params
    N, L, D = x_nld.shape
    Dh = D // n_head
    scale = 1.0 / math.sqrt(Dh)

    def ln(v, g, b):
        mu = jnp.mean(v, axis=-1, keepdims=True)
        var = jnp.mean((v - mu) ** 2, axis=-1, keepdims=True)
        return (v - mu) * jax.lax.rsqrt(var + 1e-5) * g + b

    x = x_nld.astype(jnp.float32)
    xn = ln(x, g1, b1)
    qkv = xn @ w_in + b_in
    q, k, v = qkv[..., :D], qkv[..., D:2 * D], qkv[..., 2 * D:]
    q = q.reshape(N, L, n_head, Dh) * scale
    k = k.reshape(N, L, n_head, Dh)
    v = v.reshape(N, L, n_head, Dh)
    s = jnp.einsum('nqhd,nkhd->nhqk', q, k)
    p = jax.nn.softmax(s, axis=-1)
    ctx = jnp.einsum('nhqk,nkhd->nqhd', p, v).reshape(N, L, D)
    x = x + (ctx @ w_out + b_out)
    yn = ln(x, g2, b2)
    h = yn @ w_fc + b_fc
    h = h * jax.nn.sigmoid(1.702 * h)
    x = x + (h @ w_pr + b_pr)
    return x


# -----------------------------------------------------------------------------
# Deterministic parameter construction (f32, pre-transposed layout).
# -----------------------------------------------------------------------------
def make_params(key, d_model):
    ks = jax.random.split(key, 8)
    D = d_model
    w_in = 0.02 * jax.random.normal(ks[0], (D, 3 * D), jnp.float32)   # in_proj_weight.T
    b_in = 0.02 * jax.random.normal(ks[1], (1, 3 * D), jnp.float32)
    w_out = 0.02 * jax.random.normal(ks[2], (D, D), jnp.float32)      # out_proj.weight.T
    b_out = 0.02 * jax.random.normal(ks[3], (1, D), jnp.float32)
    g1 = jnp.ones((1, D), jnp.float32)
    b1 = jnp.zeros((1, D), jnp.float32)
    g2 = jnp.ones((1, D), jnp.float32)
    b2 = jnp.zeros((1, D), jnp.float32)
    w_fc = 0.02 * jax.random.normal(ks[4], (D, 4 * D), jnp.float32)   # c_fc.weight.T
    b_fc = 0.02 * jax.random.normal(ks[5], (1, 4 * D), jnp.float32)
    w_pr = 0.02 * jax.random.normal(ks[6], (4 * D, D), jnp.float32)   # c_proj.weight.T
    b_pr = 0.02 * jax.random.normal(ks[7], (1, D), jnp.float32)
    return (w_in, b_in, w_out, b_out, g1, b1, g2, b2, w_fc, b_fc, w_pr, b_pr)


if __name__ == "__main__":
    # Small shapes (lane-dense D): seq L=8, batch N=2, d_model D=256, heads=4,
    # maple_length NCTX=2.
    L, N, D, H, NCTX = 8, 2, 256, 4, 2

    key = jax.random.PRNGKey(0)
    k_x, k_p, k_prompt = jax.random.split(key, 3)

    x = jax.random.normal(k_x, (L, N, D), jnp.float32)          # [seq, batch, d_model]
    params = make_params(k_p, D)
    kparams = prepare_block_params(params, H)                   # once per layer
    compound_prompts = [0.1 * jax.random.normal(k_prompt, (NCTX, D), jnp.float32)]
    counter = 0

    out_list = residual_attention_block_maple(
        [x, compound_prompts, counter], kparams,
        n_head=H, compound_prompt_nctx=NCTX,
        first_layer=False, text_layer=False)
    out = jax.block_until_ready(out_list[0])

    # Reference check (same prompt-injection glue + pure-JAX f32 block).
    prefix = x[:L - NCTX]
    vc = jnp.transpose(
        jnp.broadcast_to(compound_prompts[0][None], (N, NCTX, D)), (1, 0, 2))
    x_inj = jnp.concatenate([prefix, vc], axis=0)
    ref = _reference_block(jnp.transpose(x_inj, (1, 0, 2)), params, H)
    ref = jnp.transpose(ref, (1, 0, 2))

    # bf16 matmul operands (f32 accumulate) -> loosened tolerance vs f32 ref.
    np.testing.assert_allclose(np.asarray(out), np.asarray(ref),
                               rtol=2e-2, atol=2e-2)
    assert out.shape == (L, N, D)
    assert out_list[2] == 1  # counter incremented
    print("KERNEL_OK")
</pallas_src>

<mosaic_0001>
module attributes {stable_mosaic.version = 11 : i64} {
  func.func @_block_kernel(%arg0: i32, %arg1: memref<2x8x256xf32, #tpu.memory_space<vmem>>, %arg2: memref<256x768xbf16, #tpu.memory_space<vmem>>, %arg3: memref<1x768xf32, #tpu.memory_space<vmem>>, %arg4: memref<256x256xbf16, #tpu.memory_space<vmem>>, %arg5: memref<1x256xf32, #tpu.memory_space<vmem>>, %arg6: memref<1x256xf32, #tpu.memory_space<vmem>>, %arg7: memref<1x256xf32, #tpu.memory_space<vmem>>, %arg8: memref<1x256xf32, #tpu.memory_space<vmem>>, %arg9: memref<1x256xf32, #tpu.memory_space<vmem>>, %arg10: memref<256x1024xbf16, #tpu.memory_space<vmem>>, %arg11: memref<1x1024xf32, #tpu.memory_space<vmem>>, %arg12: memref<1024x256xbf16, #tpu.memory_space<vmem>>, %arg13: memref<1x256xf32, #tpu.memory_space<vmem>>, %arg14: memref<2x8x256xf32, #tpu.memory_space<vmem>>) attributes {dimension_semantics = [#tpu.dimension_semantics<parallel>], iteration_bounds = array<i64: 1>, scalar_prefetch = 0 : i64, scratch_operands = 0 : i64, tpu.core_type = #tpu.core_type<tc>, window_params = [{transform_indices = @transform_0, window_bounds = array<i64: 2, 8, 256>}, {pipeline_mode = #tpu.pipeline_mode<synchronous>, transform_indices = @transform_1, window_bounds = array<i64: 256, 768>}, {pipeline_mode = #tpu.pipeline_mode<synchronous>, transform_indices = @transform_2, window_bounds = array<i64: 1, 768>}, {pipeline_mode = #tpu.pipeline_mode<synchronous>, transform_indices = @transform_3, window_bounds = array<i64: 256, 256>}, {pipeline_mode = #tpu.pipeline_mode<synchronous>, transform_indices = @transform_4, window_bounds = array<i64: 1, 256>}, {pipeline_mode = #tpu.pipeline_mode<synchronous>, transform_indices = @transform_5, window_bounds = array<i64: 1, 256>}, {pipeline_mode = #tpu.pipeline_mode<synchronous>, transform_indices = @transform_6, window_bounds = array<i64: 1, 256>}, {pipeline_mode = #tpu.pipeline_mode<synchronous>, transform_indices = @transform_7, window_bounds = array<i64: 1, 256>}, {pipeline_mode = #tpu.pipeline_mode<synchronous>, transform_indices = @transform_8, window_bounds = array<i64: 1, 256>}, {pipeline_mode = #tpu.pipeline_mode<synchronous>, transform_indices = @transform_9, window_bounds = array<i64: 256, 1024>}, {pipeline_mode = #tpu.pipeline_mode<synchronous>, transform_indices = @transform_10, window_bounds = array<i64: 1, 1024>}, {pipeline_mode = #tpu.pipeline_mode<synchronous>, transform_indices = @transform_11, window_bounds = array<i64: 1024, 256>}, {pipeline_mode = #tpu.pipeline_mode<synchronous>, transform_indices = @transform_12, window_bounds = array<i64: 1, 256>}, {transform_indices = @transform_13, window_bounds = array<i64: 2, 8, 256>}]} {
    %c0 = arith.constant 0 : index
    %c0_0 = arith.constant 0 : index
    %c0_1 = arith.constant 0 : index
    %0 = vector.load %arg1[%c0, %c0_0, %c0_1] : memref<2x8x256xf32, #tpu.memory_space<vmem>>, vector<2x8x256xf32>
    %1 = vector.shape_cast %0 : vector<2x8x256xf32> to vector<16x256xf32>
    %c0_2 = arith.constant 0 : index
    %c0_3 = arith.constant 0 : index
    %2 = vector.load %arg6[%c0_2, %c0_3] : memref<1x256xf32, #tpu.memory_space<vmem>>, vector<1x256xf32>
    %c0_4 = arith.constant 0 : index
    %c0_5 = arith.constant 0 : index
    %3 = vector.load %arg7[%c0_4, %c0_5] : memref<1x256xf32, #tpu.memory_space<vmem>>, vector<1x256xf32>
    %cst = arith.constant dense<0.000000e+00> : vector<16xf32>
    %4 = vector.multi_reduction <add>, %1, %cst [1] : vector<16x256xf32> to vector<16xf32>
    %5 = vector.shape_cast %4 : vector<16xf32> to vector<16x1xf32>
    %cst_6 = arith.constant 2.560000e+02 : f32
    %6 = vector.broadcast %cst_6 : f32 to vector<16x1xf32>
    %7 = arith.divf %5, %6 : vector<16x1xf32>
    %8 = vector.broadcast %7 : vector<16x1xf32> to vector<16x256xf32>
    %9 = arith.subf %1, %8 : vector<16x256xf32>
    %10 = arith.mulf %9, %9 : vector<16x256xf32>
    %cst_7 = arith.constant dense<0.000000e+00> : vector<16xf32>
    %11 = vector.multi_reduction <add>, %10, %cst_7 [1] : vector<16x256xf32> to vector<16xf32>
    %12 = vector.shape_cast %11 : vector<16xf32> to vector<16x1xf32>
    %cst_8 = arith.constant 2.560000e+02 : f32
    %13 = vector.broadcast %cst_8 : f32 to vector<16x1xf32>
    %14 = arith.divf %12, %13 : vector<16x1xf32>
    %15 = vector.broadcast %7 : vector<16x1xf32> to vector<16x256xf32>
    %16 = arith.subf %1, %15 : vector<16x256xf32>
    %cst_9 = arith.constant 9.99999974E-6 : f32
    %17 = vector.broadcast %cst_9 : f32 to vector<16x1xf32>
    %18 = arith.addf %14, %17 : vector<16x1xf32>
    %19 = math.rsqrt %18 : vector<16x1xf32>
    %20 = vector.broadcast %19 : vector<16x1xf32> to vector<16x256xf32>
    %21 = arith.mulf %16, %20 : vector<16x256xf32>
    %22 = vector.broadcast %2 : vector<1x256xf32> to vector<16x256xf32>
    %23 = arith.mulf %21, %22 : vector<16x256xf32>
    %24 = vector.broadcast %3 : vector<1x256xf32> to vector<16x256xf32>
    %25 = arith.addf %23, %24 : vector<16x256xf32>
    %26 = arith.truncf %25 : vector<16x256xf32> to vector<16x256xbf16>
    %c0_10 = arith.constant 0 : index
    %c0_11 = arith.constant 0 : index
    %27 = vector.load %arg2[%c0_10, %c0_11] : memref<256x768xbf16, #tpu.memory_space<vmem>>, vector<256x768xbf16>
    %cst_12 = arith.constant dense<0.000000e+00> : vector<16x768xf32>
    %28 = tpu.matmul %26, %27, %cst_12 {dimension_numbers = #tpu.dot_dimension_numbers<[1], [0], [0], [1], [0, 0, 1, 1], [], []>} : vector<16x256xbf16>, vector<256x768xbf16>, vector<16x768xf32> -> vector<16x768xf32>
    %c0_13 = arith.constant 0 : index
    %c0_14 = arith.constant 0 : index
    %29 = vector.load %arg3[%c0_13, %c0_14] : memref<1x768xf32, #tpu.memory_space<vmem>>, vector<1x768xf32>
    %30 = vector.broadcast %29 : vector<1x768xf32> to vector<16x768xf32>
    %31 = arith.addf %28, %30 : vector<16x768xf32>
    %32 = vector.extract_strided_slice %31 {offsets = [0, 0], sizes = [16, 256], strides = [1, 1]} : vector<16x768xf32> to vector<16x256xf32>
    %33 = vector.shape_cast %32 : vector<16x256xf32> to vector<2x8x4x64xf32>
    %34 = tpu.transpose %33, [0, 2, 1, 3] : vector<2x8x4x64xf32> -> vector<2x4x8x64xf32>
    %35 = vector.shape_cast %34 : vector<2x4x8x64xf32> to vector<8x8x64xf32>
    %36 = arith.truncf %35 : vector<8x8x64xf32> to vector<8x8x64xbf16>
    %37 = vector.extract_strided_slice %31 {offsets = [0, 256], sizes = [16, 256], strides = [1, 1]} : vector<16x768xf32> to vector<16x256xf32>
    %38 = vector.shape_cast %37 : vector<16x256xf32> to vector<2x8x4x64xf32>
    %39 = tpu.transpose %38, [0, 2, 1, 3] : vector<2x8x4x64xf32> -> vector<2x4x8x64xf32>
    %40 = vector.shape_cast %39 : vector<2x4x8x64xf32> to vector<8x8x64xf32>
    %41 = arith.truncf %40 : vector<8x8x64xf32> to vector<8x8x64xbf16>
    %42 = vector.extract_strided_slice %31 {offsets = [0, 512], sizes = [16, 256], strides = [1, 1]} : vector<16x768xf32> to vector<16x256xf32>
    %43 = vector.shape_cast %42 : vector<16x256xf32> to vector<2x8x4x64xf32>
    %44 = tpu.transpose %43, [0, 2, 1, 3] : vector<2x8x4x64xf32> -> vector<2x4x8x64xf32>
    %45 = vector.shape_cast %44 : vector<2x4x8x64xf32> to vector<8x8x64xf32>
    %46 = arith.truncf %45 : vector<8x8x64xf32> to vector<8x8x64xbf16>
    "tpu.trace_start"() <{level = 10 : i32, message = "gqd,gkd->gqk"}> : () -> ()
    %cst_15 = arith.constant dense<0.000000e+00> : vector<8x8x8xf32>
    %47 = tpu.matmul %36, %41, %cst_15 {dimension_numbers = #tpu.dot_dimension_numbers<[2], [2], [1], [1], [0, 0, 0, 1, 1, 1], [0], [0]>} : vector<8x8x64xbf16>, vector<8x8x64xbf16>, vector<8x8x8xf32> -> vector<8x8x8xf32>
    "tpu.trace_stop"() : () -> ()
    %cst_16 = arith.constant dense<0xFF800000> : vector<8x8xf32>
    %48 = vector.multi_reduction <maximumf>, %47, %cst_16 [2] : vector<8x8x8xf32> to vector<8x8xf32>
    %49 = vector.shape_cast %48 : vector<8x8xf32> to vector<8x8x1xf32>
    %50 = vector.broadcast %49 : vector<8x8x1xf32> to vector<8x8x8xf32>
    %51 = arith.subf %47, %50 : vector<8x8x8xf32>
    %52 = math.exp %51 : vector<8x8x8xf32>
    %cst_17 = arith.constant dense<0.000000e+00> : vector<8x8xf32>
    %53 = vector.multi_reduction <add>, %52, %cst_17 [2] : vector<8x8x8xf32> to vector<8x8xf32>
    %54 = vector.shape_cast %53 : vector<8x8xf32> to vector<8x8x1xf32>
    %55 = vector.broadcast %54 : vector<8x8x1xf32> to vector<8x8x8xf32>
    %56 = arith.divf %52, %55 : vector<8x8x8xf32>
    %57 = arith.truncf %56 : vector<8x8x8xf32> to vector<8x8x8xbf16>
    "tpu.trace_start"() <{level = 10 : i32, message = "gqk,gkd->gqd"}> : () -> ()
    %cst_18 = arith.constant dense<0.000000e+00> : vector<8x8x64xf32>
    %58 = tpu.matmul %57, %46, %cst_18 {dimension_numbers = #tpu.dot_dimension_numbers<[2], [1], [1], [2], [0, 0, 0, 1, 1, 2], [0], [0]>} : vector<8x8x8xbf16>, vector<8x8x64xbf16>, vector<8x8x64xf32> -> vector<8x8x64xf32>
    "tpu.trace_stop"() : () -> ()
    %59 = vector.shape_cast %58 : vector<8x8x64xf32> to vector<2x4x8x64xf32>
    %60 = tpu.transpose %59, [0, 2, 1, 3] : vector<2x4x8x64xf32> -> vector<2x8x4x64xf32>
    %61 = vector.shape_cast %60 : vector<2x8x4x64xf32> to vector<16x256xf32>
    %62 = arith.truncf %61 : vector<16x256xf32> to vector<16x256xbf16>
    %c0_19 = arith.constant 0 : index
    %c0_20 = arith.constant 0 : index
    %63 = vector.load %arg4[%c0_19, %c0_20] : memref<256x256xbf16, #tpu.memory_space<vmem>>, vector<256x256xbf16>
    %cst_21 = arith.constant dense<0.000000e+00> : vector<16x256xf32>
    %64 = tpu.matmul %62, %63, %cst_21 {dimension_numbers = #tpu.dot_dimension_numbers<[1], [0], [0], [1], [0, 0, 1, 1], [], []>} : vector<16x256xbf16>, vector<256x256xbf16>, vector<16x256xf32> -> vector<16x256xf32>
    %c0_22 = arith.constant 0 : index
    %c0_23 = arith.constant 0 : index
    %65 = vector.load %arg5[%c0_22, %c0_23] : memref<1x256xf32, #tpu.memory_space<vmem>>, vector<1x256xf32>
    %66 = vector.broadcast %65 : vector<1x256xf32> to vector<16x256xf32>
    %67 = arith.addf %64, %66 : vector<16x256xf32>
    %68 = arith.addf %1, %67 : vector<16x256xf32>
    %c0_24 = arith.constant 0 : index
    %c0_25 = arith.constant 0 : index
    %69 = vector.load %arg8[%c0_24, %c0_25] : memref<1x256xf32, #tpu.memory_space<vmem>>, vector<1x256xf32>
    %c0_26 = arith.constant 0 : index
    %c0_27 = arith.constant 0 : index
    %70 = vector.load %arg9[%c0_26, %c0_27] : memref<1x256xf32, #tpu.memory_space<vmem>>, vector<1x256xf32>
    %cst_28 = arith.constant dense<0.000000e+00> : vector<16xf32>
    %71 = vector.multi_reduction <add>, %68, %cst_28 [1] : vector<16x256xf32> to vector<16xf32>
    %72 = vector.shape_cast %71 : vector<16xf32> to vector<16x1xf32>
    %cst_29 = arith.constant 2.560000e+02 : f32
    %73 = vector.broadcast %cst_29 : f32 to vector<16x1xf32>
    %74 = arith.divf %72, %73 : vector<16x1xf32>
    %75 = vector.broadcast %74 : vector<16x1xf32> to vector<16x256xf32>
    %76 = arith.subf %68, %75 : vector<16x256xf32>
    %77 = arith.mulf %76, %76 : vector<16x256xf32>
    %cst_30 = arith.constant dense<0.000000e+00> : vector<16xf32>
    %78 = vector.multi_reduction <add>, %77, %cst_30 [1] : vector<16x256xf32> to vector<16xf32>
    %79 = vector.shape_cast %78 : vector<16xf32> to vector<16x1xf32>
    %cst_31 = arith.constant 2.560000e+02 : f32
    %80 = vector.broadcast %cst_31 : f32 to vector<16x1xf32>
    %81 = arith.divf %79, %80 : vector<16x1xf32>
    %82 = vector.broadcast %74 : vector<16x1xf32> to vector<16x256xf32>
    %83 = arith.subf %68, %82 : vector<16x256xf32>
    %cst_32 = arith.constant 9.99999974E-6 : f32
    %84 = vector.broadcast %cst_32 : f32 to vector<16x1xf32>
    %85 = arith.addf %81, %84 : vector<16x1xf32>
    %86 = math.rsqrt %85 : vector<16x1xf32>
    %87 = vector.broadcast %86 : vector<16x1xf32> to vector<16x256xf32>
    %88 = arith.mulf %83, %87 : vector<16x256xf32>
    %89 = vector.broadcast %69 : vector<1x256xf32> to vector<16x256xf32>
    %90 = arith.mulf %88, %89 : vector<16x256xf32>
    %91 = vector.broadcast %70 : vector<1x256xf32> to vector<16x256xf32>
    %92 = arith.addf %90, %91 : vector<16x256xf32>
    %93 = arith.truncf %92 : vector<16x256xf32> to vector<16x256xbf16>
    %c0_33 = arith.constant 0 : index
    %c0_34 = arith.constant 0 : index
    %94 = vector.load %arg10[%c0_33, %c0_34] : memref<256x1024xbf16, #tpu.memory_space<vmem>>, vector<256x1024xbf16>
    %cst_35 = arith.constant dense<0.000000e+00> : vector<16x1024xf32>
    %95 = tpu.matmul %93, %94, %cst_35 {dimension_numbers = #tpu.dot_dimension_numbers<[1], [0], [0], [1], [0, 0, 1, 1], [], []>} : vector<16x256xbf16>, vector<256x1024xbf16>, vector<16x1024xf32> -> vector<16x1024xf32>
    %c0_36 = arith.constant 0 : index
    %c0_37 = arith.constant 0 : index
    %96 = vector.load %arg11[%c0_36, %c0_37] : memref<1x1024xf32, #tpu.memory_space<vmem>>, vector<1x1024xf32>
    %97 = vector.broadcast %96 : vector<1x1024xf32> to vector<16x1024xf32>
    %98 = arith.addf %95, %97 : vector<16x1024xf32>
    %cst_38 = arith.constant 1.702000e+00 : f32
    %99 = vector.broadcast %cst_38 : f32 to vector<16x1024xf32>
    %100 = arith.mulf %99, %98 : vector<16x1024xf32>
    %101 = arith.negf %100 : vector<16x1024xf32>
    %102 = math.exp %101 : vector<16x1024xf32>
    %cst_39 = arith.constant 1.000000e+00 : f32
    %103 = vector.broadcast %cst_39 : f32 to vector<16x1024xf32>
    %104 = arith.addf %103, %102 : vector<16x1024xf32>
    %105 = arith.divf %103, %104 : vector<16x1024xf32>
    %106 = arith.mulf %98, %105 : vector<16x1024xf32>
    %107 = arith.truncf %106 : vector<16x1024xf32> to vector<16x1024xbf16>
    %c0_40 = arith.constant 0 : index
    %c0_41 = arith.constant 0 : index
    %108 = vector.load %arg12[%c0_40, %c0_41] : memref<1024x256xbf16, #tpu.memory_space<vmem>>, vector<1024x256xbf16>
    %cst_42 = arith.constant dense<0.000000e+00> : vector<16x256xf32>
    %109 = tpu.matmul %107, %108, %cst_42 {dimension_numbers = #tpu.dot_dimension_numbers<[1], [0], [0], [1], [0, 0, 1, 1], [], []>} : vector<16x1024xbf16>, vector<1024x256xbf16>, vector<16x256xf32> -> vector<16x256xf32>
    %c0_43 = arith.constant 0 : index
    %c0_44 = arith.constant 0 : index
    %110 = vector.load %arg13[%c0_43, %c0_44] : memref<1x256xf32, #tpu.memory_space<vmem>>, vector<1x256xf32>
    %111 = vector.broadcast %110 : vector<1x256xf32> to vector<16x256xf32>
    %112 = arith.addf %109, %111 : vector<16x256xf32>
    %113 = arith.addf %68, %112 : vector<16x256xf32>
    %114 = vector.shape_cast %113 : vector<16x256xf32> to vector<2x8x256xf32>
    %c0_45 = arith.constant 0 : index
    %c0_46 = arith.constant 0 : index
    %c0_47 = arith.constant 0 : index
    %115 = vector.load %arg14[%c0_45, %c0_46, %c0_47] : memref<2x8x256xf32, #tpu.memory_space<vmem>>, vector<2x8x256xf32>
    tpu.vector_store %arg14[%c0_45, %c0_46, %c0_47], %114 {strides = array<i32>} : memref<2x8x256xf32, #tpu.memory_space<vmem>>, vector<2x8x256xf32>,
    return
  }
  func.func @transform_0(%arg0: i32) -> (i32, i32, i32) {
    %c0_i32 = arith.constant 0 : i32
    %c0_i32_0 = arith.constant 0 : i32
    %c0_i32_1 = arith.constant 0 : i32
    return %arg0, %c0_i32, %c0_i32_0 : i32, i32, i32
  }
  func.func @transform_1(%arg0: i32) -> (i32, i32) {
    %c0_i32 = arith.constant 0 : i32
    %c0_i32_0 = arith.constant 0 : i32
    %c0_i32_1 = arith.constant 0 : i32
    return %c0_i32, %c0_i32_0 : i32, i32
  }
  func.func @transform_2(%arg0: i32) -> (i32, i32) {
    %c0_i32 = arith.constant 0 : i32
    %c0_i32_0 = arith.constant 0 : i32
    %c0_i32_1 = arith.constant 0 : i32
    return %c0_i32, %c0_i32_0 : i32, i32
  }
  func.func @transform_3(%arg0: i32) -> (i32, i32) {
    %c0_i32 = arith.constant 0 : i32
    %c0_i32_0 = arith.constant 0 : i32
    %c0_i32_1 = arith.constant 0 : i32
    return %c0_i32, %c0_i32_0 : i32, i32
  }
  func.func @transform_4(%arg0: i32) -> (i32, i32) {
    %c0_i32 = arith.constant 0 : i32
    %c0_i32_0 = arith.constant 0 : i32
    %c0_i32_1 = arith.constant 0 : i32
    return %c0_i32, %c0_i32_0 : i32, i32
  }
  func.func @transform_5(%arg0: i32) -> (i32, i32) {
    %c0_i32 = arith.constant 0 : i32
    %c0_i32_0 = arith.constant 0 : i32
    %c0_i32_1 = arith.constant 0 : i32
    return %c0_i32, %c0_i32_0 : i32, i32
  }
  func.func @transform_6(%arg0: i32) -> (i32, i32) {
    %c0_i32 = arith.constant 0 : i32
    %c0_i32_0 = arith.constant 0 : i32
    %c0_i32_1 = arith.constant 0 : i32
    return %c0_i32, %c0_i32_0 : i32, i32
  }
  func.func @transform_7(%arg0: i32) -> (i32, i32) {
    %c0_i32 = arith.constant 0 : i32
    %c0_i32_0 = arith.constant 0 : i32
    %c0_i32_1 = arith.constant 0 : i32
    return %c0_i32, %c0_i32_0 : i32, i32
  }
  func.func @transform_8(%arg0: i32) -> (i32, i32) {
    %c0_i32 = arith.constant 0 : i32
    %c0_i32_0 = arith.constant 0 : i32
    %c0_i32_1 = arith.constant 0 : i32
    return %c0_i32, %c0_i32_0 : i32, i32
  }
  func.func @transform_9(%arg0: i32) -> (i32, i32) {
    %c0_i32 = arith.constant 0 : i32
    %c0_i32_0 = arith.constant 0 : i32
    %c0_i32_1 = arith.constant 0 : i32
    return %c0_i32, %c0_i32_0 : i32, i32
  }
  func.func @transform_10(%arg0: i32) -> (i32, i32) {
    %c0_i32 = arith.constant 0 : i32
    %c0_i32_0 = arith.constant 0 : i32
    %c0_i32_1 = arith.constant 0 : i32
    return %c0_i32, %c0_i32_0 : i32, i32
  }
  func.func @transform_11(%arg0: i32) -> (i32, i32) {
    %c0_i32 = arith.constant 0 : i32
    %c0_i32_0 = arith.constant 0 : i32
    %c0_i32_1 = arith.constant 0 : i32
    return %c0_i32, %c0_i32_0 : i32, i32
  }
  func.func @transform_12(%arg0: i32) -> (i32, i32) {
    %c0_i32 = arith.constant 0 : i32
    %c0_i32_0 = arith.constant 0 : i32
    %c0_i32_1 = arith.constant 0 : i32
    return %c0_i32, %c0_i32_0 : i32, i32
  }
  func.func @transform_13(%arg0: i32) -> (i32, i32, i32) {
    %c0_i32 = arith.constant 0 : i32
    %c0_i32_0 = arith.constant 0 : i32
    %c0_i32_1 = arith.constant 0 : i32
    return %arg0, %c0_i32, %c0_i32_0 : i32, i32, i32
  }
}

</mosaic_0001>

<llo_original>
// kernel: tpu_custom_call.1
$region0: #{tpu_custom_call.1}
  #allocation0 [shape = 'u32[]', space=smem, size = 0x4, offset = 0x4, fixed_abs, tag = 'smem constant byte address 0x4 - core index']
  #allocation1 [shape = 'u32[144,128]{1,0:T(1,128)}', space=vmem, size = 0x12000, scoped, tag = 'internal scratch']
  %s0 = inlined_call_operand.hbm [shape: f32[2,8,256], index: 0, kind: input, shape index: {}]
  %s1 = inlined_call_operand.hbm [shape: bf16[256,768], index: 1, kind: input, shape index: {}]
  %s2 = inlined_call_operand.hbm [shape: f32[1,768], index: 2, kind: input, shape index: {}]
  %s3 = inlined_call_operand.hbm [shape: bf16[256,256], index: 3, kind: input, shape index: {}]
  %s4 = inlined_call_operand.vmem [shape: f32[1,256], index: 4, kind: input, shape index: {}]
  %s5 = inlined_call_operand.vmem [shape: f32[1,256], index: 5, kind: input, shape index: {}]
  %s6 = inlined_call_operand.vmem [shape: f32[1,256], index: 6, kind: input, shape index: {}]
  %s7 = inlined_call_operand.vmem [shape: f32[1,256], index: 7, kind: input, shape index: {}]
  %s8 = inlined_call_operand.hbm [shape: f32[1,256], index: 8, kind: input, shape index: {}]
  %s9 = inlined_call_operand.hbm [shape: bf16[256,1024], index: 9, kind: input, shape index: {}]
  %s10 = inlined_call_operand.vmem [shape: f32[1,1024], index: 10, kind: input, shape index: {}]
  %s11 = inlined_call_operand.hbm [shape: bf16[1024,256], index: 11, kind: input, shape index: {}]
  %s12 = inlined_call_operand.vmem [shape: f32[1,256], index: 12, kind: input, shape index: {}]
  %s13 = inlined_call_operand.hbm [shape: f32[2,8,256], index: 13, kind: output, shape index: {}]
  %s14 = sld [smem:[#allocation0]]
  $region90: #{tpu_custom_call.1} parent=0
    _
  %s16 = ssub.s32 1, %s14
  %s17 = scalar_select 0, %s16, %s14
  $region1: #{tpu_custom_call.1} parent=0
    #allocation2 [shape = 'u8[16384]{0}', space=vmem, size = 0x4000, scoped, tag = 'input window, operand 0, single buffered']
    #allocation3 [shape = 's32[1]{0}', space=sflag, size = 0x4, scoped, tag = 'scoped memory for tpu_custom_call.1']
    #allocation4 [shape = 's32[1]{0}', space=sflag, size = 0x4, scoped, tag = 'scoped memory for tpu_custom_call.1']
    #allocation5 [shape = 'u8[393216]{0}', space=vmem, size = 0x60000, scoped, tag = 'input window, operand 1, single buffered']
    #allocation6 [shape = 's32[1]{0}', space=sflag, size = 0x4, scoped, tag = 'scoped memory for tpu_custom_call.1']
    #allocation7 [shape = 'u8[3072]{0}', space=vmem, size = 0xc00, scoped, tag = 'input window, operand 2, single buffered']
    #allocation8 [shape = 'u8[131072]{0}', space=vmem, size = 0x20000, scoped, tag = 'input window, operand 3, single buffered']
    #allocation9 [shape = 's32[1]{0}', space=sflag, size = 0x4, scoped, tag = 'scoped memory for tpu_custom_call.1']
    #allocation10 [shape = 'u8[1024]{0}', space=vmem, size = 0x400, scoped, tag = 'input window, operand 8, single buffered']
    #allocation11 [shape = 'u8[524288]{0}', space=vmem, size = 0x80000, scoped, tag = 'input window, operand 9, single buffered']
    #allocation12 [shape = 's32[1]{0}', space=sflag, size = 0x4, scoped, tag = 'scoped memory for tpu_custom_call.1']
    #allocation13 [shape = 'u8[524288]{0}', space=vmem, size = 0x80000, scoped, tag = 'input window, operand 11, single buffered']
    #allocation14 [shape = 'u8[16384]{0}', space=vmem, size = 0x4000, scoped, tag = 'output window, operand 0, single buffered']
    %18 = vsyncpa [#allocation3], 0
    %19 = vsyncpa [#allocation6], 0
    %20 = vsyncpa [#allocation9], 0
    %21 = vsyncpa [#allocation12], 0
    %22 = vsyncpa [#allocation4], 0
    // Predicated region
    $region2: #{tpu_custom_call.1} parent=1 // pred_check
      _
    $region3: #{tpu_custom_call.1} parent=1 // pred_check_branch
      %24 = sbr.rel (0) target = $region5
    $region4: #{tpu_custom_call.1} parent=1 // pred_region
      %s26 = ssub.s32 512, 512
      %27 = vsyncadd [#allocation3], %s26
      %s28 = sshll.u32 [#allocation2], 4
      %s29 = int_to_ptr.vmem [resolvable:$true] %s28
      %34 = dma.hbm_to_vmem [thread:$0]  %s0, 512, %s29, [#allocation3], 256, 256, 16
    $region5: #{tpu_custom_call.1} parent=1 // pred_fallthru
      _
    // Predicated region
    $region6: #{tpu_custom_call.1} parent=1 // pred_check
      _
    $region7: #{tpu_custom_call.1} parent=1 // pred_check_branch
      %36 = sbr.rel (0) target = $region9
    $region8: #{tpu_custom_call.1} parent=1 // pred_region
      %s38 = ssub.s32 12288, 12288
      %39 = vsyncadd [#allocation6], %s38
      %s40 = sshll.u32 [#allocation5], 4
      %s41 = int_to_ptr.vmem [resolvable:$true] %s40
      %46 = dma.hbm_to_vmem [thread:$0]  %s1, 12288, %s41, [#allocation6], 384, 384, 24
    $region9: #{tpu_custom_call.1} parent=1 // pred_fallthru
      _
    // Predicated region
    $region10: #{tpu_custom_call.1} parent=1 // pred_check
      _
    $region11: #{tpu_custom_call.1} parent=1 // pred_check_branch
      %48 = sbr.rel (0) target = $region13
    $region12: #{tpu_custom_call.1} parent=1 // pred_region
      %s50 = ssub.s32 96, 96
      %51 = vsyncadd [#allocation6], %s50
      %s53 = sshll.u32 [#allocation7], 4
      %s54 = int_to_ptr.vmem [resolvable:$true] %s53
      %56 = dma.hbm_to_vmem [thread:$0]  %s2, 96, %s54, [#allocation6]
    $region13: #{tpu_custom_call.1} parent=1 // pred_fallthru
      _
    // Predicated region
    $region14: #{tpu_custom_call.1} parent=1 // pred_check
      _
    $region15: #{tpu_custom_call.1} parent=1 // pred_check_branch
      %58 = sbr.rel (0) target = $region17
    $region16: #{tpu_custom_call.1} parent=1 // pred_region
      %s60 = ssub.s32 4096, 4096
      %61 = vsyncadd [#allocation9], %s60
      %s62 = sshll.u32 [#allocation8], 4
      %s63 = int_to_ptr.vmem [resolvable:$true] %s62
      %68 = dma.hbm_to_vmem [thread:$0]  %s3, 4096, %s63, [#allocation9], 128, 128, 8
    $region17: #{tpu_custom_call.1} parent=1 // pred_fallthru
      _
    // Predicated region
    $region18: #{tpu_custom_call.1} parent=1 // pred_check
      _
    $region19: #{tpu_custom_call.1} parent=1 // pred_check_branch
      %70 = sbr.rel (0) target = $region21
    $region20: #{tpu_custom_call.1} parent=1 // pred_region
      _
    $region21: #{tpu_custom_call.1} parent=1 // pred_fallthru
      _
    // Predicated region
    $region22: #{tpu_custom_call.1} parent=1 // pred_check
      _
    $region23: #{tpu_custom_call.1} parent=1 // pred_check_branch
      %72 = sbr.rel (0) target = $region25
    $region24: #{tpu_custom_call.1} parent=1 // pred_region
      _
    $region25: #{tpu_custom_call.1} parent=1 // pred_fallthru
      _
    // Predicated region
    $region26: #{tpu_custom_call.1} parent=1 // pred_check
      _
    $region27: #{tpu_custom_call.1} parent=1 // pred_check_branch
      %74 = sbr.rel (0) target = $region29
    $region28: #{tpu_custom_call.1} parent=1 // pred_region
      _
    $region29: #{tpu_custom_call.1} parent=1 // pred_fallthru
      _
    // Predicated region
    $region30: #{tpu_custom_call.1} parent=1 // pred_check
      _
    $region31: #{tpu_custom_call.1} parent=1 // pred_check_branch
      %76 = sbr.rel (0) target = $region33
    $region32: #{tpu_custom_call.1} parent=1 // pred_region
      _
    $region33: #{tpu_custom_call.1} parent=1 // pred_fallthru
      _
    // Predicated region
    $region34: #{tpu_custom_call.1} parent=1 // pred_check
      _
    $region35: #{tpu_custom_call.1} parent=1 // pred_check_branch
      %78 = sbr.rel (0) target = $region37
    $region36: #{tpu_custom_call.1} parent=1 // pred_region
      %s80 = ssub.s32 32, 32
      %81 = vsyncadd [#allocation9], %s80
      %s83 = sshll.u32 [#allocation10], 4
      %s84 = int_to_ptr.vmem [resolvable:$true] %s83
      %86 = dma.hbm_to_vmem [thread:$0]  %s8, 32, %s84, [#allocation9]
    $region37: #{tpu_custom_call.1} parent=1 // pred_fallthru
      _
    // Predicated region
    $region38: #{tpu_custom_call.1} parent=1 // pred_check
      _
    $region39: #{tpu_custom_call.1} parent=1 // pred_check_branch
      %88 = sbr.rel (0) target = $region41
    $region40: #{tpu_custom_call.1} parent=1 // pred_region
      %s90 = ssub.s32 16384, 16384
      %91 = vsyncadd [#allocation12], %s90
      %s92 = sshll.u32 [#allocation11], 4
      %s93 = int_to_ptr.vmem [resolvable:$true] %s92
      %98 = dma.hbm_to_vmem [thread:$0]  %s9, 16384, %s93, [#allocation12], 512, 512, 32
    $region41: #{tpu_custom_call.1} parent=1 // pred_fallthru
      _
    // Predicated region
    $region42: #{tpu_custom_call.1} parent=1 // pred_check
      _
    $region43: #{tpu_custom_call.1} parent=1 // pred_check_branch
      %100 = sbr.rel (0) target = $region45
    $region44: #{tpu_custom_call.1} parent=1 // pred_region
      _
    $region45: #{tpu_custom_call.1} parent=1 // pred_fallthru
      _
    // Predicated region
    $region46: #{tpu_custom_call.1} parent=1 // pred_check
      _
    $region47: #{tpu_custom_call.1} parent=1 // pred_check_branch
      %102 = sbr.rel (0) target = $region49
    $region48: #{tpu_custom_call.1} parent=1 // pred_region
      %s104 = ssub.s32 16384, 16384
      %105 = vsyncadd [#allocation12], %s104
      %s106 = sshll.u32 [#allocation13], 4
      %s107 = int_to_ptr.vmem [resolvable:$true] %s106
      %112 = dma.hbm_to_vmem [thread:$0]  %s11, 16384, %s107, [#allocation12], 128, 128, 8
    $region49: #{tpu_custom_call.1} parent=1 // pred_fallthru
      _
    // Predicated region
    $region50: #{tpu_custom_call.1} parent=1 // pred_check
      _
    $region51: #{tpu_custom_call.1} parent=1 // pred_check_branch
      %114 = sbr.rel (0) target = $region53
    $region52: #{tpu_custom_call.1} parent=1 // pred_region
      _
    $region53: #{tpu_custom_call.1} parent=1 // pred_fallthru
      _
    // Predicated region
    $region54: #{tpu_custom_call.1} parent=1 // pred_check
      _
    $region55: #{tpu_custom_call.1} parent=1 // pred_check_branch
      %116 = sbr.rel (0) target = $region57
    $region56: #{tpu_custom_call.1} parent=1 // pred_region
      %117 = dma.done [#allocation3], 512
    $region57: #{tpu_custom_call.1} parent=1 // pred_fallthru
      _
    // Predicated region
    $region58: #{tpu_custom_call.1} parent=1 // pred_check
      _
    $region59: #{tpu_custom_call.1} parent=1 // pred_check_branch
      %119 = sbr.rel (0) target = $region61
    $region60: #{tpu_custom_call.1} parent=1 // pred_region
      %120 = dma.done [#allocation6], 12288
    $region61: #{tpu_custom_call.1} parent=1 // pred_fallthru
      _
    // Predicated region
    $region62: #{tpu_custom_call.1} parent=1 // pred_check
      _
    $region63: #{tpu_custom_call.1} parent=1 // pred_check_branch
      %122 = sbr.rel (0) target = $region65
    $region64: #{tpu_custom_call.1} parent=1 // pred_region
      %123 = dma.done [#allocation6], 96
    $region65: #{tpu_custom_call.1} parent=1 // pred_fallthru
      _
    // Predicated region
    $region66: #{tpu_custom_call.1} parent=1 // pred_check
      _
    $region67: #{tpu_custom_call.1} parent=1 // pred_check_branch
      %125 = sbr.rel (0) target = $region69
    $region68: #{tpu_custom_call.1} parent=1 // pred_region
      %126 = dma.done [#allocation9], 4096
    $region69: #{tpu_custom_call.1} parent=1 // pred_fallthru
      _
    // Predicated region
    $region70: #{tpu_custom_call.1} parent=1 // pred_check
      _
    $region71: #{tpu_custom_call.1} parent=1 // pred_check_branch
      %128 = sbr.rel (0) target = $region73
    $region72: #{tpu_custom_call.1} parent=1 // pred_region
      %129 = dma.done [#allocation9], 32
    $region73: #{tpu_custom_call.1} parent=1 // pred_fallthru
      _
    // Predicated region
    $region74: #{tpu_custom_call.1} parent=1 // pred_check
      _
    $region75: #{tpu_custom_call.1} parent=1 // pred_check_branch
      %131 = sbr.rel (0) target = $region77
    $region76: #{tpu_custom_call.1} parent=1 // pred_region
      %132 = dma.done [#allocation12], 16384
    $region77: #{tpu_custom_call.1} parent=1 // pred_fallthru
      _
    // Predicated region
    $region78: #{tpu_custom_call.1} parent=1 // pred_check
      _
    $region79: #{tpu_custom_call.1} parent=1 // pred_check_branch
      %134 = sbr.rel (0) target = $region81
    $region80: #{tpu_custom_call.1} parent=1 // pred_region
      %135 = dma.done [#allocation12], 16384
    $region81: #{tpu_custom_call.1} parent=1 // pred_fallthru
      _
    %v137 = vld [vmem:[#allocation2] sm:$0xff]
    %v138 = vld [vmem:[#allocation2 + $0x8] sm:$0xff]
    %v139 = vld [vmem:[#allocation2 + $0x10] sm:$0xff]
    %v140 = vld [vmem:[#allocation2 + $0x18] sm:$0xff]
    %v141 = vld [vmem:[%s5] sm:$0x3]
    %v142 = vld [vmem:[%s6] sm:$0x3]
    %v143 = vadd.f32 %v137, %v138
    %144 = vadd.xlane.f32.xlu0 %v143
    %v145 = vpop.xlane.xlu0 %144
    %v146 = vadd.f32 %v139, %v140
    %147 = vadd.xlane.f32.xlu0 %v146
    %v148 = vpop.xlane.xlu0 %147
    %v149 = vrcp.pop 256.0
    %v150 = vmul.f32 %v145, %v149
    %v151 = vmul.f32 %v148, %v149
    %v152 = vsub.f32 %v137, %v150
    %v153 = vsub.f32 %v138, %v150
    %v154 = vsub.f32 %v139, %v151
    %v155 = vsub.f32 %v140, %v151
    %v156 = vmul.f32 %v152, %v152
    %v157 = vmul.f32 %v153, %v153
    %v158 = vmul.f32 %v154, %v154
    %v159 = vmul.f32 %v155, %v155
    %v160 = vadd.f32 %v156, %v157
    %161 = vadd.xlane.f32.xlu0 %v160
    %v162 = vpop.xlane.xlu0 %161
    %v163 = vadd.f32 %v158, %v159
    %164 = vadd.xlane.f32.xlu0 %v163
    %v165 = vpop.xlane.xlu0 %164
    %v166 = vmul.f32 %v162, %v149
    %v167 = vmul.f32 %v165, %v149
    %v168 = vadd.f32 %v166, 1e-05
    %v169 = vadd.f32 %v167, 1e-05
    %v170 = vrsqrt.pop %v168
    %v171 = vrsqrt.pop %v169
    %v172 = vmul.f32 %v152, %v170
    %v173 = vmul.f32 %v153, %v170
    %v174 = vmul.f32 %v154, %v171
    %v175 = vmul.f32 %v155, %v171
    %v177 = vlaneseq
    %v178 = vshrl.u32 %v177, 7
    %v179 = vsub.s32 0, %v178
    %v180 = vrot.slane %v141, %v179
    %v181 = vlaneseq
    %v182 = vshrl.u32 %v181, 7
    %v183 = vsub.s32 1, %v182
    %v184 = vrot.slane %v141, %v183
    %v187 = vmul.f32 %v172, %v180
    %v188 = vmul.f32 %v173, %v184
    %v189 = vmul.f32 %v174, %v180
    %v190 = vmul.f32 %v175, %v184
    %v192 = vlaneseq
    %v193 = vshrl.u32 %v192, 7
    %v194 = vsub.s32 0, %v193
    %v195 = vrot.slane %v142, %v194
    %v196 = vlaneseq
    %v197 = vshrl.u32 %v196, 7
    %v198 = vsub.s32 1, %v197
    %v199 = vrot.slane %v142, %v198
    %v202 = vadd.f32 %v187, %v195
    %v203 = vadd.f32 %v188, %v199
    %v204 = vadd.f32 %v189, %v195
    %v205 = vadd.f32 %v190, %v199
    %v206 = vpack.c.bf16 %v204, %v202
    %v207 = vpack.c.bf16 %v205, %v203
    %v208 = vld [vmem:[#allocation5] sm:$0xff]
    %v209 = vld [vmem:[#allocation5 + $0x8] sm:$0xff]
    %v210 = vld [vmem:[#allocation5 + $0x10] sm:$0xff]
    %v211 = vld [vmem:[#allocation5 + $0x18] sm:$0xff]
    %v212 = vld [vmem:[#allocation5 + $0x20] sm:$0xff]
    %v213 = vld [vmem:[#allocation5 + $0x28] sm:$0xff]
    %v214 = vld [vmem:[#allocation5 + $0x30] sm:$0xff]
    %v215 = vld [vmem:[#allocation5 + $0x38] sm:$0xff]
    %v216 = vld [vmem:[#allocation5 + $0x40] sm:$0xff]
    %v217 = vld [vmem:[#allocation5 + $0x48] sm:$0xff]
    %v218 = vld [vmem:[#allocation5 + $0x50] sm:$0xff]
    %v219 = vld [vmem:[#allocation5 + $0x58] sm:$0xff]
    %v220 = vld [vmem:[#allocation5 + $0x60] sm:$0xff]
    %v221 = vld [vmem:[#allocation5 + $0x68] sm:$0xff]
    %v222 = vld [vmem:[#allocation5 + $0x70] sm:$0xff]
    %v223 = vld [vmem:[#allocation5 + $0x78] sm:$0xff]
    %v224 = vld [vmem:[#allocation5 + $0x80] sm:$0xff]
    %v225 = vld [vmem:[#allocation5 + $0x88] sm:$0xff]
    %v226 = vld [vmem:[#allocation5 + $0x90] sm:$0xff]
    %v227 = vld [vmem:[#allocation5 + $0x98] sm:$0xff]
    %v228 = vld [vmem:[#allocation5 + $0xa0] sm:$0xff]
    %v229 = vld [vmem:[#allocation5 + $0xa8] sm:$0xff]
    %v230 = vld [vmem:[#allocation5 + $0xb0] sm:$0xff]
    %v231 = vld [vmem:[#allocation5 + $0xb8] sm:$0xff]
    %v232 = vld [vmem:[#allocation5 + $0xc0] sm:$0xff]
    %v233 = vld [vmem:[#allocation5 + $0xc8] sm:$0xff]
    %v234 = vld [vmem:[#allocation5 + $0xd0] sm:$0xff]
    %v235 = vld [vmem:[#allocation5 + $0xd8] sm:$0xff]
    %v236 = vld [vmem:[#allocation5 + $0xe0] sm:$0xff]
    %v237 = vld [vmem:[#allocation5 + $0xe8] sm:$0xff]
    %v238 = vld [vmem:[#allocation5 + $0xf0] sm:$0xff]
    %v239 = vld [vmem:[#allocation5 + $0xf8] sm:$0xff]
    %v240 = vld [vmem:[#allocation5 + $0x100] sm:$0xff]
    %v241 = vld [vmem:[#allocation5 + $0x108] sm:$0xff]
    %v242 = vld [vmem:[#allocation5 + $0x110] sm:$0xff]
    %v243 = vld [vmem:[#allocation5 + $0x118] sm:$0xff]
    %v244 = vld [vmem:[#allocation5 + $0x120] sm:$0xff]
    %v245 = vld [vmem:[#allocation5 + $0x128] sm:$0xff]
    %v246 = vld [vmem:[#allocation5 + $0x130] sm:$0xff]
    %v247 = vld [vmem:[#allocation5 + $0x138] sm:$0xff]
    %v248 = vld [vmem:[#allocation5 + $0x140] sm:$0xff]
    %v249 = vld [vmem:[#allocation5 + $0x148] sm:$0xff]
    %v250 = vld [vmem:[#allocation5 + $0x150] sm:$0xff]
    %v251 = vld [vmem:[#allocation5 + $0x158] sm:$0xff]
    %v252 = vld [vmem:[#allocation5 + $0x160] sm:$0xff]
    %v253 = vld [vmem:[#allocation5 + $0x168] sm:$0xff]
    %v254 = vld [vmem:[#allocation5 + $0x170] sm:$0xff]
    %v255 = vld [vmem:[#allocation5 + $0x178] sm:$0xff]
    %v256 = vld [vmem:[#allocation5 + $0x180] sm:$0xff]
    %v257 = vld [vmem:[#allocation5 + $0x188] sm:$0xff]
    %v258 = vld [vmem:[#allocation5 + $0x190] sm:$0xff]
    %v259 = vld [vmem:[#allocation5 + $0x198] sm:$0xff]
    %v260 = vld [vmem:[#allocation5 + $0x1a0] sm:$0xff]
    %v261 = vld [vmem:[#allocation5 + $0x1a8] sm:$0xff]
    %v262 = vld [vmem:[#allocation5 + $0x1b0] sm:$0xff]
    %v263 = vld [vmem:[#allocation5 + $0x1b8] sm:$0xff]
    %v264 = vld [vmem:[#allocation5 + $0x1c0] sm:$0xff]
    %v265 = vld [vmem:[#allocation5 + $0x1c8] sm:$0xff]
    %v266 = vld [vmem:[#allocation5 + $0x1d0] sm:$0xff]
    %v267 = vld [vmem:[#allocation5 + $0x1d8] sm:$0xff]
    %v268 = vld [vmem:[#allocation5 + $0x1e0] sm:$0xff]
    %v269 = vld [vmem:[#allocation5 + $0x1e8] sm:$0xff]
    %v270 = vld [vmem:[#allocation5 + $0x1f0] sm:$0xff]
    %v271 = vld [vmem:[#allocation5 + $0x1f8] sm:$0xff]
    %v272 = vld [vmem:[#allocation5 + $0x200] sm:$0xff]
    %v273 = vld [vmem:[#allocation5 + $0x208] sm:$0xff]
    %v274 = vld [vmem:[#allocation5 + $0x210] sm:$0xff]
    %v275 = vld [vmem:[#allocation5 + $0x218] sm:$0xff]
    %v276 = vld [vmem:[#allocation5 + $0x220] sm:$0xff]
    %v277 = vld [vmem:[#allocation5 + $0x228] sm:$0xff]
    %v278 = vld [vmem:[#allocation5 + $0x230] sm:$0xff]
    %v279 = vld [vmem:[#allocation5 + $0x238] sm:$0xff]
    %v280 = vld [vmem:[#allocation5 + $0x240] sm:$0xff]
    %v281 = vld [vmem:[#allocation5 + $0x248] sm:$0xff]
    %v282 = vld [vmem:[#allocation5 + $0x250] sm:$0xff]
    %v283 = vld [vmem:[#allocation5 + $0x258] sm:$0xff]
    %v284 = vld [vmem:[#allocation5 + $0x260] sm:$0xff]
    %v285 = vld [vmem:[#allocation5 + $0x268] sm:$0xff]
    %v286 = vld [vmem:[#allocation5 + $0x270] sm:$0xff]
    %v287 = vld [vmem:[#allocation5 + $0x278] sm:$0xff]
    %v288 = vld [vmem:[#allocation5 + $0x280] sm:$0xff]
    %v289 = vld [vmem:[#allocation5 + $0x288] sm:$0xff]
    %v290 = vld [vmem:[#allocation5 + $0x290] sm:$0xff]
    %v291 = vld [vmem:[#allocation5 + $0x298] sm:$0xff]
    %v292 = vld [vmem:[#allocation5 + $0x2a0] sm:$0xff]
    %v293 = vld [vmem:[#allocation5 + $0x2a8] sm:$0xff]
    %v294 = vld [vmem:[#allocation5 + $0x2b0] sm:$0xff]
    %v295 = vld [vmem:[#allocation5 + $0x2b8] sm:$0xff]
    %v296 = vld [vmem:[#allocation5 + $0x2c0] sm:$0xff]
    %v297 = vld [vmem:[#allocation5 + $0x2c8] sm:$0xff]
    %v298 = vld [vmem:[#allocation5 + $0x2d0] sm:$0xff]
    %v299 = vld [vmem:[#allocation5 + $0x2d8] sm:$0xff]
    %v300 = vld [vmem:[#allocation5 + $0x2e0] sm:$0xff]
    %v301 = vld [vmem:[#allocation5 + $0x2e8] sm:$0xff]
    %v302 = vld [vmem:[#allocation5 + $0x2f0] sm:$0xff]
    %v303 = vld [vmem:[#allocation5 + $0x2f8] sm:$0xff]
    %v304 = vld [vmem:[#allocation7] sm:$0x3f]
    %v306 = vlaneseq
    %v307 = vshrl.u32 %v306, 7
    %v308 = vsub.s32 0, %v307
    %v309 = vrot.slane %v304, %v308
    %v310 = vlaneseq
    %v311 = vshrl.u32 %v310, 7
    %v312 = vsub.s32 1, %v311
    %v313 = vrot.slane %v304, %v312
    %v314 = vlaneseq
    %v315 = vshrl.u32 %v314, 7
    %v316 = vsub.s32 2, %v315
    %v317 = vrot.slane %v304, %v316
    %v318 = vlaneseq
    %v319 = vshrl.u32 %v318, 7
    %v320 = vsub.s32 3, %v319
    %v321 = vrot.slane %v304, %v320
    %v322 = vlaneseq
    %v323 = vshrl.u32 %v322, 7
    %v324 = vsub.s32 4, %v323
    %v325 = vrot.slane %v304, %v324
    %v326 = vlaneseq
    %v327 = vshrl.u32 %v326, 7
    %v328 = vsub.s32 5, %v327
    %v329 = vrot.slane %v304, %v328
    %v432 = vunpack.c.l.b16 %v208
    %v433 = vunpack.c.h.b16 %v208
    %v434 = vunpack.c.l.b16 %v209
    %v435 = vunpack.c.h.b16 %v209
    %v436 = vunpack.c.l.b16 %v210
    %v437 = vunpack.c.h.b16 %v210
    %v438 = vunpack.c.l.b16 %v211
    %v439 = vunpack.c.h.b16 %v211
    %v440 = vunpack.c.l.b16 %v212
    %v441 = vunpack.c.h.b16 %v212
    %v442 = vunpack.c.l.b16 %v213
    %v443 = vunpack.c.h.b16 %v213
    %v444 = vunpack.c.l.b16 %v214
    %v445 = vunpack.c.h.b16 %v214
    %v446 = vunpack.c.l.b16 %v215
    %v447 = vunpack.c.h.b16 %v215
    %v448 = vunpack.c.l.b16 %v216
    %v449 = vunpack.c.h.b16 %v216
    %v450 = vunpack.c.l.b16 %v217
    %v451 = vunpack.c.h.b16 %v217
    %v452 = vunpack.c.l.b16 %v218
    %v453 = vunpack.c.h.b16 %v218
    %v454 = vunpack.c.l.b16 %v219
    %v455 = vunpack.c.h.b16 %v219
    %v456 = vunpack.c.l.b16 %v220
    %v457 = vunpack.c.h.b16 %v220
    %v458 = vunpack.c.l.b16 %v221
    %v459 = vunpack.c.h.b16 %v221
    %v460 = vunpack.c.l.b16 %v222
    %v461 = vunpack.c.h.b16 %v222
    %v462 = vunpack.c.l.b16 %v223
    %v463 = vunpack.c.h.b16 %v223
    %v464 = vunpack.c.l.b16 %v224
    %v465 = vunpack.c.h.b16 %v224
    %v466 = vunpack.c.l.b16 %v225
    %v467 = vunpack.c.h.b16 %v225
    %v468 = vunpack.c.l.b16 %v226
    %v469 = vunpack.c.h.b16 %v226
    %v470 = vunpack.c.l.b16 %v227
    %v471 = vunpack.c.h.b16 %v227
    %v472 = vunpack.c.l.b16 %v228
    %v473 = vunpack.c.h.b16 %v228
    %v474 = vunpack.c.l.b16 %v229
    %v475 = vunpack.c.h.b16 %v229
    %v476 = vunpack.c.l.b16 %v230
    %v477 = vunpack.c.h.b16 %v230
    %v478 = vunpack.c.l.b16 %v231
    %v479 = vunpack.c.h.b16 %v231
    %v480 = vunpack.c.l.b16 %v232
    %v481 = vunpack.c.h.b16 %v232
    %v482 = vunpack.c.l.b16 %v233
    %v483 = vunpack.c.h.b16 %v233
    %v484 = vunpack.c.l.b16 %v234
    %v485 = vunpack.c.h.b16 %v234
    %v486 = vunpack.c.l.b16 %v235
    %v487 = vunpack.c.h.b16 %v235
    %v488 = vunpack.c.l.b16 %v236
    %v489 = vunpack.c.h.b16 %v236
    %v490 = vunpack.c.l.b16 %v237
    %v491 = vunpack.c.h.b16 %v237
    %v492 = vunpack.c.l.b16 %v238
    %v493 = vunpack.c.h.b16 %v238
    %v494 = vunpack.c.l.b16 %v239
    %v495 = vunpack.c.h.b16 %v239
    %v496 = vunpack.c.l.b16 %v240
    %v497 = vunpack.c.h.b16 %v240
    %v498 = vunpack.c.l.b16 %v241
    %v499 = vunpack.c.h.b16 %v241
    %v500 = vunpack.c.l.b16 %v242
    %v501 = vunpack.c.h.b16 %v242
    %v502 = vunpack.c.l.b16 %v243
    %v503 = vunpack.c.h.b16 %v243
    %v504 = vunpack.c.l.b16 %v244
    %v505 = vunpack.c.h.b16 %v244
    %v506 = vunpack.c.l.b16 %v245
    %v507 = vunpack.c.h.b16 %v245
    %v508 = vunpack.c.l.b16 %v246
    %v509 = vunpack.c.h.b16 %v246
    %v510 = vunpack.c.l.b16 %v247
    %v511 = vunpack.c.h.b16 %v247
    %v512 = vunpack.c.l.b16 %v248
    %v513 = vunpack.c.h.b16 %v248
    %v514 = vunpack.c.l.b16 %v249
    %v515 = vunpack.c.h.b16 %v249
    %v516 = vunpack.c.l.b16 %v250
    %v517 = vunpack.c.h.b16 %v250
    %v518 = vunpack.c.l.b16 %v251
    %v519 = vunpack.c.h.b16 %v251
    %v520 = vunpack.c.l.b16 %v252
    %v521 = vunpack.c.h.b16 %v252
    %v522 = vunpack.c.l.b16 %v253
    %v523 = vunpack.c.h.b16 %v253
    %v524 = vunpack.c.l.b16 %v254
    %v525 = vunpack.c.h.b16 %v254
    %v526 = vunpack.c.l.b16 %v255
    %v527 = vunpack.c.h.b16 %v255
    %v528 = vunpack.c.l.b16 %v256
    %v529 = vunpack.c.h.b16 %v256
    %v530 = vunpack.c.l.b16 %v257
    %v531 = vunpack.c.h.b16 %v257
    %v532 = vunpack.c.l.b16 %v258
    %v533 = vunpack.c.h.b16 %v258
    %v534 = vunpack.c.l.b16 %v259
    %v535 = vunpack.c.h.b16 %v259
    %v536 = vunpack.c.l.b16 %v260
    %v537 = vunpack.c.h.b16 %v260
    %v538 = vunpack.c.l.b16 %v261
    %v539 = vunpack.c.h.b16 %v261
    %v540 = vunpack.c.l.b16 %v262
    %v541 = vunpack.c.h.b16 %v262
    %v542 = vunpack.c.l.b16 %v263
    %v543 = vunpack.c.h.b16 %v263
    %v544 = vunpack.c.l.b16 %v264
    %v545 = vunpack.c.h.b16 %v264
    %v546 = vunpack.c.l.b16 %v265
    %v547 = vunpack.c.h.b16 %v265
    %v548 = vunpack.c.l.b16 %v266
    %v549 = vunpack.c.h.b16 %v266
    %v550 = vunpack.c.l.b16 %v267
    %v551 = vunpack.c.h.b16 %v267
    %v552 = vunpack.c.l.b16 %v268
    %v553 = vunpack.c.h.b16 %v268
    %v554 = vunpack.c.l.b16 %v269
    %v555 = vunpack.c.h.b16 %v269
    %v556 = vunpack.c.l.b16 %v270
    %v557 = vunpack.c.h.b16 %v270
    %v558 = vunpack.c.l.b16 %v271
    %v559 = vunpack.c.h.b16 %v271
    %v560 = vunpack.c.l.b16 %v272
    %v561 = vunpack.c.h.b16 %v272
    %v562 = vunpack.c.l.b16 %v273
    %v563 = vunpack.c.h.b16 %v273
    %v564 = vunpack.c.l.b16 %v274
    %v565 = vunpack.c.h.b16 %v274
    %v566 = vunpack.c.l.b16 %v275
    %v567 = vunpack.c.h.b16 %v275
    %v568 = vunpack.c.l.b16 %v276
    %v569 = vunpack.c.h.b16 %v276
    %v570 = vunpack.c.l.b16 %v277
    %v571 = vunpack.c.h.b16 %v277
    %v572 = vunpack.c.l.b16 %v278
    %v573 = vunpack.c.h.b16 %v278
    %v574 = vunpack.c.l.b16 %v279
    %v575 = vunpack.c.h.b16 %v279
    %v576 = vunpack.c.l.b16 %v280
    %v577 = vunpack.c.h.b16 %v280
    %v578 = vunpack.c.l.b16 %v281
    %v579 = vunpack.c.h.b16 %v281
    %v580 = vunpack.c.l.b16 %v282
    %v581 = vunpack.c.h.b16 %v282
    %v582 = vunpack.c.l.b16 %v283
    %v583 = vunpack.c.h.b16 %v283
    %v584 = vunpack.c.l.b16 %v284
    %v585 = vunpack.c.h.b16 %v284
    %v586 = vunpack.c.l.b16 %v285
    %v587 = vunpack.c.h.b16 %v285
    %v588 = vunpack.c.l.b16 %v286
    %v589 = vunpack.c.h.b16 %v286
    %v590 = vunpack.c.l.b16 %v287
    %v591 = vunpack.c.h.b16 %v287
    %v592 = vunpack.c.l.b16 %v288
    %v593 = vunpack.c.h.b16 %v288
    %v594 = vunpack.c.l.b16 %v289
    %v595 = vunpack.c.h.b16 %v289
    %v596 = vunpack.c.l.b16 %v290
    %v597 = vunpack.c.h.b16 %v290
    %v598 = vunpack.c.l.b16 %v291
    %v599 = vunpack.c.h.b16 %v291
    %v600 = vunpack.c.l.b16 %v292
    %v601 = vunpack.c.h.b16 %v292
    %v602 = vunpack.c.l.b16 %v293
    %v603 = vunpack.c.h.b16 %v293
    %v604 = vunpack.c.l.b16 %v294
    %v605 = vunpack.c.h.b16 %v294
    %v606 = vunpack.c.l.b16 %v295
    %v607 = vunpack.c.h.b16 %v295
    %v608 = vunpack.c.l.b16 %v296
    %v609 = vunpack.c.h.b16 %v296
    %v610 = vunpack.c.l.b16 %v297
    %v611 = vunpack.c.h.b16 %v297
    %v612 = vunpack.c.l.b16 %v298
    %v613 = vunpack.c.h.b16 %v298
    %v614 = vunpack.c.l.b16 %v299
    %v615 = vunpack.c.h.b16 %v299
    %v616 = vunpack.c.l.b16 %v300
    %v617 = vunpack.c.h.b16 %v300
    %v618 = vunpack.c.l.b16 %v301
    %v619 = vunpack.c.h.b16 %v301
    %v620 = vunpack.c.l.b16 %v302
    %v621 = vunpack.c.h.b16 %v302
    %v622 = vunpack.c.l.b16 %v303
    %v623 = vunpack.c.h.b16 %v303
    %v624 = vpack.c.b16 %v438, %v432
    %v625 = vpack.c.b16 %v439, %v433
    %v626 = vpack.c.b16 %v440, %v434
    %v627 = vpack.c.b16 %v441, %v435
    %v628 = vpack.c.b16 %v442, %v436
    %v629 = vpack.c.b16 %v443, %v437
    %v630 = vpack.c.b16 %v450, %v444
    %v631 = vpack.c.b16 %v451, %v445
    %v632 = vpack.c.b16 %v452, %v446
    %v633 = vpack.c.b16 %v453, %v447
    %v634 = vpack.c.b16 %v454, %v448
    %v635 = vpack.c.b16 %v455, %v449
    %v636 = vpack.c.b16 %v462, %v456
    %v637 = vpack.c.b16 %v463, %v457
    %v638 = vpack.c.b16 %v464, %v458
    %v639 = vpack.c.b16 %v465, %v459
    %v640 = vpack.c.b16 %v466, %v460
    %v641 = vpack.c.b16 %v467, %v461
    %v642 = vpack.c.b16 %v474, %v468
    %v643 = vpack.c.b16 %v475, %v469
    %v644 = vpack.c.b16 %v476, %v470
    %v645 = vpack.c.b16 %v477, %v471
    %v646 = vpack.c.b16 %v478, %v472
    %v647 = vpack.c.b16 %v479, %v473
    %v648 = vpack.c.b16 %v486, %v480
    %v649 = vpack.c.b16 %v487, %v481
    %v650 = vpack.c.b16 %v488, %v482
    %v651 = vpack.c.b16 %v489, %v483
    %v652 = vpack.c.b16 %v490, %v484
    %v653 = vpack.c.b16 %v491, %v485
    %v654 = vpack.c.b16 %v498, %v492
    %v655 = vpack.c.b16 %v499, %v493
    %v656 = vpack.c.b16 %v500, %v494
    %v657 = vpack.c.b16 %v501, %v495
    %v658 = vpack.c.b16 %v502, %v496
    %v659 = vpack.c.b16 %v503, %v497
    %v660 = vpack.c.b16 %v510, %v504
    %v661 = vpack.c.b16 %v511, %v505
    %v662 = vpack.c.b16 %v512, %v506
    %v663 = vpack.c.b16 %v513, %v507
    %v664 = vpack.c.b16 %v514, %v508
    %v665 = vpack.c.b16 %v515, %v509
    %v666 = vpack.c.b16 %v522, %v516
    %v667 = vpack.c.b16 %v523, %v517
    %v668 = vpack.c.b16 %v524, %v518
    %v669 = vpack.c.b16 %v525, %v519
    %v670 = vpack.c.b16 %v526, %v520
    %v671 = vpack.c.b16 %v527, %v521
    %v672 = vpack.c.b16 %v534, %v528
    %v673 = vpack.c.b16 %v535, %v529
    %v674 = vpack.c.b16 %v536, %v530
    %v675 = vpack.c.b16 %v537, %v531
    %v676 = vpack.c.b16 %v538, %v532
    %v677 = vpack.c.b16 %v539, %v533
    %v678 = vpack.c.b16 %v546, %v540
    %v679 = vpack.c.b16 %v547, %v541
    %v680 = vpack.c.b16 %v548, %v542
    %v681 = vpack.c.b16 %v549, %v543
    %v682 = vpack.c.b16 %v550, %v544
    %v683 = vpack.c.b16 %v551, %v545
    %v684 = vpack.c.b16 %v558, %v552
    %v685 = vpack.c.b16 %v559, %v553
    %v686 = vpack.c.b16 %v560, %v554
    %v687 = vpack.c.b16 %v561, %v555
    %v688 = vpack.c.b16 %v562, %v556
    %v689 = vpack.c.b16 %v563, %v557
    %v690 = vpack.c.b16 %v570, %v564
    %v691 = vpack.c.b16 %v571, %v565
    %v692 = vpack.c.b16 %v572, %v566
    %v693 = vpack.c.b16 %v573, %v567
    %v694 = vpack.c.b16 %v574, %v568
    %v695 = vpack.c.b16 %v575, %v569
    %v696 = vpack.c.b16 %v582, %v576
    %v697 = vpack.c.b16 %v583, %v577
    %v698 = vpack.c.b16 %v584, %v578
    %v699 = vpack.c.b16 %v585, %v579
    %v700 = vpack.c.b16 %v586, %v580
    %v701 = vpack.c.b16 %v587, %v581
    %v702 = vpack.c.b16 %v594, %v588
    %v703 = vpack.c.b16 %v595, %v589
    %v704 = vpack.c.b16 %v596, %v590
    %v705 = vpack.c.b16 %v597, %v591
    %v706 = vpack.c.b16 %v598, %v592
    %v707 = vpack.c.b16 %v599, %v593
    %v708 = vpack.c.b16 %v606, %v600
    %v709 = vpack.c.b16 %v607, %v601
    %v710 = vpack.c.b16 %v608, %v602
    %v711 = vpack.c.b16 %v609, %v603
    %v712 = vpack.c.b16 %v610, %v604
    %v713 = vpack.c.b16 %v611, %v605
    %v714 = vpack.c.b16 %v618, %v612
    %v715 = vpack.c.b16 %v619, %v613
    %v716 = vpack.c.b16 %v620, %v614
    %v717 = vpack.c.b16 %v621, %v615
    %v718 = vpack.c.b16 %v622, %v616
    %v719 = vpack.c.b16 %v623, %v617
    %816 = vmatprep.subr.bf16.mxu0 %v667
    %817 = vmatpush1.bf16.msra.mxu0 %v666
    %818 = vmatprep.subr.bf16.mxu0 %v661
    %819 = vmatpush1.bf16.msra.mxu0 %v660
    %820 = vmatprep.subr.bf16.mxu0 %v655
    %821 = vmatpush1.bf16.msra.mxu0 %v654
    %822 = vmatprep.subr.bf16.mxu0 %v649
    %823 = vmatpush1.bf16.msra.mxu0 %v648
    %824 = vmatprep.subr.bf16.mxu0 %v643
    %825 = vmatpush1.bf16.msra.mxu0 %v642
    %826 = vmatprep.subr.bf16.mxu0 %v637
    %827 = vmatpush1.bf16.msra.mxu0 %v636
    %828 = vmatprep.subr.bf16.mxu0 %v631
    %829 = vmatpush1.bf16.msra.mxu0 %v630
    %830 = vmatprep.subr.bf16.mxu0 %v625
    %831 = vmatpush1.bf16.msra.mxu0 %v624
    %832 = vmatprep.subr.bf16.mxu0 %v715
    %833 = vmatpush2.bf16.msra.mxu0 %v714
    %834 = vmatprep.subr.bf16.mxu0 %v709
    %835 = vmatpush2.bf16.msra.mxu0 %v708
    %836 = vmatprep.subr.bf16.mxu0 %v703
    %837 = vmatpush2.bf16.msra.mxu0 %v702
    %838 = vmatprep.subr.bf16.mxu0 %v697
    %839 = vmatpush2.bf16.msra.mxu0 %v696
    %840 = vmatprep.subr.bf16.mxu0 %v691
    %841 = vmatpush2.bf16.msra.mxu0 %v690
    %842 = vmatprep.subr.bf16.mxu0 %v685
    %843 = vmatpush2.bf16.msra.mxu0 %v684
    %844 = vmatprep.subr.bf16.mxu0 %v679
    %845 = vmatpush2.bf16.msra.mxu0 %v678
    %846 = vmatprep.subr.bf16.mxu0 %v673
    %847 = vmatpush2.bf16.msra.mxu0 %v672
    %848 = vmatprep.mubr.bf16.mxu0 %v207
    %849 = vmatmul.mubr.bf16.gmra.mxu0 %v206
    %v850 = vpop.f32.mrf.mxu0
    %v851 = vadd.f32 %v309, %v850
    %v852 = vpop.f32.mrf.mxu0
    %v853 = vadd.f32 %v313, %v852
    %v854 = vpop.f32.mrf.mxu0
    %v855 = vadd.f32 %v309, %v854
    %v856 = vpop.f32.mrf.mxu0
    %v857 = vadd.f32 %v313, %v856
    %858 = vdwg.mxu0
    %859 = vmatprep.subr.bf16.mxu0 %v669
    %860 = vmatpush1.bf16.msra.mxu0 %v668
    %861 = vmatprep.subr.bf16.mxu0 %v663
    %862 = vmatpush1.bf16.msra.mxu0 %v662
    %863 = vmatprep.subr.bf16.mxu0 %v657
    %864 = vmatpush1.bf16.msra.mxu0 %v656
    %865 = vmatprep.subr.bf16.mxu0 %v651
    %866 = vmatpush1.bf16.msra.mxu0 %v650
    %867 = vmatprep.subr.bf16.mxu0 %v645
    %868 = vmatpush1.bf16.msra.mxu0 %v644
    %869 = vmatprep.subr.bf16.mxu0 %v639
    %870 = vmatpush1.bf16.msra.mxu0 %v638
    %871 = vmatprep.subr.bf16.mxu0 %v633
    %872 = vmatpush1.bf16.msra.mxu0 %v632
    %873 = vmatprep.subr.bf16.mxu0 %v627
    %874 = vmatpush1.bf16.msra.mxu0 %v626
    %875 = vmatprep.subr.bf16.mxu0 %v717
    %876 = vmatpush2.bf16.msra.mxu0 %v716
    %877 = vmatprep.subr.bf16.mxu0 %v711
    %878 = vmatpush2.bf16.msra.mxu0 %v710
    %879 = vmatprep.subr.bf16.mxu0 %v705
    %880 = vmatpush2.bf16.msra.mxu0 %v704
    %881 = vmatprep.subr.bf16.mxu0 %v699
    %882 = vmatpush2.bf16.msra.mxu0 %v698
    %883 = vmatprep.subr.bf16.mxu0 %v693
    %884 = vmatpush2.bf16.msra.mxu0 %v692
    %885 = vmatprep.subr.bf16.mxu0 %v687
    %886 = vmatpush2.bf16.msra.mxu0 %v686
    %887 = vmatprep.subr.bf16.mxu0 %v681
    %888 = vmatpush2.bf16.msra.mxu0 %v680
    %889 = vmatprep.subr.bf16.mxu0 %v675
    %890 = vmatpush2.bf16.msra.mxu0 %v674
    %891 = vmatprep.mubr.bf16.mxu0 %v207
    %892 = vmatmul.mubr.bf16.gmra.mxu0 %v206
    %v893 = vpop.f32.mrf.mxu0
    %v894 = vadd.f32 %v317, %v893
    %v895 = vpop.f32.mrf.mxu0
    %v896 = vadd.f32 %v321, %v895
    %v897 = vpop.f32.mrf.mxu0
    %v898 = vadd.f32 %v317, %v897
    %v899 = vpop.f32.mrf.mxu0
    %v900 = vadd.f32 %v321, %v899
    %901 = vdwg.mxu0
    %902 = vmatprep.subr.bf16.mxu0 %v671
    %903 = vmatpush1.bf16.msra.mxu0 %v670
    %904 = vmatprep.subr.bf16.mxu0 %v665
    %905 = vmatpush1.bf16.msra.mxu0 %v664
    %906 = vmatprep.subr.bf16.mxu0 %v659
    %907 = vmatpush1.bf16.msra.mxu0 %v658
    %908 = vmatprep.subr.bf16.mxu0 %v653
    %909 = vmatpush1.bf16.msra.mxu0 %v652
    %910 = vmatprep.subr.bf16.mxu0 %v647
    %911 = vmatpush1.bf16.msra.mxu0 %v646
    %912 = vmatprep.subr.bf16.mxu0 %v641
    %913 = vmatpush1.bf16.msra.mxu0 %v640
    %914 = vmatprep.subr.bf16.mxu0 %v635
    %915 = vmatpush1.bf16.msra.mxu0 %v634
    %916 = vmatprep.subr.bf16.mxu0 %v629
    %917 = vmatpush1.bf16.msra.mxu0 %v628
    %918 = vmatprep.subr.bf16.mxu0 %v719
    %919 = vmatpush2.bf16.msra.mxu0 %v718
    %920 = vmatprep.subr.bf16.mxu0 %v713
    %921 = vmatpush2.bf16.msra.mxu0 %v712
    %922 = vmatprep.subr.bf16.mxu0 %v707
    %923 = vmatpush2.bf16.msra.mxu0 %v706
    %924 = vmatprep.subr.bf16.mxu0 %v701
    %925 = vmatpush2.bf16.msra.mxu0 %v700
    %926 = vmatprep.subr.bf16.mxu0 %v695
    %927 = vmatpush2.bf16.msra.mxu0 %v694
    %928 = vmatprep.subr.bf16.mxu0 %v689
    %929 = vmatpush2.bf16.msra.mxu0 %v688
    %930 = vmatprep.subr.bf16.mxu0 %v683
    %931 = vmatpush2.bf16.msra.mxu0 %v682
    %932 = vmatprep.subr.bf16.mxu0 %v677
    %933 = vmatpush2.bf16.msra.mxu0 %v676
    %934 = vmatprep.mubr.bf16.mxu0 %v207
    %935 = vmatmul.mubr.bf16.gmra.mxu0 %v206
    %v936 = vpop.f32.mrf.mxu0
    %v937 = vadd.f32 %v325, %v936
    %v938 = vpop.f32.mrf.mxu0
    %v939 = vadd.f32 %v329, %v938
    %v940 = vpop.f32.mrf.mxu0
    %v941 = vadd.f32 %v325, %v940
    %v942 = vpop.f32.mrf.mxu0
    %v943 = vadd.f32 %v329, %v942
    %944 = vdwg.mxu0
    %947 = vrot.lane.b32.xlu0 %v851, 64
    %v948 = vpop.permute.xlu0 %947
    %949 = vrot.lane.b32.xlu0 %v855, 64
    %v950 = vpop.permute.xlu0 %949
    %955 = vrot.lane.b32.xlu0 %v853, 64
    %v956 = vpop.permute.xlu0 %955
    %957 = vrot.lane.b32.xlu0 %v857, 64
    %v958 = vpop.permute.xlu0 %957
    %v961 = vcombine.low %v851, %v853
    %v962 = vcombine.high %v851, %v853
    %v964 = vunpack.c.l.s4 1983009808
    %v965 = vunpack.c.0.s8 %v964
    %v966 = vlaneseq
    %v967 = vshrl.u32 %v966, 7
    %v968 = vsub.s32 %v965, %v967
    %v969 = vrot.slane %v961, %v968
    %v971 = vunpack.c.l.s4 1983009808
    %v972 = vunpack.c.0.s8 %v971
    %v973 = vlaneseq
    %v974 = vshrl.u32 %v973, 7
    %v975 = vsub.s32 %v972, %v974
    %v976 = vrot.slane %v962, %v975
    %v977 = vcombine.low %v948, %v956
    %v978 = vcombine.high %v948, %v956
    %v980 = vunpack.c.l.s4 1983009808
    %v981 = vunpack.c.0.s8 %v980
    %v982 = vlaneseq
    %v983 = vshrl.u32 %v982, 7
    %v984 = vsub.s32 %v981, %v983
    %v985 = vrot.slane %v977, %v984
    %v987 = vunpack.c.l.s4 1983009808
    %v988 = vunpack.c.0.s8 %v987
    %v989 = vlaneseq
    %v990 = vshrl.u32 %v989, 7
    %v991 = vsub.s32 %v988, %v990
    %v992 = vrot.slane %v978, %v991
    %v993 = vcombine.low %v969, %v985
    %v994 = vcombine.high %v969, %v985
    %v996 = vunpack.c.l.s4 1934713408
    %v997 = vunpack.c.0.s8 %v996
    %v998 = vlaneseq
    %v999 = vshrl.u32 %v998, 7
    %v1000 = vsub.s32 %v997, %v999
    %v1001 = vrot.slane %v993, %v1000
    %v1003 = vunpack.c.l.s4 1934713408
    %v1004 = vunpack.c.0.s8 %v1003
    %v1005 = vlaneseq
    %v1006 = vshrl.u32 %v1005, 7
    %v1007 = vsub.s32 %v1004, %v1006
    %v1008 = vrot.slane %v994, %v1007
    %v1009 = vcombine.low %v976, %v992
    %v1010 = vcombine.high %v976, %v992
    %v1012 = vunpack.c.l.s4 1934713408
    %v1013 = vunpack.c.0.s8 %v1012
    %v1014 = vlaneseq
    %v1015 = vshrl.u32 %v1014, 7
    %v1016 = vsub.s32 %v1013, %v1015
    %v1017 = vrot.slane %v1009, %v1016
    %v1019 = vunpack.c.l.s4 1934713408
    %v1020 = vunpack.c.0.s8 %v1019
    %v1021 = vlaneseq
    %v1022 = vshrl.u32 %v1021, 7
    %v1023 = vsub.s32 %v1020, %v1022
    %v1024 = vrot.slane %v1010, %v1023
    %v1025 = vcombine.high %v1001, 0.0
    %v1026 = vcombine.high %v1008, 0.0
    %v1027 = vcombine.high %v1017, 0.0
    %v1028 = vcombine.high %v1024, 0.0
    %v1029 = vcombine.low %v855, %v857
    %v1030 = vcombine.high %v855, %v857
    %v1032 = vunpack.c.l.s4 1983009808
    %v1033 = vunpack.c.0.s8 %v1032
    %v1034 = vlaneseq
    %v1035 = vshrl.u32 %v1034, 7
    %v1036 = vsub.s32 %v1033, %v1035
    %v1037 = vrot.slane %v1029, %v1036
    %v1039 = vunpack.c.l.s4 1983009808
    %v1040 = vunpack.c.0.s8 %v1039
    %v1041 = vlaneseq
    %v1042 = vshrl.u32 %v1041, 7
    %v1043 = vsub.s32 %v1040, %v1042
    %v1044 = vrot.slane %v1030, %v1043
    %v1045 = vcombine.low %v950, %v958
    %v1046 = vcombine.high %v950, %v958
    %v1048 = vunpack.c.l.s4 1983009808
    %v1049 = vunpack.c.0.s8 %v1048
    %v1050 = vlaneseq
    %v1051 = vshrl.u32 %v1050, 7
    %v1052 = vsub.s32 %v1049, %v1051
    %v1053 = vrot.slane %v1045, %v1052
    %v1055 = vunpack.c.l.s4 1983009808
    %v1056 = vunpack.c.0.s8 %v1055
    %v1057 = vlaneseq
    %v1058 = vshrl.u32 %v1057, 7
    %v1059 = vsub.s32 %v1056, %v1058
    %v1060 = vrot.slane %v1046, %v1059
    %v1061 = vcombine.low %v1037, %v1053
    %v1062 = vcombine.high %v1037, %v1053
    %v1064 = vunpack.c.l.s4 1934713408
    %v1065 = vunpack.c.0.s8 %v1064
    %v1066 = vlaneseq
    %v1067 = vshrl.u32 %v1066, 7
    %v1068 = vsub.s32 %v1065, %v1067
    %v1069 = vrot.slane %v1061, %v1068
    %v1071 = vunpack.c.l.s4 1934713408
    %v1072 = vunpack.c.0.s8 %v1071
    %v1073 = vlaneseq
    %v1074 = vshrl.u32 %v1073, 7
    %v1075 = vsub.s32 %v1072, %v1074
    %v1076 = vrot.slane %v1062, %v1075
    %v1077 = vcombine.low %v1044, %v1060
    %v1078 = vcombine.high %v1044, %v1060
    %v1080 = vunpack.c.l.s4 1934713408
    %v1081 = vunpack.c.0.s8 %v1080
    %v1082 = vlaneseq
    %v1083 = vshrl.u32 %v1082, 7
    %v1084 = vsub.s32 %v1081, %v1083
    %v1085 = vrot.slane %v1077, %v1084
    %v1087 = vunpack.c.l.s4 1934713408
    %v1088 = vunpack.c.0.s8 %v1087
    %v1089 = vlaneseq
    %v1090 = vshrl.u32 %v1089, 7
    %v1091 = vsub.s32 %v1088, %v1090
    %v1092 = vrot.slane %v1078, %v1091
    %v1093 = vcombine.high %v1069, 0.0
    %v1094 = vcombine.high %v1076, 0.0
    %v1095 = vcombine.high %v1085, 0.0
    %v1096 = vcombine.high %v1092, 0.0
    %v1097 = vcombine.low %v1001, %v1008
    %v1099 = vunpack.c.l.s4 1983009808
    %v1100 = vunpack.c.0.s8 %v1099
    %v1101 = vlaneseq
    %v1102 = vshrl.u32 %v1101, 7
    %v1103 = vsub.s32 %v1100, %v1102
    %v1104 = vrot.slane %v1097, %v1103
    %v1105 = vcombine.low %v1025, %v1026
    %v1107 = vunpack.c.l.s4 1983009808
    %v1108 = vunpack.c.0.s8 %v1107
    %v1109 = vlaneseq
    %v1110 = vshrl.u32 %v1109, 7
    %v1111 = vsub.s32 %v1108, %v1110
    %v1112 = vrot.slane %v1105, %v1111
    %v1113 = vcombine.low %v1017, %v1024
    %v1115 = vunpack.c.l.s4 1983009808
    %v1116 = vunpack.c.0.s8 %v1115
    %v1117 = vlaneseq
    %v1118 = vshrl.u32 %v1117, 7
    %v1119 = vsub.s32 %v1116, %v1118
    %v1120 = vrot.slane %v1113, %v1119
    %v1121 = vcombine.low %v1027, %v1028
    %v1123 = vunpack.c.l.s4 1983009808
    %v1124 = vunpack.c.0.s8 %v1123
    %v1125 = vlaneseq
    %v1126 = vshrl.u32 %v1125, 7
    %v1127 = vsub.s32 %v1124, %v1126
    %v1128 = vrot.slane %v1121, %v1127
    %v1129 = vcombine.low %v1104, %v1112
    %v1130 = vcombine.high %v1104, %v1112
    %v1132 = vunpack.c.l.s4 1934713408
    %v1133 = vunpack.c.0.s8 %v1132
    %v1134 = vlaneseq
    %v1135 = vshrl.u32 %v1134, 7
    %v1136 = vsub.s32 %v1133, %v1135
    %v1137 = vrot.slane %v1129, %v1136
    %v1139 = vunpack.c.l.s4 1934713408
    %v1140 = vunpack.c.0.s8 %v1139
    %v1141 = vlaneseq
    %v1142 = vshrl.u32 %v1141, 7
    %v1143 = vsub.s32 %v1140, %v1142
    %v1144 = vrot.slane %v1130, %v1143
    %v1145 = vcombine.low %v1120, %v1128
    %v1146 = vcombine.high %v1120, %v1128
    %v1148 = vunpack.c.l.s4 1934713408
    %v1149 = vunpack.c.0.s8 %v1148
    %v1150 = vlaneseq
    %v1151 = vshrl.u32 %v1150, 7
    %v1152 = vsub.s32 %v1149, %v1151
    %v1153 = vrot.slane %v1145, %v1152
    %v1155 = vunpack.c.l.s4 1934713408
    %v1156 = vunpack.c.0.s8 %v1155
    %v1157 = vlaneseq
    %v1158 = vshrl.u32 %v1157, 7
    %v1159 = vsub.s32 %v1156, %v1158
    %v1160 = vrot.slane %v1146, %v1159
    %v1161 = vcombine.low %v1137, %v1153
    %v1162 = vcombine.high %v1137, %v1153
    %v1163 = vcombine.low %v1144, %v1160
    %v1164 = vcombine.high %v1144, %v1160
    %v1165 = vcombine.low %v1069, %v1076
    %v1167 = vunpack.c.l.s4 1983009808
    %v1168 = vunpack.c.0.s8 %v1167
    %v1169 = vlaneseq
    %v1170 = vshrl.u32 %v1169, 7
    %v1171 = vsub.s32 %v1168, %v1170
    %v1172 = vrot.slane %v1165, %v1171
    %v1173 = vcombine.low %v1093, %v1094
    %v1175 = vunpack.c.l.s4 1983009808
    %v1176 = vunpack.c.0.s8 %v1175
    %v1177 = vlaneseq
    %v1178 = vshrl.u32 %v1177, 7
    %v1179 = vsub.s32 %v1176, %v1178
    %v1180 = vrot.slane %v1173, %v1179
    %v1181 = vcombine.low %v1085, %v1092
    %v1183 = vunpack.c.l.s4 1983009808
    %v1184 = vunpack.c.0.s8 %v1183
    %v1185 = vlaneseq
    %v1186 = vshrl.u32 %v1185, 7
    %v1187 = vsub.s32 %v1184, %v1186
    %v1188 = vrot.slane %v1181, %v1187
    %v1189 = vcombine.low %v1095, %v1096
    %v1191 = vunpack.c.l.s4 1983009808
    %v1192 = vunpack.c.0.s8 %v1191
    %v1193 = vlaneseq
    %v1194 = vshrl.u32 %v1193, 7
    %v1195 = vsub.s32 %v1192, %v1194
    %v1196 = vrot.slane %v1189, %v1195
    %v1197 = vcombine.low %v1172, %v1180
    %v1198 = vcombine.high %v1172, %v1180
    %v1200 = vunpack.c.l.s4 1934713408
    %v1201 = vunpack.c.0.s8 %v1200
    %v1202 = vlaneseq
    %v1203 = vshrl.u32 %v1202, 7
    %v1204 = vsub.s32 %v1201, %v1203
    %v1205 = vrot.slane %v1197, %v1204
    %v1207 = vunpack.c.l.s4 1934713408
    %v1208 = vunpack.c.0.s8 %v1207
    %v1209 = vlaneseq
    %v1210 = vshrl.u32 %v1209, 7
    %v1211 = vsub.s32 %v1208, %v1210
    %v1212 = vrot.slane %v1198, %v1211
    %v1213 = vcombine.low %v1188, %v1196
    %v1214 = vcombine.high %v1188, %v1196
    %v1216 = vunpack.c.l.s4 1934713408
    %v1217 = vunpack.c.0.s8 %v1216
    %v1218 = vlaneseq
    %v1219 = vshrl.u32 %v1218, 7
    %v1220 = vsub.s32 %v1217, %v1219
    %v1221 = vrot.slane %v1213, %v1220
    %v1223 = vunpack.c.l.s4 1934713408
    %v1224 = vunpack.c.0.s8 %v1223
    %v1225 = vlaneseq
    %v1226 = vshrl.u32 %v1225, 7
    %v1227 = vsub.s32 %v1224, %v1226
    %v1228 = vrot.slane %v1214, %v1227
    %v1229 = vcombine.low %v1205, %v1221
    %v1230 = vcombine.high %v1205, %v1221
    %v1231 = vcombine.low %v1212, %v1228
    %v1232 = vcombine.high %v1212, %v1228
    %v1233 = vpack.c.bf16 %v1161, %v1161
    %v1234 = vpack.c.bf16 %v1162, %v1162
    %v1235 = vpack.c.bf16 %v1163, %v1163
    %v1236 = vpack.c.bf16 %v1164, %v1164
    %v1237 = vpack.c.bf16 %v1229, %v1229
    %v1238 = vpack.c.bf16 %v1230, %v1230
    %v1239 = vpack.c.bf16 %v1231, %v1231
    %v1240 = vpack.c.bf16 %v1232, %v1232
    %1243 = vrot.lane.b32.xlu0 %v894, 64
    %v1244 = vpop.permute.xlu0 %1243
    %1245 = vrot.lane.b32.xlu0 %v898, 64
    %v1246 = vpop.permute.xlu0 %1245
    %1251 = vrot.lane.b32.xlu0 %v896, 64
    %v1252 = vpop.permute.xlu0 %1251
    %1253 = vrot.lane.b32.xlu0 %v900, 64
    %v1254 = vpop.permute.xlu0 %1253
    %v1257 = vcombine.low %v894, %v896
    %v1258 = vcombine.high %v894, %v896
    %v1260 = vunpack.c.l.s4 1983009808
    %v1261 = vunpack.c.0.s8 %v1260
    %v1262 = vlaneseq
    %v1263 = vshrl.u32 %v1262, 7
    %v1264 = vsub.s32 %v1261, %v1263
    %v1265 = vrot.slane %v1257, %v1264
    %v1267 = vunpack.c.l.s4 1983009808
    %v1268 = vunpack.c.0.s8 %v1267
    %v1269 = vlaneseq
    %v1270 = vshrl.u32 %v1269, 7
    %v1271 = vsub.s32 %v1268, %v1270
    %v1272 = vrot.slane %v1258, %v1271
    %v1273 = vcombine.low %v1244, %v1252
    %v1274 = vcombine.high %v1244, %v1252
    %v1276 = vunpack.c.l.s4 1983009808
    %v1277 = vunpack.c.0.s8 %v1276
    %v1278 = vlaneseq
    %v1279 = vshrl.u32 %v1278, 7
    %v1280 = vsub.s32 %v1277, %v1279
    %v1281 = vrot.slane %v1273, %v1280
    %v1283 = vunpack.c.l.s4 1983009808
    %v1284 = vunpack.c.0.s8 %v1283
    %v1285 = vlaneseq
    %v1286 = vshrl.u32 %v1285, 7
    %v1287 = vsub.s32 %v1284, %v1286
    %v1288 = vrot.slane %v1274, %v1287
    %v1289 = vcombine.low %v1265, %v1281
    %v1290 = vcombine.high %v1265, %v1281
    %v1292 = vunpack.c.l.s4 1934713408
    %v1293 = vunpack.c.0.s8 %v1292
    %v1294 = vlaneseq
    %v1295 = vshrl.u32 %v1294, 7
    %v1296 = vsub.s32 %v1293, %v1295
    %v1297 = vrot.slane %v1289, %v1296
    %v1299 = vunpack.c.l.s4 1934713408
    %v1300 = vunpack.c.0.s8 %v1299
    %v1301 = vlaneseq
    %v1302 = vshrl.u32 %v1301, 7
    %v1303 = vsub.s32 %v1300, %v1302
    %v1304 = vrot.slane %v1290, %v1303
    %v1305 = vcombine.low %v1272, %v1288
    %v1306 = vcombine.high %v1272, %v1288
    %v1308 = vunpack.c.l.s4 1934713408
    %v1309 = vunpack.c.0.s8 %v1308
    %v1310 = vlaneseq
    %v1311 = vshrl.u32 %v1310, 7
    %v1312 = vsub.s32 %v1309, %v1311
    %v1313 = vrot.slane %v1305, %v1312
    %v1315 = vunpack.c.l.s4 1934713408
    %v1316 = vunpack.c.0.s8 %v1315
    %v1317 = vlaneseq
    %v1318 = vshrl.u32 %v1317, 7
    %v1319 = vsub.s32 %v1316, %v1318
    %v1320 = vrot.slane %v1306, %v1319
    %v1321 = vcombine.high %v1297, 0.0
    %v1322 = vcombine.high %v1304, 0.0
    %v1323 = vcombine.high %v1313, 0.0
    %v1324 = vcombine.high %v1320, 0.0
    %v1325 = vcombine.low %v898, %v900
    %v1326 = vcombine.high %v898, %v900
    %v1328 = vunpack.c.l.s4 1983009808
    %v1329 = vunpack.c.0.s8 %v1328
    %v1330 = vlaneseq
    %v1331 = vshrl.u32 %v1330, 7
    %v1332 = vsub.s32 %v1329, %v1331
    %v1333 = vrot.slane %v1325, %v1332
    %v1335 = vunpack.c.l.s4 1983009808
    %v1336 = vunpack.c.0.s8 %v1335
    %v1337 = vlaneseq
    %v1338 = vshrl.u32 %v1337, 7
    %v1339 = vsub.s32 %v1336, %v1338
    %v1340 = vrot.slane %v1326, %v1339
    %v1341 = vcombine.low %v1246, %v1254
    %v1342 = vcombine.high %v1246, %v1254
    %v1344 = vunpack.c.l.s4 1983009808
    %v1345 = vunpack.c.0.s8 %v1344
    %v1346 = vlaneseq
    %v1347 = vshrl.u32 %v1346, 7
    %v1348 = vsub.s32 %v1345, %v1347
    %v1349 = vrot.slane %v1341, %v1348
    %v1351 = vunpack.c.l.s4 1983009808
    %v1352 = vunpack.c.0.s8 %v1351
    %v1353 = vlaneseq
    %v1354 = vshrl.u32 %v1353, 7
    %v1355 = vsub.s32 %v1352, %v1354
    %v1356 = vrot.slane %v1342, %v1355
    %v1357 = vcombine.low %v1333, %v1349
    %v1358 = vcombine.high %v1333, %v1349
    %v1360 = vunpack.c.l.s4 1934713408
    %v1361 = vunpack.c.0.s8 %v1360
    %v1362 = vlaneseq
    %v1363 = vshrl.u32 %v1362, 7
    %v1364 = vsub.s32 %v1361, %v1363
    %v1365 = vrot.slane %v1357, %v1364
    %v1367 = vunpack.c.l.s4 1934713408
    %v1368 = vunpack.c.0.s8 %v1367
    %v1369 = vlaneseq
    %v1370 = vshrl.u32 %v1369, 7
    %v1371 = vsub.s32 %v1368, %v1370
    %v1372 = vrot.slane %v1358, %v1371
    %v1373 = vcombine.low %v1340, %v1356
    %v1374 = vcombine.high %v1340, %v1356
    %v1376 = vunpack.c.l.s4 1934713408
    %v1377 = vunpack.c.0.s8 %v1376
    %v1378 = vlaneseq
    %v1379 = vshrl.u32 %v1378, 7
    %v1380 = vsub.s32 %v1377, %v1379
    %v1381 = vrot.slane %v1373, %v1380
    %v1383 = vunpack.c.l.s4 1934713408
    %v1384 = vunpack.c.0.s8 %v1383
    %v1385 = vlaneseq
    %v1386 = vshrl.u32 %v1385, 7
    %v1387 = vsub.s32 %v1384, %v1386
    %v1388 = vrot.slane %v1374, %v1387
    %v1389 = vcombine.high %v1365, 0.0
    %v1390 = vcombine.high %v1372, 0.0
    %v1391 = vcombine.high %v1381, 0.0
    %v1392 = vcombine.high %v1388, 0.0
    %v1393 = vcombine.low %v1297, %v1304
    %v1395 = vunpack.c.l.s4 1983009808
    %v1396 = vunpack.c.0.s8 %v1395
    %v1397 = vlaneseq
    %v1398 = vshrl.u32 %v1397, 7
    %v1399 = vsub.s32 %v1396, %v1398
    %v1400 = vrot.slane %v1393, %v1399
    %v1401 = vcombine.low %v1321, %v1322
    %v1403 = vunpack.c.l.s4 1983009808
    %v1404 = vunpack.c.0.s8 %v1403
    %v1405 = vlaneseq
    %v1406 = vshrl.u32 %v1405, 7
    %v1407 = vsub.s32 %v1404, %v1406
    %v1408 = vrot.slane %v1401, %v1407
    %v1409 = vcombine.low %v1313, %v1320
    %v1411 = vunpack.c.l.s4 1983009808
    %v1412 = vunpack.c.0.s8 %v1411
    %v1413 = vlaneseq
    %v1414 = vshrl.u32 %v1413, 7
    %v1415 = vsub.s32 %v1412, %v1414
    %v1416 = vrot.slane %v1409, %v1415
    %v1417 = vcombine.low %v1323, %v1324
    %v1419 = vunpack.c.l.s4 1983009808
    %v1420 = vunpack.c.0.s8 %v1419
    %v1421 = vlaneseq
    %v1422 = vshrl.u32 %v1421, 7
    %v1423 = vsub.s32 %v1420, %v1422
    %v1424 = vrot.slane %v1417, %v1423
    %v1425 = vcombine.low %v1400, %v1408
    %v1426 = vcombine.high %v1400, %v1408
    %v1428 = vunpack.c.l.s4 1934713408
    %v1429 = vunpack.c.0.s8 %v1428
    %v1430 = vlaneseq
    %v1431 = vshrl.u32 %v1430, 7
    %v1432 = vsub.s32 %v1429, %v1431
    %v1433 = vrot.slane %v1425, %v1432
    %v1435 = vunpack.c.l.s4 1934713408
    %v1436 = vunpack.c.0.s8 %v1435
    %v1437 = vlaneseq
    %v1438 = vshrl.u32 %v1437, 7
    %v1439 = vsub.s32 %v1436, %v1438
    %v1440 = vrot.slane %v1426, %v1439
    %v1441 = vcombine.low %v1416, %v1424
    %v1442 = vcombine.high %v1416, %v1424
    %v1444 = vunpack.c.l.s4 1934713408
    %v1445 = vunpack.c.0.s8 %v1444
    %v1446 = vlaneseq
    %v1447 = vshrl.u32 %v1446, 7
    %v1448 = vsub.s32 %v1445, %v1447
    %v1449 = vrot.slane %v1441, %v1448
    %v1451 = vunpack.c.l.s4 1934713408
    %v1452 = vunpack.c.0.s8 %v1451
    %v1453 = vlaneseq
    %v1454 = vshrl.u32 %v1453, 7
    %v1455 = vsub.s32 %v1452, %v1454
    %v1456 = vrot.slane %v1442, %v1455
    %v1457 = vcombine.low %v1433, %v1449
    %v1458 = vcombine.high %v1433, %v1449
    %v1459 = vcombine.low %v1440, %v1456
    %v1460 = vcombine.high %v1440, %v1456
    %v1461 = vcombine.low %v1365, %v1372
    %v1463 = vunpack.c.l.s4 1983009808
    %v1464 = vunpack.c.0.s8 %v1463
    %v1465 = vlaneseq
    %v1466 = vshrl.u32 %v1465, 7
    %v1467 = vsub.s32 %v1464, %v1466
    %v1468 = vrot.slane %v1461, %v1467
    %v1469 = vcombine.low %v1389, %v1390
    %v1471 = vunpack.c.l.s4 1983009808
    %v1472 = vunpack.c.0.s8 %v1471
    %v1473 = vlaneseq
    %v1474 = vshrl.u32 %v1473, 7
    %v1475 = vsub.s32 %v1472, %v1474
    %v1476 = vrot.slane %v1469, %v1475
    %v1477 = vcombine.low %v1381, %v1388
    %v1479 = vunpack.c.l.s4 1983009808
    %v1480 = vunpack.c.0.s8 %v1479
    %v1481 = vlaneseq
    %v1482 = vshrl.u32 %v1481, 7
    %v1483 = vsub.s32 %v1480, %v1482
    %v1484 = vrot.slane %v1477, %v1483
    %v1485 = vcombine.low %v1391, %v1392
    %v1487 = vunpack.c.l.s4 1983009808
    %v1488 = vunpack.c.0.s8 %v1487
    %v1489 = vlaneseq
    %v1490 = vshrl.u32 %v1489, 7
    %v1491 = vsub.s32 %v1488, %v1490
    %v1492 = vrot.slane %v1485, %v1491
    %v1493 = vcombine.low %v1468, %v1476
    %v1494 = vcombine.high %v1468, %v1476
    %v1496 = vunpack.c.l.s4 1934713408
    %v1497 = vunpack.c.0.s8 %v1496
    %v1498 = vlaneseq
    %v1499 = vshrl.u32 %v1498, 7
    %v1500 = vsub.s32 %v1497, %v1499
    %v1501 = vrot.slane %v1493, %v1500
    %v1503 = vunpack.c.l.s4 1934713408
    %v1504 = vunpack.c.0.s8 %v1503
    %v1505 = vlaneseq
    %v1506 = vshrl.u32 %v1505, 7
    %v1507 = vsub.s32 %v1504, %v1506
    %v1508 = vrot.slane %v1494, %v1507
    %v1509 = vcombine.low %v1484, %v1492
    %v1510 = vcombine.high %v1484, %v1492
    %v1512 = vunpack.c.l.s4 1934713408
    %v1513 = vunpack.c.0.s8 %v1512
    %v1514 = vlaneseq
    %v1515 = vshrl.u32 %v1514, 7
    %v1516 = vsub.s32 %v1513, %v1515
    %v1517 = vrot.slane %v1509, %v1516
    %v1519 = vunpack.c.l.s4 1934713408
    %v1520 = vunpack.c.0.s8 %v1519
    %v1521 = vlaneseq
    %v1522 = vshrl.u32 %v1521, 7
    %v1523 = vsub.s32 %v1520, %v1522
    %v1524 = vrot.slane %v1510, %v1523
    %v1525 = vcombine.low %v1501, %v1517
    %v1526 = vcombine.high %v1501, %v1517
    %v1527 = vcombine.low %v1508, %v1524
    %v1528 = vcombine.high %v1508, %v1524
    %v1529 = vpack.c.bf16 %v1457, %v1457
    %v1530 = vpack.c.bf16 %v1458, %v1458
    %v1531 = vpack.c.bf16 %v1459, %v1459
    %v1532 = vpack.c.bf16 %v1460, %v1460
    %v1533 = vpack.c.bf16 %v1525, %v1525
    %v1534 = vpack.c.bf16 %v1526, %v1526
    %v1535 = vpack.c.bf16 %v1527, %v1527
    %v1536 = vpack.c.bf16 %v1528, %v1528
    %1539 = vrot.lane.b32.xlu0 %v937, 64
    %v1540 = vpop.permute.xlu0 %1539
    %1541 = vrot.lane.b32.xlu0 %v941, 64
    %v1542 = vpop.permute.xlu0 %1541
    %1547 = vrot.lane.b32.xlu0 %v939, 64
    %v1548 = vpop.permute.xlu0 %1547
    %1549 = vrot.lane.b32.xlu0 %v943, 64
    %v1550 = vpop.permute.xlu0 %1549
    %v1553 = vcombine.low %v937, %v939
    %v1554 = vcombine.high %v937, %v939
    %v1556 = vunpack.c.l.s4 1983009808
    %v1557 = vunpack.c.0.s8 %v1556
    %v1558 = vlaneseq
    %v1559 = vshrl.u32 %v1558, 7
    %v1560 = vsub.s32 %v1557, %v1559
    %v1561 = vrot.slane %v1553, %v1560
    %v1563 = vunpack.c.l.s4 1983009808
    %v1564 = vunpack.c.0.s8 %v1563
    %v1565 = vlaneseq
    %v1566 = vshrl.u32 %v1565, 7
    %v1567 = vsub.s32 %v1564, %v1566
    %v1568 = vrot.slane %v1554, %v1567
    %v1569 = vcombine.low %v1540, %v1548
    %v1570 = vcombine.high %v1540, %v1548
    %v1572 = vunpack.c.l.s4 1983009808
    %v1573 = vunpack.c.0.s8 %v1572
    %v1574 = vlaneseq
    %v1575 = vshrl.u32 %v1574, 7
    %v1576 = vsub.s32 %v1573, %v1575
    %v1577 = vrot.slane %v1569, %v1576
    %v1579 = vunpack.c.l.s4 1983009808
    %v1580 = vunpack.c.0.s8 %v1579
    %v1581 = vlaneseq
    %v1582 = vshrl.u32 %v1581, 7
    %v1583 = vsub.s32 %v1580, %v1582
    %v1584 = vrot.slane %v1570, %v1583
    %v1585 = vcombine.low %v1561, %v1577
    %v1586 = vcombine.high %v1561, %v1577
    %v1588 = vunpack.c.l.s4 1934713408
    %v1589 = vunpack.c.0.s8 %v1588
    %v1590 = vlaneseq
    %v1591 = vshrl.u32 %v1590, 7
    %v1592 = vsub.s32 %v1589, %v1591
    %v1593 = vrot.slane %v1585, %v1592
    %v1595 = vunpack.c.l.s4 1934713408
    %v1596 = vunpack.c.0.s8 %v1595
    %v1597 = vlaneseq
    %v1598 = vshrl.u32 %v1597, 7
    %v1599 = vsub.s32 %v1596, %v1598
    %v1600 = vrot.slane %v1586, %v1599
    %v1601 = vcombine.low %v1568, %v1584
    %v1602 = vcombine.high %v1568, %v1584
    %v1604 = vunpack.c.l.s4 1934713408
    %v1605 = vunpack.c.0.s8 %v1604
    %v1606 = vlaneseq
    %v1607 = vshrl.u32 %v1606, 7
    %v1608 = vsub.s32 %v1605, %v1607
    %v1609 = vrot.slane %v1601, %v1608
    %v1611 = vunpack.c.l.s4 1934713408
    %v1612 = vunpack.c.0.s8 %v1611
    %v1613 = vlaneseq
    %v1614 = vshrl.u32 %v1613, 7
    %v1615 = vsub.s32 %v1612, %v1614
    %v1616 = vrot.slane %v1602, %v1615
    %v1617 = vcombine.high %v1593, 0.0
    %v1618 = vcombine.high %v1600, 0.0
    %v1619 = vcombine.high %v1609, 0.0
    %v1620 = vcombine.high %v1616, 0.0
    %v1621 = vcombine.low %v941, %v943
    %v1622 = vcombine.high %v941, %v943
    %v1624 = vunpack.c.l.s4 1983009808
    %v1625 = vunpack.c.0.s8 %v1624
    %v1626 = vlaneseq
    %v1627 = vshrl.u32 %v1626, 7
    %v1628 = vsub.s32 %v1625, %v1627
    %v1629 = vrot.slane %v1621, %v1628
    %v1631 = vunpack.c.l.s4 1983009808
    %v1632 = vunpack.c.0.s8 %v1631
    %v1633 = vlaneseq
    %v1634 = vshrl.u32 %v1633, 7
    %v1635 = vsub.s32 %v1632, %v1634
    %v1636 = vrot.slane %v1622, %v1635
    %v1637 = vcombine.low %v1542, %v1550
    %v1638 = vcombine.high %v1542, %v1550
    %v1640 = vunpack.c.l.s4 1983009808
    %v1641 = vunpack.c.0.s8 %v1640
    %v1642 = vlaneseq
    %v1643 = vshrl.u32 %v1642, 7
    %v1644 = vsub.s32 %v1641, %v1643
    %v1645 = vrot.slane %v1637, %v1644
    %v1647 = vunpack.c.l.s4 1983009808
    %v1648 = vunpack.c.0.s8 %v1647
    %v1649 = vlaneseq
    %v1650 = vshrl.u32 %v1649, 7
    %v1651 = vsub.s32 %v1648, %v1650
    %v1652 = vrot.slane %v1638, %v1651
    %v1653 = vcombine.low %v1629, %v1645
    %v1654 = vcombine.high %v1629, %v1645
    %v1656 = vunpack.c.l.s4 1934713408
    %v1657 = vunpack.c.0.s8 %v1656
    %v1658 = vlaneseq
    %v1659 = vshrl.u32 %v1658, 7
    %v1660 = vsub.s32 %v1657, %v1659
    %v1661 = vrot.slane %v1653, %v1660
    %v1663 = vunpack.c.l.s4 1934713408
    %v1664 = vunpack.c.0.s8 %v1663
    %v1665 = vlaneseq
    %v1666 = vshrl.u32 %v1665, 7
    %v1667 = vsub.s32 %v1664, %v1666
    %v1668 = vrot.slane %v1654, %v1667
    %v1669 = vcombine.low %v1636, %v1652
    %v1670 = vcombine.high %v1636, %v1652
    %v1672 = vunpack.c.l.s4 1934713408
    %v1673 = vunpack.c.0.s8 %v1672
    %v1674 = vlaneseq
    %v1675 = vshrl.u32 %v1674, 7
    %v1676 = vsub.s32 %v1673, %v1675
    %v1677 = vrot.slane %v1669, %v1676
    %v1679 = vunpack.c.l.s4 1934713408
    %v1680 = vunpack.c.0.s8 %v1679
    %v1681 = vlaneseq
    %v1682 = vshrl.u32 %v1681, 7
    %v1683 = vsub.s32 %v1680, %v1682
    %v1684 = vrot.slane %v1670, %v1683
    %v1685 = vcombine.high %v1661, 0.0
    %v1686 = vcombine.high %v1668, 0.0
    %v1687 = vcombine.high %v1677, 0.0
    %v1688 = vcombine.high %v1684, 0.0
    %v1689 = vcombine.low %v1593, %v1600
    %v1691 = vunpack.c.l.s4 1983009808
    %v1692 = vunpack.c.0.s8 %v1691
    %v1693 = vlaneseq
    %v1694 = vshrl.u32 %v1693, 7
    %v1695 = vsub.s32 %v1692, %v1694
    %v1696 = vrot.slane %v1689, %v1695
    %v1697 = vcombine.low %v1617, %v1618
    %v1699 = vunpack.c.l.s4 1983009808
    %v1700 = vunpack.c.0.s8 %v1699
    %v1701 = vlaneseq
    %v1702 = vshrl.u32 %v1701, 7
    %v1703 = vsub.s32 %v1700, %v1702
    %v1704 = vrot.slane %v1697, %v1703
    %v1705 = vcombine.low %v1609, %v1616
    %v1707 = vunpack.c.l.s4 1983009808
    %v1708 = vunpack.c.0.s8 %v1707
    %v1709 = vlaneseq
    %v1710 = vshrl.u32 %v1709, 7
    %v1711 = vsub.s32 %v1708, %v1710
    %v1712 = vrot.slane %v1705, %v1711
    %v1713 = vcombine.low %v1619, %v1620
    %v1715 = vunpack.c.l.s4 1983009808
    %v1716 = vunpack.c.0.s8 %v1715
    %v1717 = vlaneseq
    %v1718 = vshrl.u32 %v1717, 7
    %v1719 = vsub.s32 %v1716, %v1718
    %v1720 = vrot.slane %v1713, %v1719
    %v1721 = vcombine.low %v1696, %v1704
    %v1722 = vcombine.high %v1696, %v1704
    %v1724 = vunpack.c.l.s4 1934713408
    %v1725 = vunpack.c.0.s8 %v1724
    %v1726 = vlaneseq
    %v1727 = vshrl.u32 %v1726, 7
    %v1728 = vsub.s32 %v1725, %v1727
    %v1729 = vrot.slane %v1721, %v1728
    %v1731 = vunpack.c.l.s4 1934713408
    %v1732 = vunpack.c.0.s8 %v1731
    %v1733 = vlaneseq
    %v1734 = vshrl.u32 %v1733, 7
    %v1735 = vsub.s32 %v1732, %v1734
    %v1736 = vrot.slane %v1722, %v1735
    %v1737 = vcombine.low %v1712, %v1720
    %v1738 = vcombine.high %v1712, %v1720
    %v1740 = vunpack.c.l.s4 1934713408
    %v1741 = vunpack.c.0.s8 %v1740
    %v1742 = vlaneseq
    %v1743 = vshrl.u32 %v1742, 7
    %v1744 = vsub.s32 %v1741, %v1743
    %v1745 = vrot.slane %v1737, %v1744
    %v1747 = vunpack.c.l.s4 1934713408
    %v1748 = vunpack.c.0.s8 %v1747
    %v1749 = vlaneseq
    %v1750 = vshrl.u32 %v1749, 7
    %v1751 = vsub.s32 %v1748, %v1750
    %v1752 = vrot.slane %v1738, %v1751
    %v1753 = vcombine.low %v1729, %v1745
    %v1754 = vcombine.high %v1729, %v1745
    %v1755 = vcombine.low %v1736, %v1752
    %v1756 = vcombine.high %v1736, %v1752
    %v1757 = vcombine.low %v1661, %v1668
    %v1759 = vunpack.c.l.s4 1983009808
    %v1760 = vunpack.c.0.s8 %v1759
    %v1761 = vlaneseq
    %v1762 = vshrl.u32 %v1761, 7
    %v1763 = vsub.s32 %v1760, %v1762
    %v1764 = vrot.slane %v1757, %v1763
    %v1765 = vcombine.low %v1685, %v1686
    %v1767 = vunpack.c.l.s4 1983009808
    %v1768 = vunpack.c.0.s8 %v1767
    %v1769 = vlaneseq
    %v1770 = vshrl.u32 %v1769, 7
    %v1771 = vsub.s32 %v1768, %v1770
    %v1772 = vrot.slane %v1765, %v1771
    %v1773 = vcombine.low %v1677, %v1684
    %v1775 = vunpack.c.l.s4 1983009808
    %v1776 = vunpack.c.0.s8 %v1775
    %v1777 = vlaneseq
    %v1778 = vshrl.u32 %v1777, 7
    %v1779 = vsub.s32 %v1776, %v1778
    %v1780 = vrot.slane %v1773, %v1779
    %v1781 = vcombine.low %v1687, %v1688
    %v1783 = vunpack.c.l.s4 1983009808
    %v1784 = vunpack.c.0.s8 %v1783
    %v1785 = vlaneseq
    %v1786 = vshrl.u32 %v1785, 7
    %v1787 = vsub.s32 %v1784, %v1786
    %v1788 = vrot.slane %v1781, %v1787
    %v1789 = vcombine.low %v1764, %v1772
    %v1790 = vcombine.high %v1764, %v1772
    %v1792 = vunpack.c.l.s4 1934713408
    %v1793 = vunpack.c.0.s8 %v1792
    %v1794 = vlaneseq
    %v1795 = vshrl.u32 %v1794, 7
    %v1796 = vsub.s32 %v1793, %v1795
    %v1797 = vrot.slane %v1789, %v1796
    %v1799 = vunpack.c.l.s4 1934713408
    %v1800 = vunpack.c.0.s8 %v1799
    %v1801 = vlaneseq
    %v1802 = vshrl.u32 %v1801, 7
    %v1803 = vsub.s32 %v1800, %v1802
    %v1804 = vrot.slane %v1790, %v1803
    %v1805 = vcombine.low %v1780, %v1788
    %v1806 = vcombine.high %v1780, %v1788
    %v1808 = vunpack.c.l.s4 1934713408
    %v1809 = vunpack.c.0.s8 %v1808
    %v1810 = vlaneseq
    %v1811 = vshrl.u32 %v1810, 7
    %v1812 = vsub.s32 %v1809, %v1811
    %v1813 = vrot.slane %v1805, %v1812
    %v1815 = vunpack.c.l.s4 1934713408
    %v1816 = vunpack.c.0.s8 %v1815
    %v1817 = vlaneseq
    %v1818 = vshrl.u32 %v1817, 7
    %v1819 = vsub.s32 %v1816, %v1818
    %v1820 = vrot.slane %v1806, %v1819
    %v1821 = vcombine.low %v1797, %v1813
    %v1822 = vcombine.high %v1797, %v1813
    %v1823 = vcombine.low %v1804, %v1820
    %v1824 = vcombine.high %v1804, %v1820
    %v1825 = vpack.c.bf16 %v1753, %v1753
    %v1826 = vpack.c.bf16 %v1754, %v1754
    %v1827 = vpack.c.bf16 %v1755, %v1755
    %v1828 = vpack.c.bf16 %v1756, %v1756
    %v1829 = vpack.c.bf16 %v1821, %v1821
    %v1830 = vpack.c.bf16 %v1822, %v1822
    %v1831 = vpack.c.bf16 %v1823, %v1823
    %v1832 = vpack.c.bf16 %v1824, %v1824
    %vm1833 = vcmask 523264
    %v1835 = vsel %vm1833, %v1233, 0
    %v1838 = vsel %vm1833, %v1529, 0
    %1840 = vmatprep.subr.bf16.mxu0 0
    %1841 = vmatpush1.bf16.xpose.msra.mxu0 0
    %1842 = vmatprep.subr.bf16.mxu0 0
    %1843 = vmatpush1.bf16.xpose.msra.mxu0 0
    %1844 = vmatprep.subr.bf16.mxu0 0
    %1845 = vmatpush1.bf16.xpose.msra.mxu0 0
    %1846 = vmatprep.subr.bf16.mxu0 0
    %1847 = vmatpush1.bf16.xpose.msra.mxu0 0
    %1848 = vmatprep.subr.bf16.mxu0 0
    %1849 = vmatpush1.bf16.xpose.msra.mxu0 0
    %1850 = vmatprep.subr.bf16.mxu0 0
    %1851 = vmatpush1.bf16.xpose.msra.mxu0 0
    %1852 = vmatprep.subr.bf16.mxu0 0
    %1853 = vmatpush1.bf16.xpose.msra.mxu0 0
    %1854 = vmatprep.subr.bf16.mxu0 0
    %1855 = vmatpush1.bf16.xpose.msra.mxu0 %v1838
    %1856 = vmatprep.subr.bf16.mxu0 0
    %1857 = vmatpush2.bf16.xpose.msra.mxu0 0
    %1858 = vmatprep.subr.bf16.mxu0 0
    %1859 = vmatpush2.bf16.xpose.msra.mxu0 0
    %1860 = vmatprep.subr.bf16.mxu0 0
    %1861 = vmatpush2.bf16.xpose.msra.mxu0 0
    %1862 = vmatprep.subr.bf16.mxu0 0
    %1863 = vmatpush2.bf16.xpose.msra.mxu0 0
    %1864 = vmatprep.subr.bf16.mxu0 0
    %1865 = vmatpush2.bf16.xpose.msra.mxu0 0
    %1866 = vmatprep.subr.bf16.mxu0 0
    %1867 = vmatpush2.bf16.xpose.msra.mxu0 0
    %1868 = vmatprep.subr.bf16.mxu0 0
    %1869 = vmatpush2.bf16.xpose.msra.mxu0 0
    %1870 = vmatprep.subr.bf16.mxu0 0
    %1871 = vmatpush2.bf16.xpose.msra.mxu0 0
    %1872 = vmatprep.mubr.bf16.mxu0 0
    %1873 = vmatmul.mubr.bf16.gmra.mxu0 %v1835
    %v1874 = vpop.f32.mrf.mxu0
    %v1875 = vadd.f32 0.0, %v1874
    %v1876 = vpop.f32.mrf.mxu0
    %v1877 = vpop.f32.mrf.mxu0
    %v1878 = vpop.f32.mrf.mxu0
    %1879 = vdwg.mxu0
    %v1881 = vsel %vm1833, %v1234, 0
    %v1884 = vsel %vm1833, %v1530, 0
    %1886 = vmatprep.subr.bf16.mxu0 0
    %1887 = vmatpush1.bf16.xpose.msra.mxu0 0
    %1888 = vmatprep.subr.bf16.mxu0 0
    %1889 = vmatpush1.bf16.xpose.msra.mxu0 0
    %1890 = vmatprep.subr.bf16.mxu0 0
    %1891 = vmatpush1.bf16.xpose.msra.mxu0 0
    %1892 = vmatprep.subr.bf16.mxu0 0
    %1893 = vmatpush1.bf16.xpose.msra.mxu0 0
    %1894 = vmatprep.subr.bf16.mxu0 0
    %1895 = vmatpush1.bf16.xpose.msra.mxu0 0
    %1896 = vmatprep.subr.bf16.mxu0 0
    %1897 = vmatpush1.bf16.xpose.msra.mxu0 0
    %1898 = vmatprep.subr.bf16.mxu0 0
    %1899 = vmatpush1.bf16.xpose.msra.mxu0 0
    %1900 = vmatprep.subr.bf16.mxu0 0
    %1901 = vmatpush1.bf16.xpose.msra.mxu0 %v1884
    %1902 = vmatprep.subr.bf16.mxu0 0
    %1903 = vmatpush2.bf16.xpose.msra.mxu0 0
    %1904 = vmatprep.subr.bf16.mxu0 0
    %1905 = vmatpush2.bf16.xpose.msra.mxu0 0
    %1906 = vmatprep.subr.bf16.mxu0 0
    %1907 = vmatpush2.bf16.xpose.msra.mxu0 0
    %1908 = vmatprep.subr.bf16.mxu0 0
    %1909 = vmatpush2.bf16.xpose.msra.mxu0 0
    %1910 = vmatprep.subr.bf16.mxu0 0
    %1911 = vmatpush2.bf16.xpose.msra.mxu0 0
    %1912 = vmatprep.subr.bf16.mxu0 0
    %1913 = vmatpush2.bf16.xpose.msra.mxu0 0
    %1914 = vmatprep.subr.bf16.mxu0 0
    %1915 = vmatpush2.bf16.xpose.msra.mxu0 0
    %1916 = vmatprep.subr.bf16.mxu0 0
    %1917 = vmatpush2.bf16.xpose.msra.mxu0 0
    %1918 = vmatprep.mubr.bf16.mxu0 0
    %1919 = vmatmul.mubr.bf16.gmra.mxu0 %v1881
    %v1920 = vpop.f32.mrf.mxu0
    %v1921 = vadd.f32 0.0, %v1920
    %v1922 = vpop.f32.mrf.mxu0
    %v1923 = vpop.f32.mrf.mxu0
    %v1924 = vpop.f32.mrf.mxu0
    %1925 = vdwg.mxu0
    %v1927 = vsel %vm1833, %v1235, 0
    %v1930 = vsel %vm1833, %v1531, 0
    %1932 = vmatprep.subr.bf16.mxu0 0
    %1933 = vmatpush1.bf16.xpose.msra.mxu0 0
    %1934 = vmatprep.subr.bf16.mxu0 0
    %1935 = vmatpush1.bf16.xpose.msra.mxu0 0
    %1936 = vmatprep.subr.bf16.mxu0 0
    %1937 = vmatpush1.bf16.xpose.msra.mxu0 0
    %1938 = vmatprep.subr.bf16.mxu0 0
    %1939 = vmatpush1.bf16.xpose.msra.mxu0 0
    %1940 = vmatprep.subr.bf16.mxu0 0
    %1941 = vmatpush1.bf16.xpose.msra.mxu0 0
    %1942 = vmatprep.subr.bf16.mxu0 0
    %1943 = vmatpush1.bf16.xpose.msra.mxu0 0
    %1944 = vmatprep.subr.bf16.mxu0 0
    %1945 = vmatpush1.bf16.xpose.msra.mxu0 0
    %1946 = vmatprep.subr.bf16.mxu0 0
    %1947 = vmatpush1.bf16.xpose.msra.mxu0 %v1930
    %1948 = vmatprep.subr.bf16.mxu0 0
    %1949 = vmatpush2.bf16.xpose.msra.mxu0 0
    %1950 = vmatprep.subr.bf16.mxu0 0
    %1951 = vmatpush2.bf16.xpose.msra.mxu0 0
    %1952 = vmatprep.subr.bf16.mxu0 0
    %1953 = vmatpush2.bf16.xpose.msra.mxu0 0
    %1954 = vmatprep.subr.bf16.mxu0 0
    %1955 = vmatpush2.bf16.xpose.msra.mxu0 0
    %1956 = vmatprep.subr.bf16.mxu0 0
    %1957 = vmatpush2.bf16.xpose.msra.mxu0 0
    %1958 = vmatprep.subr.bf16.mxu0 0
    %1959 = vmatpush2.bf16.xpose.msra.mxu0 0
    %1960 = vmatprep.subr.bf16.mxu0 0
    %1961 = vmatpush2.bf16.xpose.msra.mxu0 0
    %1962 = vmatprep.subr.bf16.mxu0 0
    %1963 = vmatpush2.bf16.xpose.msra.mxu0 0
    %1964 = vmatprep.mubr.bf16.mxu0 0
    %1965 = vmatmul.mubr.bf16.gmra.mxu0 %v1927
    %v1966 = vpop.f32.mrf.mxu0
    %v1967 = vadd.f32 0.0, %v1966
    %v1968 = vpop.f32.mrf.mxu0
    %v1969 = vpop.f32.mrf.mxu0
    %v1970 = vpop.f32.mrf.mxu0
    %1971 = vdwg.mxu0
    %v1973 = vsel %vm1833, %v1236, 0
    %v1976 = vsel %vm1833, %v1532, 0
    %1978 = vmatprep.subr.bf16.mxu0 0
    %1979 = vmatpush1.bf16.xpose.msra.mxu0 0
    %1980 = vmatprep.subr.bf16.mxu0 0
    %1981 = vmatpush1.bf16.xpose.msra.mxu0 0
    %1982 = vmatprep.subr.bf16.mxu0 0
    %1983 = vmatpush1.bf16.xpose.msra.mxu0 0
    %1984 = vmatprep.subr.bf16.mxu0 0
    %1985 = vmatpush1.bf16.xpose.msra.mxu0 0
    %1986 = vmatprep.subr.bf16.mxu0 0
    %1987 = vmatpush1.bf16.xpose.msra.mxu0 0
    %1988 = vmatprep.subr.bf16.mxu0 0
    %1989 = vmatpush1.bf16.xpose.msra.mxu0 0
    %1990 = vmatprep.subr.bf16.mxu0 0
    %1991 = vmatpush1.bf16.xpose.msra.mxu0 0
    %1992 = vmatprep.subr.bf16.mxu0 0
    %1993 = vmatpush1.bf16.xpose.msra.mxu0 %v1976
    %1994 = vmatprep.subr.bf16.mxu0 0
    %1995 = vmatpush2.bf16.xpose.msra.mxu0 0
    %1996 = vmatprep.subr.bf16.mxu0 0
    %1997 = vmatpush2.bf16.xpose.msra.mxu0 0
    %1998 = vmatprep.subr.bf16.mxu0 0
    %1999 = vmatpush2.bf16.xpose.msra.mxu0 0
    %2000 = vmatprep.subr.bf16.mxu0 0
    %2001 = vmatpush2.bf16.xpose.msra.mxu0 0
    %2002 = vmatprep.subr.bf16.mxu0 0
    %2003 = vmatpush2.bf16.xpose.msra.mxu0 0
    %2004 = vmatprep.subr.bf16.mxu0 0
    %2005 = vmatpush2.bf16.xpose.msra.mxu0 0
    %2006 = vmatprep.subr.bf16.mxu0 0
    %2007 = vmatpush2.bf16.xpose.msra.mxu0 0
    %2008 = vmatprep.subr.bf16.mxu0 0
    %2009 = vmatpush2.bf16.xpose.msra.mxu0 0
    %2010 = vmatprep.mubr.bf16.mxu0 0
    %2011 = vmatmul.mubr.bf16.gmra.mxu0 %v1973
    %v2012 = vpop.f32.mrf.mxu0
    %v2013 = vadd.f32 0.0, %v2012
    %v2014 = vpop.f32.mrf.mxu0
    %v2015 = vpop.f32.mrf.mxu0
    %v2016 = vpop.f32.mrf.mxu0
    %2017 = vdwg.mxu0
    %v2019 = vsel %vm1833, %v1237, 0
    %v2022 = vsel %vm1833, %v1533, 0
    %2024 = vmatprep.subr.bf16.mxu0 0
    %2025 = vmatpush1.bf16.xpose.msra.mxu0 0
    %2026 = vmatprep.subr.bf16.mxu0 0
    %2027 = vmatpush1.bf16.xpose.msra.mxu0 0
    %2028 = vmatprep.subr.bf16.mxu0 0
    %2029 = vmatpush1.bf16.xpose.msra.mxu0 0
    %2030 = vmatprep.subr.bf16.mxu0 0
    %2031 = vmatpush1.bf16.xpose.msra.mxu0 0
    %2032 = vmatprep.subr.bf16.mxu0 0
    %2033 = vmatpush1.bf16.xpose.msra.mxu0 0
    %2034 = vmatprep.subr.bf16.mxu0 0
    %2035 = vmatpush1.bf16.xpose.msra.mxu0 0
    %2036 = vmatprep.subr.bf16.mxu0 0
    %2037 = vmatpush1.bf16.xpose.msra.mxu0 0
    %2038 = vmatprep.subr.bf16.mxu0 0
    %2039 = vmatpush1.bf16.xpose.msra.mxu0 %v2022
    %2040 = vmatprep.subr.bf16.mxu0 0
    %2041 = vmatpush2.bf16.xpose.msra.mxu0 0
    %2042 = vmatprep.subr.bf16.mxu0 0
    %2043 = vmatpush2.bf16.xpose.msra.mxu0 0
    %2044 = vmatprep.subr.bf16.mxu0 0
    %2045 = vmatpush2.bf16.xpose.msra.mxu0 0
    %2046 = vmatprep.subr.bf16.mxu0 0
    %2047 = vmatpush2.bf16.xpose.msra.mxu0 0
    %2048 = vmatprep.subr.bf16.mxu0 0
    %2049 = vmatpush2.bf16.xpose.msra.mxu0 0
    %2050 = vmatprep.subr.bf16.mxu0 0
    %2051 = vmatpush2.bf16.xpose.msra.mxu0 0
    %2052 = vmatprep.subr.bf16.mxu0 0
    %2053 = vmatpush2.bf16.xpose.msra.mxu0 0
    %2054 = vmatprep.subr.bf16.mxu0 0
    %2055 = vmatpush2.bf16.xpose.msra.mxu0 0
    %2056 = vmatprep.mubr.bf16.mxu0 0
    %2057 = vmatmul.mubr.bf16.gmra.mxu0 %v2019
    %v2058 = vpop.f32.mrf.mxu0
    %v2059 = vadd.f32 0.0, %v2058
    %v2060 = vpop.f32.mrf.mxu0
    %v2061 = vpop.f32.mrf.mxu0
    %v2062 = vpop.f32.mrf.mxu0
    %2063 = vdwg.mxu0
    %v2065 = vsel %vm1833, %v1238, 0
    %v2068 = vsel %vm1833, %v1534, 0
    %2070 = vmatprep.subr.bf16.mxu0 0
    %2071 = vmatpush1.bf16.xpose.msra.mxu0 0
    %2072 = vmatprep.subr.bf16.mxu0 0
    %2073 = vmatpush1.bf16.xpose.msra.mxu0 0
    %2074 = vmatprep.subr.bf16.mxu0 0
    %2075 = vmatpush1.bf16.xpose.msra.mxu0 0
    %2076 = vmatprep.subr.bf16.mxu0 0
    %2077 = vmatpush1.bf16.xpose.msra.mxu0 0
    %2078 = vmatprep.subr.bf16.mxu0 0
    %2079 = vmatpush1.bf16.xpose.msra.mxu0 0
    %2080 = vmatprep.subr.bf16.mxu0 0
    %2081 = vmatpush1.bf16.xpose.msra.mxu0 0
    %2082 = vmatprep.subr.bf16.mxu0 0
    %2083 = vmatpush1.bf16.xpose.msra.mxu0 0
    %2084 = vmatprep.subr.bf16.mxu0 0
    %2085 = vmatpush1.bf16.xpose.msra.mxu0 %v2068
    %2086 = vmatprep.subr.bf16.mxu0 0
    %2087 = vmatpush2.bf16.xpose.msra.mxu0 0
    %2088 = vmatprep.subr.bf16.mxu0 0
    %2089 = vmatpush2.bf16.xpose.msra.mxu0 0
    %2090 = vmatprep.subr.bf16.mxu0 0
    %2091 = vmatpush2.bf16.xpose.msra.mxu0 0
    %2092 = vmatprep.subr.bf16.mxu0 0
    %2093 = vmatpush2.bf16.xpose.msra.mxu0 0
    %2094 = vmatprep.subr.bf16.mxu0 0
    %2095 = vmatpush2.bf16.xpose.msra.mxu0 0
    %2096 = vmatprep.subr.bf16.mxu0 0
    %2097 = vmatpush2.bf16.xpose.msra.mxu0 0
    %2098 = vmatprep.subr.bf16.mxu0 0
    %2099 = vmatpush2.bf16.xpose.msra.mxu0 0
    %2100 = vmatprep.subr.bf16.mxu0 0
    %2101 = vmatpush2.bf16.xpose.msra.mxu0 0
    %2102 = vmatprep.mubr.bf16.mxu0 0
    %2103 = vmatmul.mubr.bf16.gmra.mxu0 %v2065
    %v2104 = vpop.f32.mrf.mxu0
    %v2105 = vadd.f32 0.0, %v2104
    %v2106 = vpop.f32.mrf.mxu0
    %v2107 = vpop.f32.mrf.mxu0
    %v2108 = vpop.f32.mrf.mxu0
    %2109 = vdwg.mxu0
    %v2111 = vsel %vm1833, %v1239, 0
    %v2114 = vsel %vm1833, %v1535, 0
    %2116 = vmatprep.subr.bf16.mxu0 0
    %2117 = vmatpush1.bf16.xpose.msra.mxu0 0
    %2118 = vmatprep.subr.bf16.mxu0 0
    %2119 = vmatpush1.bf16.xpose.msra.mxu0 0
    %2120 = vmatprep.subr.bf16.mxu0 0
    %2121 = vmatpush1.bf16.xpose.msra.mxu0 0
    %2122 = vmatprep.subr.bf16.mxu0 0
    %2123 = vmatpush1.bf16.xpose.msra.mxu0 0
    %2124 = vmatprep.subr.bf16.mxu0 0
    %2125 = vmatpush1.bf16.xpose.msra.mxu0 0
    %2126 = vmatprep.subr.bf16.mxu0 0
    %2127 = vmatpush1.bf16.xpose.msra.mxu0 0
    %2128 = vmatprep.subr.bf16.mxu0 0
    %2129 = vmatpush1.bf16.xpose.msra.mxu0 0
    %2130 = vmatprep.subr.bf16.mxu0 0
    %2131 = vmatpush1.bf16.xpose.msra.mxu0 %v2114
    %2132 = vmatprep.subr.bf16.mxu0 0
    %2133 = vmatpush2.bf16.xpose.msra.mxu0 0
    %2134 = vmatprep.subr.bf16.mxu0 0
    %2135 = vmatpush2.bf16.xpose.msra.mxu0 0
    %2136 = vmatprep.subr.bf16.mxu0 0
    %2137 = vmatpush2.bf16.xpose.msra.mxu0 0
    %2138 = vmatprep.subr.bf16.mxu0 0
    %2139 = vmatpush2.bf16.xpose.msra.mxu0 0
    %2140 = vmatprep.subr.bf16.mxu0 0
    %2141 = vmatpush2.bf16.xpose.msra.mxu0 0
    %2142 = vmatprep.subr.bf16.mxu0 0
    %2143 = vmatpush2.bf16.xpose.msra.mxu0 0
    %2144 = vmatprep.subr.bf16.mxu0 0
    %2145 = vmatpush2.bf16.xpose.msra.mxu0 0
    %2146 = vmatprep.subr.bf16.mxu0 0
    %2147 = vmatpush2.bf16.xpose.msra.mxu0 0
    %2148 = vmatprep.mubr.bf16.mxu0 0
    %2149 = vmatmul.mubr.bf16.gmra.mxu0 %v2111
    %v2150 = vpop.f32.mrf.mxu0
    %v2151 = vadd.f32 0.0, %v2150
    %v2152 = vpop.f32.mrf.mxu0
    %v2153 = vpop.f32.mrf.mxu0
    %v2154 = vpop.f32.mrf.mxu0
    %2155 = vdwg.mxu0
    %v2157 = vsel %vm1833, %v1240, 0
    %v2160 = vsel %vm1833, %v1536, 0
    %2162 = vmatprep.subr.bf16.mxu0 0
    %2163 = vmatpush1.bf16.xpose.msra.mxu0 0
    %2164 = vmatprep.subr.bf16.mxu0 0
    %2165 = vmatpush1.bf16.xpose.msra.mxu0 0
    %2166 = vmatprep.subr.bf16.mxu0 0
    %2167 = vmatpush1.bf16.xpose.msra.mxu0 0
    %2168 = vmatprep.subr.bf16.mxu0 0
    %2169 = vmatpush1.bf16.xpose.msra.mxu0 0
    %2170 = vmatprep.subr.bf16.mxu0 0
    %2171 = vmatpush1.bf16.xpose.msra.mxu0 0
    %2172 = vmatprep.subr.bf16.mxu0 0
    %2173 = vmatpush1.bf16.xpose.msra.mxu0 0
    %2174 = vmatprep.subr.bf16.mxu0 0
    %2175 = vmatpush1.bf16.xpose.msra.mxu0 0
    %2176 = vmatprep.subr.bf16.mxu0 0
    %2177 = vmatpush1.bf16.xpose.msra.mxu0 %v2160
    %2178 = vmatprep.subr.bf16.mxu0 0
    %2179 = vmatpush2.bf16.xpose.msra.mxu0 0
    %2180 = vmatprep.subr.bf16.mxu0 0
    %2181 = vmatpush2.bf16.xpose.msra.mxu0 0
    %2182 = vmatprep.subr.bf16.mxu0 0
    %2183 = vmatpush2.bf16.xpose.msra.mxu0 0
    %2184 = vmatprep.subr.bf16.mxu0 0
    %2185 = vmatpush2.bf16.xpose.msra.mxu0 0
    %2186 = vmatprep.subr.bf16.mxu0 0
    %2187 = vmatpush2.bf16.xpose.msra.mxu0 0
    %2188 = vmatprep.subr.bf16.mxu0 0
    %2189 = vmatpush2.bf16.xpose.msra.mxu0 0
    %2190 = vmatprep.subr.bf16.mxu0 0
    %2191 = vmatpush2.bf16.xpose.msra.mxu0 0
    %2192 = vmatprep.subr.bf16.mxu0 0
    %2193 = vmatpush2.bf16.xpose.msra.mxu0 0
    %2194 = vmatprep.mubr.bf16.mxu0 0
    %2195 = vmatmul.mubr.bf16.gmra.mxu0 %v2157
    %v2196 = vpop.f32.mrf.mxu0
    %v2197 = vadd.f32 0.0, %v2196
    %v2198 = vpop.f32.mrf.mxu0
    %v2199 = vpop.f32.mrf.mxu0
    %v2200 = vpop.f32.mrf.mxu0
    %2201 = vdwg.mxu0
    %vm2202 = vcmask 64512
    %v2203 = vsel %vm2202, %v1875, -inf
    %2204 = vmax.xlane.f32.xlu0 %v2203
    %v2205 = vpop.xlane.xlu0 %2204
    %v2206 = vsel %vm2202, %v1921, -inf
    %2207 = vmax.xlane.f32.xlu0 %v2206
    %v2208 = vpop.xlane.xlu0 %2207
    %v2209 = vsel %vm2202, %v1967, -inf
    %2210 = vmax.xlane.f32.xlu0 %v2209
    %v2211 = vpop.xlane.xlu0 %2210
    %v2212 = vsel %vm2202, %v2013, -inf
    %2213 = vmax.xlane.f32.xlu0 %v2212
    %v2214 = vpop.xlane.xlu0 %2213
    %v2215 = vsel %vm2202, %v2059, -inf
    %2216 = vmax.xlane.f32.xlu0 %v2215
    %v2217 = vpop.xlane.xlu0 %2216
    %v2218 = vsel %vm2202, %v2105, -inf
    %2219 = vmax.xlane.f32.xlu0 %v2218
    %v2220 = vpop.xlane.xlu0 %2219
    %v2221 = vsel %vm2202, %v2151, -inf
    %2222 = vmax.xlane.f32.xlu0 %v2221
    %v2223 = vpop.xlane.xlu0 %2222
    %v2224 = vsel %vm2202, %v2197, -inf
    %2225 = vmax.xlane.f32.xlu0 %v2224
    %v2226 = vpop.xlane.xlu0 %2225
    %v2227 = vsub.f32 %v1875, %v2205
    %v2228 = vsub.f32 %v1921, %v2208
    %v2229 = vsub.f32 %v1967, %v2211
    %v2230 = vsub.f32 %v2013, %v2214
    %v2231 = vsub.f32 %v2059, %v2217
    %v2232 = vsub.f32 %v2105, %v2220
    %v2233 = vsub.f32 %v2151, %v2223
    %v2234 = vsub.f32 %v2197, %v2226
    %v2235 = vmul.f32 %v2227, 1.442695
    %v2236 = vpow.pop %v2235
    %v2237 = vmul.f32 %v2228, 1.442695
    %v2238 = vpow.pop %v2237
    %v2239 = vmul.f32 %v2229, 1.442695
    %v2240 = vpow.pop %v2239
    %v2241 = vmul.f32 %v2230, 1.442695
    %v2242 = vpow.pop %v2241
    %v2243 = vmul.f32 %v2231, 1.442695
    %v2244 = vpow.pop %v2243
    %v2245 = vmul.f32 %v2232, 1.442695
    %v2246 = vpow.pop %v2245
    %v2247 = vmul.f32 %v2233, 1.442695
    %v2248 = vpow.pop %v2247
    %v2249 = vmul.f32 %v2234, 1.442695
    %v2250 = vpow.pop %v2249
    %v2251 = vsel %vm2202, %v2236, 0.0
    %2252 = vadd.xlane.f32.xlu0 %v2251
    %v2253 = vpop.xlane.xlu0 %2252
    %v2254 = vsel %vm2202, %v2238, 0.0
    %2255 = vadd.xlane.f32.xlu0 %v2254
    %v2256 = vpop.xlane.xlu0 %2255
    %v2257 = vsel %vm2202, %v2240, 0.0
    %2258 = vadd.xlane.f32.xlu0 %v2257
    %v2259 = vpop.xlane.xlu0 %2258
    %v2260 = vsel %vm2202, %v2242, 0.0
    %2261 = vadd.xlane.f32.xlu0 %v2260
    %v2262 = vpop.xlane.xlu0 %2261
    %v2263 = vsel %vm2202, %v2244, 0.0
    %2264 = vadd.xlane.f32.xlu0 %v2263
    %v2265 = vpop.xlane.xlu0 %2264
    %v2266 = vsel %vm2202, %v2246, 0.0
    %2267 = vadd.xlane.f32.xlu0 %v2266
    %v2268 = vpop.xlane.xlu0 %2267
    %v2269 = vsel %vm2202, %v2248, 0.0
    %2270 = vadd.xlane.f32.xlu0 %v2269
    %v2271 = vpop.xlane.xlu0 %2270
    %v2272 = vsel %vm2202, %v2250, 0.0
    %2273 = vadd.xlane.f32.xlu0 %v2272
    %v2274 = vpop.xlane.xlu0 %2273
    %v2275 = vrcp.pop %v2253
    %v2276 = vmul.f32 %v2236, %v2275
    %v2277 = vrcp.pop %v2256
    %v2278 = vmul.f32 %v2238, %v2277
    %v2279 = vrcp.pop %v2259
    %v2280 = vmul.f32 %v2240, %v2279
    %v2281 = vrcp.pop %v2262
    %v2282 = vmul.f32 %v2242, %v2281
    %v2283 = vrcp.pop %v2265
    %v2284 = vmul.f32 %v2244, %v2283
    %v2285 = vrcp.pop %v2268
    %v2286 = vmul.f32 %v2246, %v2285
    %v2287 = vrcp.pop %v2271
    %v2288 = vmul.f32 %v2248, %v2287
    %v2289 = vrcp.pop %v2274
    %v2290 = vmul.f32 %v2250, %v2289
    %v2291 = vpack.c.bf16 %v2276, %v2276
    %v2292 = vpack.c.bf16 %v2278, %v2278
    %v2293 = vpack.c.bf16 %v2280, %v2280
    %v2294 = vpack.c.bf16 %v2282, %v2282
    %v2295 = vpack.c.bf16 %v2284, %v2284
    %v2296 = vpack.c.bf16 %v2286, %v2286
    %v2297 = vpack.c.bf16 %v2288, %v2288
    %v2298 = vpack.c.bf16 %v2290, %v2290
    %v2300 = vsel %vm2202, %v2291, 0
    %vm2302 = vcmask 1043456
    %v2304 = vsel %vm2302, %v1825, 0
    %2306 = vmatprep.subr.bf16.mxu0 0
    %2307 = vmatpush1.bf16.msra.mxu0 0
    %2308 = vmatprep.subr.bf16.mxu0 0
    %2309 = vmatpush1.bf16.msra.mxu0 0
    %2310 = vmatprep.subr.bf16.mxu0 0
    %2311 = vmatpush1.bf16.msra.mxu0 0
    %2312 = vmatprep.subr.bf16.mxu0 0
    %2313 = vmatpush1.bf16.msra.mxu0 0
    %2314 = vmatprep.subr.bf16.mxu0 0
    %2315 = vmatpush1.bf16.msra.mxu0 0
    %2316 = vmatprep.subr.bf16.mxu0 0
    %2317 = vmatpush1.bf16.msra.mxu0 0
    %2318 = vmatprep.subr.bf16.mxu0 0
    %2319 = vmatpush1.bf16.msra.mxu0 0
    %2320 = vmatprep.subr.bf16.mxu0 0
    %2321 = vmatpush1.bf16.msra.mxu0 %v2304
    %2322 = vmatprep.subr.bf16.mxu0 0
    %2323 = vmatpush2.bf16.msra.mxu0 0
    %2324 = vmatprep.subr.bf16.mxu0 0
    %2325 = vmatpush2.bf16.msra.mxu0 0
    %2326 = vmatprep.subr.bf16.mxu0 0
    %2327 = vmatpush2.bf16.msra.mxu0 0
    %2328 = vmatprep.subr.bf16.mxu0 0
    %2329 = vmatpush2.bf16.msra.mxu0 0
    %2330 = vmatprep.subr.bf16.mxu0 0
    %2331 = vmatpush2.bf16.msra.mxu0 0
    %2332 = vmatprep.subr.bf16.mxu0 0
    %2333 = vmatpush2.bf16.msra.mxu0 0
    %2334 = vmatprep.subr.bf16.mxu0 0
    %2335 = vmatpush2.bf16.msra.mxu0 0
    %2336 = vmatprep.subr.bf16.mxu0 0
    %2337 = vmatpush2.bf16.msra.mxu0 0
    %2338 = vmatprep.mubr.bf16.mxu0 0
    %2339 = vmatmul.mubr.bf16.gmra.mxu0 %v2300
    %v2340 = vpop.f32.mrf.mxu0
    %v2341 = vadd.f32 0.0, %v2340
    %v2342 = vpop.f32.mrf.mxu0
    %v2343 = vpop.f32.mrf.mxu0
    %v2344 = vpop.f32.mrf.mxu0
    %2345 = vdwg.mxu0
    %v2347 = vsel %vm2202, %v2292, 0
    %v2350 = vsel %vm2302, %v1826, 0
    %2352 = vmatprep.subr.bf16.mxu0 0
    %2353 = vmatpush1.bf16.msra.mxu0 0
    %2354 = vmatprep.subr.bf16.mxu0 0
    %2355 = vmatpush1.bf16.msra.mxu0 0
    %2356 = vmatprep.subr.bf16.mxu0 0
    %2357 = vmatpush1.bf16.msra.mxu0 0
    %2358 = vmatprep.subr.bf16.mxu0 0
    %2359 = vmatpush1.bf16.msra.mxu0 0
    %2360 = vmatprep.subr.bf16.mxu0 0
    %2361 = vmatpush1.bf16.msra.mxu0 0
    %2362 = vmatprep.subr.bf16.mxu0 0
    %2363 = vmatpush1.bf16.msra.mxu0 0
    %2364 = vmatprep.subr.bf16.mxu0 0
    %2365 = vmatpush1.bf16.msra.mxu0 0
    %2366 = vmatprep.subr.bf16.mxu0 0
    %2367 = vmatpush1.bf16.msra.mxu0 %v2350
    %2368 = vmatprep.subr.bf16.mxu0 0
    %2369 = vmatpush2.bf16.msra.mxu0 0
    %2370 = vmatprep.subr.bf16.mxu0 0
    %2371 = vmatpush2.bf16.msra.mxu0 0
    %2372 = vmatprep.subr.bf16.mxu0 0
    %2373 = vmatpush2.bf16.msra.mxu0 0
    %2374 = vmatprep.subr.bf16.mxu0 0
    %2375 = vmatpush2.bf16.msra.mxu0 0
    %2376 = vmatprep.subr.bf16.mxu0 0
    %2377 = vmatpush2.bf16.msra.mxu0 0
    %2378 = vmatprep.subr.bf16.mxu0 0
    %2379 = vmatpush2.bf16.msra.mxu0 0
    %2380 = vmatprep.subr.bf16.mxu0 0
    %2381 = vmatpush2.bf16.msra.mxu0 0
    %2382 = vmatprep.subr.bf16.mxu0 0
    %2383 = vmatpush2.bf16.msra.mxu0 0
    %2384 = vmatprep.mubr.bf16.mxu0 0
    %2385 = vmatmul.mubr.bf16.gmra.mxu0 %v2347
    %v2386 = vpop.f32.mrf.mxu0
    %v2387 = vadd.f32 0.0, %v2386
    %v2388 = vpop.f32.mrf.mxu0
    %v2389 = vpop.f32.mrf.mxu0
    %v2390 = vpop.f32.mrf.mxu0
    %2391 = vdwg.mxu0
    %v2393 = vsel %vm2202, %v2293, 0
    %v2396 = vsel %vm2302, %v1827, 0
    %2398 = vmatprep.subr.bf16.mxu0 0
    %2399 = vmatpush1.bf16.msra.mxu0 0
    %2400 = vmatprep.subr.bf16.mxu0 0
    %2401 = vmatpush1.bf16.msra.mxu0 0
    %2402 = vmatprep.subr.bf16.mxu0 0
    %2403 = vmatpush1.bf16.msra.mxu0 0
    %2404 = vmatprep.subr.bf16.mxu0 0
    %2405 = vmatpush1.bf16.msra.mxu0 0
    %2406 = vmatprep.subr.bf16.mxu0 0
    %2407 = vmatpush1.bf16.msra.mxu0 0
    %2408 = vmatprep.subr.bf16.mxu0 0
    %2409 = vmatpush1.bf16.msra.mxu0 0
    %2410 = vmatprep.subr.bf16.mxu0 0
    %2411 = vmatpush1.bf16.msra.mxu0 0
    %2412 = vmatprep.subr.bf16.mxu0 0
    %2413 = vmatpush1.bf16.msra.mxu0 %v2396
    %2414 = vmatprep.subr.bf16.mxu0 0
    %2415 = vmatpush2.bf16.msra.mxu0 0
    %2416 = vmatprep.subr.bf16.mxu0 0
    %2417 = vmatpush2.bf16.msra.mxu0 0
    %2418 = vmatprep.subr.bf16.mxu0 0
    %2419 = vmatpush2.bf16.msra.mxu0 0
    %2420 = vmatprep.subr.bf16.mxu0 0
    %2421 = vmatpush2.bf16.msra.mxu0 0
    %2422 = vmatprep.subr.bf16.mxu0 0
    %2423 = vmatpush2.bf16.msra.mxu0 0
    %2424 = vmatprep.subr.bf16.mxu0 0
    %2425 = vmatpush2.bf16.msra.mxu0 0
    %2426 = vmatprep.subr.bf16.mxu0 0
    %2427 = vmatpush2.bf16.msra.mxu0 0
    %2428 = vmatprep.subr.bf16.mxu0 0
    %2429 = vmatpush2.bf16.msra.mxu0 0
    %2430 = vmatprep.mubr.bf16.mxu0 0
    %2431 = vmatmul.mubr.bf16.gmra.mxu0 %v2393
    %v2432 = vpop.f32.mrf.mxu0
    %v2433 = vadd.f32 0.0, %v2432
    %v2434 = vpop.f32.mrf.mxu0
    %v2435 = vpop.f32.mrf.mxu0
    %v2436 = vpop.f32.mrf.mxu0
    %2437 = vdwg.mxu0
    %v2439 = vsel %vm2202, %v2294, 0
    %v2442 = vsel %vm2302, %v1828, 0
    %2444 = vmatprep.subr.bf16.mxu0 0
    %2445 = vmatpush1.bf16.msra.mxu0 0
    %2446 = vmatprep.subr.bf16.mxu0 0
    %2447 = vmatpush1.bf16.msra.mxu0 0
    %2448 = vmatprep.subr.bf16.mxu0 0
    %2449 = vmatpush1.bf16.msra.mxu0 0
    %2450 = vmatprep.subr.bf16.mxu0 0
    %2451 = vmatpush1.bf16.msra.mxu0 0
    %2452 = vmatprep.subr.bf16.mxu0 0
    %2453 = vmatpush1.bf16.msra.mxu0 0
    %2454 = vmatprep.subr.bf16.mxu0 0
    %2455 = vmatpush1.bf16.msra.mxu0 0
    %2456 = vmatprep.subr.bf16.mxu0 0
    %2457 = vmatpush1.bf16.msra.mxu0 0
    %2458 = vmatprep.subr.bf16.mxu0 0
    %2459 = vmatpush1.bf16.msra.mxu0 %v2442
    %2460 = vmatprep.subr.bf16.mxu0 0
    %2461 = vmatpush2.bf16.msra.mxu0 0
    %2462 = vmatprep.subr.bf16.mxu0 0
    %2463 = vmatpush2.bf16.msra.mxu0 0
    %2464 = vmatprep.subr.bf16.mxu0 0
    %2465 = vmatpush2.bf16.msra.mxu0 0
    %2466 = vmatprep.subr.bf16.mxu0 0
    %2467 = vmatpush2.bf16.msra.mxu0 0
    %2468 = vmatprep.subr.bf16.mxu0 0
    %2469 = vmatpush2.bf16.msra.mxu0 0
    %2470 = vmatprep.subr.bf16.mxu0 0
    %2471 = vmatpush2.bf16.msra.mxu0 0
    %2472 = vmatprep.subr.bf16.mxu0 0
    %2473 = vmatpush2.bf16.msra.mxu0 0
    %2474 = vmatprep.subr.bf16.mxu0 0
    %2475 = vmatpush2.bf16.msra.mxu0 0
    %2476 = vmatprep.mubr.bf16.mxu0 0
    %2477 = vmatmul.mubr.bf16.gmra.mxu0 %v2439
    %v2478 = vpop.f32.mrf.mxu0
    %v2479 = vadd.f32 0.0, %v2478
    %v2480 = vpop.f32.mrf.mxu0
    %v2481 = vpop.f32.mrf.mxu0
    %v2482 = vpop.f32.mrf.mxu0
    %2483 = vdwg.mxu0
    %v2485 = vsel %vm2202, %v2295, 0
    %v2488 = vsel %vm2302, %v1829, 0
    %2490 = vmatprep.subr.bf16.mxu0 0
    %2491 = vmatpush1.bf16.msra.mxu0 0
    %2492 = vmatprep.subr.bf16.mxu0 0
    %2493 = vmatpush1.bf16.msra.mxu0 0
    %2494 = vmatprep.subr.bf16.mxu0 0
    %2495 = vmatpush1.bf16.msra.mxu0 0
    %2496 = vmatprep.subr.bf16.mxu0 0
    %2497 = vmatpush1.bf16.msra.mxu0 0
    %2498 = vmatprep.subr.bf16.mxu0 0
    %2499 = vmatpush1.bf16.msra.mxu0 0
    %2500 = vmatprep.subr.bf16.mxu0 0
    %2501 = vmatpush1.bf16.msra.mxu0 0
    %2502 = vmatprep.subr.bf16.mxu0 0
    %2503 = vmatpush1.bf16.msra.mxu0 0
    %2504 = vmatprep.subr.bf16.mxu0 0
    %2505 = vmatpush1.bf16.msra.mxu0 %v2488
    %2506 = vmatprep.subr.bf16.mxu0 0
    %2507 = vmatpush2.bf16.msra.mxu0 0
    %2508 = vmatprep.subr.bf16.mxu0 0
    %2509 = vmatpush2.bf16.msra.mxu0 0
    %2510 = vmatprep.subr.bf16.mxu0 0
    %2511 = vmatpush2.bf16.msra.mxu0 0
    %2512 = vmatprep.subr.bf16.mxu0 0
    %2513 = vmatpush2.bf16.msra.mxu0 0
    %2514 = vmatprep.subr.bf16.mxu0 0
    %2515 = vmatpush2.bf16.msra.mxu0 0
    %2516 = vmatprep.subr.bf16.mxu0 0
    %2517 = vmatpush2.bf16.msra.mxu0 0
    %2518 = vmatprep.subr.bf16.mxu0 0
    %2519 = vmatpush2.bf16.msra.mxu0 0
    %2520 = vmatprep.subr.bf16.mxu0 0
    %2521 = vmatpush2.bf16.msra.mxu0 0
    %2522 = vmatprep.mubr.bf16.mxu0 0
    %2523 = vmatmul.mubr.bf16.gmra.mxu0 %v2485
    %v2524 = vpop.f32.mrf.mxu0
    %v2525 = vadd.f32 0.0, %v2524
    %v2526 = vpop.f32.mrf.mxu0
    %v2527 = vpop.f32.mrf.mxu0
    %v2528 = vpop.f32.mrf.mxu0
    %2529 = vdwg.mxu0
    %v2531 = vsel %vm2202, %v2296, 0
    %v2534 = vsel %vm2302, %v1830, 0
    %2536 = vmatprep.subr.bf16.mxu0 0
    %2537 = vmatpush1.bf16.msra.mxu0 0
    %2538 = vmatprep.subr.bf16.mxu0 0
    %2539 = vmatpush1.bf16.msra.mxu0 0
    %2540 = vmatprep.subr.bf16.mxu0 0
    %2541 = vmatpush1.bf16.msra.mxu0 0
    %2542 = vmatprep.subr.bf16.mxu0 0
    %2543 = vmatpush1.bf16.msra.mxu0 0
    %2544 = vmatprep.subr.bf16.mxu0 0
    %2545 = vmatpush1.bf16.msra.mxu0 0
    %2546 = vmatprep.subr.bf16.mxu0 0
    %2547 = vmatpush1.bf16.msra.mxu0 0
    %2548 = vmatprep.subr.bf16.mxu0 0
    %2549 = vmatpush1.bf16.msra.mxu0 0
    %2550 = vmatprep.subr.bf16.mxu0 0
    %2551 = vmatpush1.bf16.msra.mxu0 %v2534
    %2552 = vmatprep.subr.bf16.mxu0 0
    %2553 = vmatpush2.bf16.msra.mxu0 0
    %2554 = vmatprep.subr.bf16.mxu0 0
    %2555 = vmatpush2.bf16.msra.mxu0 0
    %2556 = vmatprep.subr.bf16.mxu0 0
    %2557 = vmatpush2.bf16.msra.mxu0 0
    %2558 = vmatprep.subr.bf16.mxu0 0
    %2559 = vmatpush2.bf16.msra.mxu0 0
    %2560 = vmatprep.subr.bf16.mxu0 0
    %2561 = vmatpush2.bf16.msra.mxu0 0
    %2562 = vmatprep.subr.bf16.mxu0 0
    %2563 = vmatpush2.bf16.msra.mxu0 0
    %2564 = vmatprep.subr.bf16.mxu0 0
    %2565 = vmatpush2.bf16.msra.mxu0 0
    %2566 = vmatprep.subr.bf16.mxu0 0
    %2567 = vmatpush2.bf16.msra.mxu0 0
    %2568 = vmatprep.mubr.bf16.mxu0 0
    %2569 = vmatmul.mubr.bf16.gmra.mxu0 %v2531
    %v2570 = vpop.f32.mrf.mxu0
    %v2571 = vadd.f32 0.0, %v2570
    %v2572 = vpop.f32.mrf.mxu0
    %v2573 = vpop.f32.mrf.mxu0
    %v2574 = vpop.f32.mrf.mxu0
    %2575 = vdwg.mxu0
    %v2577 = vsel %vm2202, %v2297, 0
    %v2580 = vsel %vm2302, %v1831, 0
    %2582 = vmatprep.subr.bf16.mxu0 0
    %2583 = vmatpush1.bf16.msra.mxu0 0
    %2584 = vmatprep.subr.bf16.mxu0 0
    %2585 = vmatpush1.bf16.msra.mxu0 0
    %2586 = vmatprep.subr.bf16.mxu0 0
    %2587 = vmatpush1.bf16.msra.mxu0 0
    %2588 = vmatprep.subr.bf16.mxu0 0
    %2589 = vmatpush1.bf16.msra.mxu0 0
    %2590 = vmatprep.subr.bf16.mxu0 0
    %2591 = vmatpush1.bf16.msra.mxu0 0
    %2592 = vmatprep.subr.bf16.mxu0 0
    %2593 = vmatpush1.bf16.msra.mxu0 0
    %2594 = vmatprep.subr.bf16.mxu0 0
    %2595 = vmatpush1.bf16.msra.mxu0 0
    %2596 = vmatprep.subr.bf16.mxu0 0
    %2597 = vmatpush1.bf16.msra.mxu0 %v2580
    %2598 = vmatprep.subr.bf16.mxu0 0
    %2599 = vmatpush2.bf16.msra.mxu0 0
    %2600 = vmatprep.subr.bf16.mxu0 0
    %2601 = vmatpush2.bf16.msra.mxu0 0
    %2602 = vmatprep.subr.bf16.mxu0 0
    %2603 = vmatpush2.bf16.msra.mxu0 0
    %2604 = vmatprep.subr.bf16.mxu0 0
    %2605 = vmatpush2.bf16.msra.mxu0 0
    %2606 = vmatprep.subr.bf16.mxu0 0
    %2607 = vmatpush2.bf16.msra.mxu0 0
    %2608 = vmatprep.subr.bf16.mxu0 0
    %2609 = vmatpush2.bf16.msra.mxu0 0
    %2610 = vmatprep.subr.bf16.mxu0 0
    %2611 = vmatpush2.bf16.msra.mxu0 0
    %2612 = vmatprep.subr.bf16.mxu0 0
    %2613 = vmatpush2.bf16.msra.mxu0 0
    %2614 = vmatprep.mubr.bf16.mxu0 0
    %2615 = vmatmul.mubr.bf16.gmra.mxu0 %v2577
    %v2616 = vpop.f32.mrf.mxu0
    %v2617 = vadd.f32 0.0, %v2616
    %v2618 = vpop.f32.mrf.mxu0
    %v2619 = vpop.f32.mrf.mxu0
    %v2620 = vpop.f32.mrf.mxu0
    %2621 = vdwg.mxu0
    %v2623 = vsel %vm2202, %v2298, 0
    %v2626 = vsel %vm2302, %v1832, 0
    %2628 = vmatprep.subr.bf16.mxu0 0
    %2629 = vmatpush1.bf16.msra.mxu0 0
    %2630 = vmatprep.subr.bf16.mxu0 0
    %2631 = vmatpush1.bf16.msra.mxu0 0
    %2632 = vmatprep.subr.bf16.mxu0 0
    %2633 = vmatpush1.bf16.msra.mxu0 0
    %2634 = vmatprep.subr.bf16.mxu0 0
    %2635 = vmatpush1.bf16.msra.mxu0 0
    %2636 = vmatprep.subr.bf16.mxu0 0
    %2637 = vmatpush1.bf16.msra.mxu0 0
    %2638 = vmatprep.subr.bf16.mxu0 0
    %2639 = vmatpush1.bf16.msra.mxu0 0
    %2640 = vmatprep.subr.bf16.mxu0 0
    %2641 = vmatpush1.bf16.msra.mxu0 0
    %2642 = vmatprep.subr.bf16.mxu0 0
    %2643 = vmatpush1.bf16.msra.mxu0 %v2626
    %2644 = vmatprep.subr.bf16.mxu0 0
    %2645 = vmatpush2.bf16.msra.mxu0 0
    %2646 = vmatprep.subr.bf16.mxu0 0
    %2647 = vmatpush2.bf16.msra.mxu0 0
    %2648 = vmatprep.subr.bf16.mxu0 0
    %2649 = vmatpush2.bf16.msra.mxu0 0
    %2650 = vmatprep.subr.bf16.mxu0 0
    %2651 = vmatpush2.bf16.msra.mxu0 0
    %2652 = vmatprep.subr.bf16.mxu0 0
    %2653 = vmatpush2.bf16.msra.mxu0 0
    %2654 = vmatprep.subr.bf16.mxu0 0
    %2655 = vmatpush2.bf16.msra.mxu0 0
    %2656 = vmatprep.subr.bf16.mxu0 0
    %2657 = vmatpush2.bf16.msra.mxu0 0
    %2658 = vmatprep.subr.bf16.mxu0 0
    %2659 = vmatpush2.bf16.msra.mxu0 0
    %2660 = vmatprep.mubr.bf16.mxu0 0
    %2661 = vmatmul.mubr.bf16.gmra.mxu0 %v2623
    %v2662 = vpop.f32.mrf.mxu0
    %v2663 = vadd.f32 0.0, %v2662
    %v2664 = vpop.f32.mrf.mxu0
    %v2665 = vpop.f32.mrf.mxu0
    %v2666 = vpop.f32.mrf.mxu0
    %2667 = vdwg.mxu0
    %v2668 = vcombine.low %v2341, %v2433
    %v2669 = vcombine.high %v2341, %v2433
    %v2671 = vunpack.c.l.s4 1983009808
    %v2672 = vunpack.c.0.s8 %v2671
    %v2673 = vlaneseq
    %v2674 = vshrl.u32 %v2673, 7
    %v2675 = vsub.s32 %v2672, %v2674
    %v2676 = vrot.slane %v2668, %v2675
    %v2678 = vunpack.c.l.s4 1983009808
    %v2679 = vunpack.c.0.s8 %v2678
    %v2680 = vlaneseq
    %v2681 = vshrl.u32 %v2680, 7
    %v2682 = vsub.s32 %v2679, %v2681
    %v2683 = vrot.slane %v2669, %v2682
    %v2684 = vcombine.low %v2387, %v2479
    %v2685 = vcombine.high %v2387, %v2479
    %v2687 = vunpack.c.l.s4 1983009808
    %v2688 = vunpack.c.0.s8 %v2687
    %v2689 = vlaneseq
    %v2690 = vshrl.u32 %v2689, 7
    %v2691 = vsub.s32 %v2688, %v2690
    %v2692 = vrot.slane %v2684, %v2691
    %v2694 = vunpack.c.l.s4 1983009808
    %v2695 = vunpack.c.0.s8 %v2694
    %v2696 = vlaneseq
    %v2697 = vshrl.u32 %v2696, 7
    %v2698 = vsub.s32 %v2695, %v2697
    %v2699 = vrot.slane %v2685, %v2698
    %v2700 = vcombine.low %v2676, %v2692
    %v2701 = vcombine.high %v2676, %v2692
    %v2703 = vunpack.c.l.s4 1934713408
    %v2704 = vunpack.c.0.s8 %v2703
    %v2705 = vlaneseq
    %v2706 = vshrl.u32 %v2705, 7
    %v2707 = vsub.s32 %v2704, %v2706
    %v2708 = vrot.slane %v2700, %v2707
    %v2710 = vunpack.c.l.s4 1934713408
    %v2711 = vunpack.c.0.s8 %v2710
    %v2712 = vlaneseq
    %v2713 = vshrl.u32 %v2712, 7
    %v2714 = vsub.s32 %v2711, %v2713
    %v2715 = vrot.slane %v2701, %v2714
    %v2716 = vcombine.low %v2683, %v2699
    %v2717 = vcombine.high %v2683, %v2699
    %v2719 = vunpack.c.l.s4 1934713408
    %v2720 = vunpack.c.0.s8 %v2719
    %v2721 = vlaneseq
    %v2722 = vshrl.u32 %v2721, 7
    %v2723 = vsub.s32 %v2720, %v2722
    %v2724 = vrot.slane %v2716, %v2723
    %v2726 = vunpack.c.l.s4 1934713408
    %v2727 = vunpack.c.0.s8 %v2726
    %v2728 = vlaneseq
    %v2729 = vshrl.u32 %v2728, 7
    %v2730 = vsub.s32 %v2727, %v2729
    %v2731 = vrot.slane %v2717, %v2730
    %v2732 = vcombine.high %v2708, 0.0
    %v2733 = vcombine.high %v2715, 0.0
    %v2734 = vcombine.high %v2724, 0.0
    %v2735 = vcombine.high %v2731, 0.0
    %v2736 = vcombine.low %v2525, %v2617
    %v2737 = vcombine.high %v2525, %v2617
    %v2739 = vunpack.c.l.s4 1983009808
    %v2740 = vunpack.c.0.s8 %v2739
    %v2741 = vlaneseq
    %v2742 = vshrl.u32 %v2741, 7
    %v2743 = vsub.s32 %v2740, %v2742
    %v2744 = vrot.slane %v2736, %v2743
    %v2746 = vunpack.c.l.s4 1983009808
    %v2747 = vunpack.c.0.s8 %v2746
    %v2748 = vlaneseq
    %v2749 = vshrl.u32 %v2748, 7
    %v2750 = vsub.s32 %v2747, %v2749
    %v2751 = vrot.slane %v2737, %v2750
    %v2752 = vcombine.low %v2571, %v2663
    %v2753 = vcombine.high %v2571, %v2663
    %v2755 = vunpack.c.l.s4 1983009808
    %v2756 = vunpack.c.0.s8 %v2755
    %v2757 = vlaneseq
    %v2758 = vshrl.u32 %v2757, 7
    %v2759 = vsub.s32 %v2756, %v2758
    %v2760 = vrot.slane %v2752, %v2759
    %v2762 = vunpack.c.l.s4 1983009808
    %v2763 = vunpack.c.0.s8 %v2762
    %v2764 = vlaneseq
    %v2765 = vshrl.u32 %v2764, 7
    %v2766 = vsub.s32 %v2763, %v2765
    %v2767 = vrot.slane %v2753, %v2766
    %v2768 = vcombine.low %v2744, %v2760
    %v2769 = vcombine.high %v2744, %v2760
    %v2771 = vunpack.c.l.s4 1934713408
    %v2772 = vunpack.c.0.s8 %v2771
    %v2773 = vlaneseq
    %v2774 = vshrl.u32 %v2773, 7
    %v2775 = vsub.s32 %v2772, %v2774
    %v2776 = vrot.slane %v2768, %v2775
    %v2778 = vunpack.c.l.s4 1934713408
    %v2779 = vunpack.c.0.s8 %v2778
    %v2780 = vlaneseq
    %v2781 = vshrl.u32 %v2780, 7
    %v2782 = vsub.s32 %v2779, %v2781
    %v2783 = vrot.slane %v2769, %v2782
    %v2784 = vcombine.low %v2751, %v2767
    %v2785 = vcombine.high %v2751, %v2767
    %v2787 = vunpack.c.l.s4 1934713408
    %v2788 = vunpack.c.0.s8 %v2787
    %v2789 = vlaneseq
    %v2790 = vshrl.u32 %v2789, 7
    %v2791 = vsub.s32 %v2788, %v2790
    %v2792 = vrot.slane %v2784, %v2791
    %v2794 = vunpack.c.l.s4 1934713408
    %v2795 = vunpack.c.0.s8 %v2794
    %v2796 = vlaneseq
    %v2797 = vshrl.u32 %v2796, 7
    %v2798 = vsub.s32 %v2795, %v2797
    %v2799 = vrot.slane %v2785, %v2798
    %v2800 = vcombine.high %v2776, 0.0
    %v2801 = vcombine.high %v2783, 0.0
    %v2802 = vcombine.high %v2792, 0.0
    %v2803 = vcombine.high %v2799, 0.0
    %v2804 = vcombine.low %v2708, %v2715
    %v2806 = vunpack.c.l.s4 1983009808
    %v2807 = vunpack.c.0.s8 %v2806
    %v2808 = vlaneseq
    %v2809 = vshrl.u32 %v2808, 7
    %v2810 = vsub.s32 %v2807, %v2809
    %v2811 = vrot.slane %v2804, %v2810
    %v2812 = vcombine.low %v2732, %v2733
    %v2814 = vunpack.c.l.s4 1983009808
    %v2815 = vunpack.c.0.s8 %v2814
    %v2816 = vlaneseq
    %v2817 = vshrl.u32 %v2816, 7
    %v2818 = vsub.s32 %v2815, %v2817
    %v2819 = vrot.slane %v2812, %v2818
    %v2820 = vcombine.low %v2724, %v2731
    %v2822 = vunpack.c.l.s4 1983009808
    %v2823 = vunpack.c.0.s8 %v2822
    %v2824 = vlaneseq
    %v2825 = vshrl.u32 %v2824, 7
    %v2826 = vsub.s32 %v2823, %v2825
    %v2827 = vrot.slane %v2820, %v2826
    %v2828 = vcombine.low %v2734, %v2735
    %v2830 = vunpack.c.l.s4 1983009808
    %v2831 = vunpack.c.0.s8 %v2830
    %v2832 = vlaneseq
    %v2833 = vshrl.u32 %v2832, 7
    %v2834 = vsub.s32 %v2831, %v2833
    %v2835 = vrot.slane %v2828, %v2834
    %v2836 = vcombine.low %v2811, %v2819
    %v2837 = vcombine.high %v2811, %v2819
    %v2839 = vunpack.c.l.s4 1934713408
    %v2840 = vunpack.c.0.s8 %v2839
    %v2841 = vlaneseq
    %v2842 = vshrl.u32 %v2841, 7
    %v2843 = vsub.s32 %v2840, %v2842
    %v2844 = vrot.slane %v2836, %v2843
    %v2846 = vunpack.c.l.s4 1934713408
    %v2847 = vunpack.c.0.s8 %v2846
    %v2848 = vlaneseq
    %v2849 = vshrl.u32 %v2848, 7
    %v2850 = vsub.s32 %v2847, %v2849
    %v2851 = vrot.slane %v2837, %v2850
    %v2852 = vcombine.low %v2827, %v2835
    %v2853 = vcombine.high %v2827, %v2835
    %v2855 = vunpack.c.l.s4 1934713408
    %v2856 = vunpack.c.0.s8 %v2855
    %v2857 = vlaneseq
    %v2858 = vshrl.u32 %v2857, 7
    %v2859 = vsub.s32 %v2856, %v2858
    %v2860 = vrot.slane %v2852, %v2859
    %v2862 = vunpack.c.l.s4 1934713408
    %v2863 = vunpack.c.0.s8 %v2862
    %v2864 = vlaneseq
    %v2865 = vshrl.u32 %v2864, 7
    %v2866 = vsub.s32 %v2863, %v2865
    %v2867 = vrot.slane %v2853, %v2866
    %v2868 = vcombine.low %v2844, %v2860
    %v2869 = vcombine.high %v2844, %v2860
    %v2870 = vcombine.low %v2851, %v2867
    %v2871 = vcombine.high %v2851, %v2867
    %v2872 = vcombine.low %v2776, %v2783
    %v2874 = vunpack.c.l.s4 1983009808
    %v2875 = vunpack.c.0.s8 %v2874
    %v2876 = vlaneseq
    %v2877 = vshrl.u32 %v2876, 7
    %v2878 = vsub.s32 %v2875, %v2877
    %v2879 = vrot.slane %v2872, %v2878
    %v2880 = vcombine.low %v2800, %v2801
    %v2882 = vunpack.c.l.s4 1983009808
    %v2883 = vunpack.c.0.s8 %v2882
    %v2884 = vlaneseq
    %v2885 = vshrl.u32 %v2884, 7
    %v2886 = vsub.s32 %v2883, %v2885
    %v2887 = vrot.slane %v2880, %v2886
    %v2888 = vcombine.low %v2792, %v2799
    %v2890 = vunpack.c.l.s4 1983009808
    %v2891 = vunpack.c.0.s8 %v2890
    %v2892 = vlaneseq
    %v2893 = vshrl.u32 %v2892, 7
    %v2894 = vsub.s32 %v2891, %v2893
    %v2895 = vrot.slane %v2888, %v2894
    %v2896 = vcombine.low %v2802, %v2803
    %v2898 = vunpack.c.l.s4 1983009808
    %v2899 = vunpack.c.0.s8 %v2898
    %v2900 = vlaneseq
    %v2901 = vshrl.u32 %v2900, 7
    %v2902 = vsub.s32 %v2899, %v2901
    %v2903 = vrot.slane %v2896, %v2902
    %v2904 = vcombine.low %v2879, %v2887
    %v2905 = vcombine.high %v2879, %v2887
    %v2907 = vunpack.c.l.s4 1934713408
    %v2908 = vunpack.c.0.s8 %v2907
    %v2909 = vlaneseq
    %v2910 = vshrl.u32 %v2909, 7
    %v2911 = vsub.s32 %v2908, %v2910
    %v2912 = vrot.slane %v2904, %v2911
    %v2914 = vunpack.c.l.s4 1934713408
    %v2915 = vunpack.c.0.s8 %v2914
    %v2916 = vlaneseq
    %v2917 = vshrl.u32 %v2916, 7
    %v2918 = vsub.s32 %v2915, %v2917
    %v2919 = vrot.slane %v2905, %v2918
    %v2920 = vcombine.low %v2895, %v2903
    %v2921 = vcombine.high %v2895, %v2903
    %v2923 = vunpack.c.l.s4 1934713408
    %v2924 = vunpack.c.0.s8 %v2923
    %v2925 = vlaneseq
    %v2926 = vshrl.u32 %v2925, 7
    %v2927 = vsub.s32 %v2924, %v2926
    %v2928 = vrot.slane %v2920, %v2927
    %v2930 = vunpack.c.l.s4 1934713408
    %v2931 = vunpack.c.0.s8 %v2930
    %v2932 = vlaneseq
    %v2933 = vshrl.u32 %v2932, 7
    %v2934 = vsub.s32 %v2931, %v2933
    %v2935 = vrot.slane %v2921, %v2934
    %v2936 = vcombine.low %v2912, %v2928
    %v2937 = vcombine.high %v2912, %v2928
    %v2938 = vcombine.low %v2919, %v2935
    %v2939 = vcombine.high %v2919, %v2935
    %2942 = vrot.lane.b32.xlu0 %v2869, 64
    %v2943 = vpop.permute.xlu0 %2942
    %2944 = vrot.lane.b32.xlu0 %v2937, 64
    %v2945 = vpop.permute.xlu0 %2944
    %2950 = vrot.lane.b32.xlu0 %v2871, 64
    %v2951 = vpop.permute.xlu0 %2950
    %2952 = vrot.lane.b32.xlu0 %v2939, 64
    %v2953 = vpop.permute.xlu0 %2952
    %v2956 = vsel %vm1833, %v2868, %v2943
    %v2957 = vsel %vm1833, %v2936, %v2945
    %v2958 = vsel %vm1833, %v2870, %v2951
    %v2959 = vsel %vm1833, %v2938, %v2953
    %v2960 = vpack.c.bf16 %v2957, %v2956
    %v2961 = vpack.c.bf16 %v2959, %v2958
    %v2962 = vld [vmem:[#allocation8] sm:$0xff]
    %v2963 = vld [vmem:[#allocation8 + $0x8] sm:$0xff]
    %v2964 = vld [vmem:[#allocation8 + $0x10] sm:$0xff]
    %v2965 = vld [vmem:[#allocation8 + $0x18] sm:$0xff]
    %v2966 = vld [vmem:[#allocation8 + $0x20] sm:$0xff]
    %v2967 = vld [vmem:[#allocation8 + $0x28] sm:$0xff]
    %v2968 = vld [vmem:[#allocation8 + $0x30] sm:$0xff]
    %v2969 = vld [vmem:[#allocation8 + $0x38] sm:$0xff]
    %v2970 = vld [vmem:[#allocation8 + $0x40] sm:$0xff]
    %v2971 = vld [vmem:[#allocation8 + $0x48] sm:$0xff]
    %v2972 = vld [vmem:[#allocation8 + $0x50] sm:$0xff]
    %v2973 = vld [vmem:[#allocation8 + $0x58] sm:$0xff]
    %v2974 = vld [vmem:[#allocation8 + $0x60] sm:$0xff]
    %v2975 = vld [vmem:[#allocation8 + $0x68] sm:$0xff]
    %v2976 = vld [vmem:[#allocation8 + $0x70] sm:$0xff]
    %v2977 = vld [vmem:[#allocation8 + $0x78] sm:$0xff]
    %v2978 = vld [vmem:[#allocation8 + $0x80] sm:$0xff]
    %v2979 = vld [vmem:[#allocation8 + $0x88] sm:$0xff]
    %v2980 = vld [vmem:[#allocation8 + $0x90] sm:$0xff]
    %v2981 = vld [vmem:[#allocation8 + $0x98] sm:$0xff]
    %v2982 = vld [vmem:[#allocation8 + $0xa0] sm:$0xff]
    %v2983 = vld [vmem:[#allocation8 + $0xa8] sm:$0xff]
    %v2984 = vld [vmem:[#allocation8 + $0xb0] sm:$0xff]
    %v2985 = vld [vmem:[#allocation8 + $0xb8] sm:$0xff]
    %v2986 = vld [vmem:[#allocation8 + $0xc0] sm:$0xff]
    %v2987 = vld [vmem:[#allocation8 + $0xc8] sm:$0xff]
    %v2988 = vld [vmem:[#allocation8 + $0xd0] sm:$0xff]
    %v2989 = vld [vmem:[#allocation8 + $0xd8] sm:$0xff]
    %v2990 = vld [vmem:[#allocation8 + $0xe0] sm:$0xff]
    %v2991 = vld [vmem:[#allocation8 + $0xe8] sm:$0xff]
    %v2992 = vld [vmem:[#allocation8 + $0xf0] sm:$0xff]
    %v2993 = vld [vmem:[#allocation8 + $0xf8] sm:$0xff]
    %v2994 = vld [vmem:[%s4] sm:$0x3]
    %v2996 = vlaneseq
    %v2997 = vshrl.u32 %v2996, 7
    %v2998 = vsub.s32 0, %v2997
    %v2999 = vrot.slane %v2994, %v2998
    %v3000 = vlaneseq
    %v3001 = vshrl.u32 %v3000, 7
    %v3002 = vsub.s32 1, %v3001
    %v3003 = vrot.slane %v2994, %v3002
    %v3038 = vunpack.c.l.b16 %v2962
    %v3039 = vunpack.c.h.b16 %v2962
    %v3040 = vunpack.c.l.b16 %v2963
    %v3041 = vunpack.c.h.b16 %v2963
    %v3042 = vunpack.c.l.b16 %v2964
    %v3043 = vunpack.c.h.b16 %v2964
    %v3044 = vunpack.c.l.b16 %v2965
    %v3045 = vunpack.c.h.b16 %v2965
    %v3046 = vunpack.c.l.b16 %v2966
    %v3047 = vunpack.c.h.b16 %v2966
    %v3048 = vunpack.c.l.b16 %v2967
    %v3049 = vunpack.c.h.b16 %v2967
    %v3050 = vunpack.c.l.b16 %v2968
    %v3051 = vunpack.c.h.b16 %v2968
    %v3052 = vunpack.c.l.b16 %v2969
    %v3053 = vunpack.c.h.b16 %v2969
    %v3054 = vunpack.c.l.b16 %v2970
    %v3055 = vunpack.c.h.b16 %v2970
    %v3056 = vunpack.c.l.b16 %v2971
    %v3057 = vunpack.c.h.b16 %v2971
    %v3058 = vunpack.c.l.b16 %v2972
    %v3059 = vunpack.c.h.b16 %v2972
    %v3060 = vunpack.c.l.b16 %v2973
    %v3061 = vunpack.c.h.b16 %v2973
    %v3062 = vunpack.c.l.b16 %v2974
    %v3063 = vunpack.c.h.b16 %v2974
    %v3064 = vunpack.c.l.b16 %v2975
    %v3065 = vunpack.c.h.b16 %v2975
    %v3066 = vunpack.c.l.b16 %v2976
    %v3067 = vunpack.c.h.b16 %v2976
    %v3068 = vunpack.c.l.b16 %v2977
    %v3069 = vunpack.c.h.b16 %v2977
    %v3070 = vunpack.c.l.b16 %v2978
    %v3071 = vunpack.c.h.b16 %v2978
    %v3072 = vunpack.c.l.b16 %v2979
    %v3073 = vunpack.c.h.b16 %v2979
    %v3074 = vunpack.c.l.b16 %v2980
    %v3075 = vunpack.c.h.b16 %v2980
    %v3076 = vunpack.c.l.b16 %v2981
    %v3077 = vunpack.c.h.b16 %v2981
    %v3078 = vunpack.c.l.b16 %v2982
    %v3079 = vunpack.c.h.b16 %v2982
    %v3080 = vunpack.c.l.b16 %v2983
    %v3081 = vunpack.c.h.b16 %v2983
    %v3082 = vunpack.c.l.b16 %v2984
    %v3083 = vunpack.c.h.b16 %v2984
    %v3084 = vunpack.c.l.b16 %v2985
    %v3085 = vunpack.c.h.b16 %v2985
    %v3086 = vunpack.c.l.b16 %v2986
    %v3087 = vunpack.c.h.b16 %v2986
    %v3088 = vunpack.c.l.b16 %v2987
    %v3089 = vunpack.c.h.b16 %v2987
    %v3090 = vunpack.c.l.b16 %v2988
    %v3091 = vunpack.c.h.b16 %v2988
    %v3092 = vunpack.c.l.b16 %v2989
    %v3093 = vunpack.c.h.b16 %v2989
    %v3094 = vunpack.c.l.b16 %v2990
    %v3095 = vunpack.c.h.b16 %v2990
    %v3096 = vunpack.c.l.b16 %v2991
    %v3097 = vunpack.c.h.b16 %v2991
    %v3098 = vunpack.c.l.b16 %v2992
    %v3099 = vunpack.c.h.b16 %v2992
    %v3100 = vunpack.c.l.b16 %v2993
    %v3101 = vunpack.c.h.b16 %v2993
    %v3102 = vpack.c.b16 %v3040, %v3038
    %v3103 = vpack.c.b16 %v3041, %v3039
    %v3104 = vpack.c.b16 %v3044, %v3042
    %v3105 = vpack.c.b16 %v3045, %v3043
    %v3106 = vpack.c.b16 %v3048, %v3046
    %v3107 = vpack.c.b16 %v3049, %v3047
    %v3108 = vpack.c.b16 %v3052, %v3050
    %v3109 = vpack.c.b16 %v3053, %v3051
    %v3110 = vpack.c.b16 %v3056, %v3054
    %v3111 = vpack.c.b16 %v3057, %v3055
    %v3112 = vpack.c.b16 %v3060, %v3058
    %v3113 = vpack.c.b16 %v3061, %v3059
    %v3114 = vpack.c.b16 %v3064, %v3062
    %v3115 = vpack.c.b16 %v3065, %v3063
    %v3116 = vpack.c.b16 %v3068, %v3066
    %v3117 = vpack.c.b16 %v3069, %v3067
    %v3118 = vpack.c.b16 %v3072, %v3070
    %v3119 = vpack.c.b16 %v3073, %v3071
    %v3120 = vpack.c.b16 %v3076, %v3074
    %v3121 = vpack.c.b16 %v3077, %v3075
    %v3122 = vpack.c.b16 %v3080, %v3078
    %v3123 = vpack.c.b16 %v3081, %v3079
    %v3124 = vpack.c.b16 %v3084, %v3082
    %v3125 = vpack.c.b16 %v3085, %v3083
    %v3126 = vpack.c.b16 %v3088, %v3086
    %v3127 = vpack.c.b16 %v3089, %v3087
    %v3128 = vpack.c.b16 %v3092, %v3090
    %v3129 = vpack.c.b16 %v3093, %v3091
    %v3130 = vpack.c.b16 %v3096, %v3094
    %v3131 = vpack.c.b16 %v3097, %v3095
    %v3132 = vpack.c.b16 %v3100, %v3098
    %v3133 = vpack.c.b16 %v3101, %v3099
    %3166 = vmatprep.subr.bf16.mxu0 %v3117
    %3167 = vmatpush1.bf16.msra.mxu0 %v3116
    %3168 = vmatprep.subr.bf16.mxu0 %v3115
    %3169 = vmatpush1.bf16.msra.mxu0 %v3114
    %3170 = vmatprep.subr.bf16.mxu0 %v3113
    %3171 = vmatpush1.bf16.msra.mxu0 %v3112
    %3172 = vmatprep.subr.bf16.mxu0 %v3111
    %3173 = vmatpush1.bf16.msra.mxu0 %v3110
    %3174 = vmatprep.subr.bf16.mxu0 %v3109
    %3175 = vmatpush1.bf16.msra.mxu0 %v3108
    %3176 = vmatprep.subr.bf16.mxu0 %v3107
    %3177 = vmatpush1.bf16.msra.mxu0 %v3106
    %3178 = vmatprep.subr.bf16.mxu0 %v3105
    %3179 = vmatpush1.bf16.msra.mxu0 %v3104
    %3180 = vmatprep.subr.bf16.mxu0 %v3103
    %3181 = vmatpush1.bf16.msra.mxu0 %v3102
    %3182 = vmatprep.subr.bf16.mxu0 %v3133
    %3183 = vmatpush2.bf16.msra.mxu0 %v3132
    %3184 = vmatprep.subr.bf16.mxu0 %v3131
    %3185 = vmatpush2.bf16.msra.mxu0 %v3130
    %3186 = vmatprep.subr.bf16.mxu0 %v3129
    %3187 = vmatpush2.bf16.msra.mxu0 %v3128
    %3188 = vmatprep.subr.bf16.mxu0 %v3127
    %3189 = vmatpush2.bf16.msra.mxu0 %v3126
    %3190 = vmatprep.subr.bf16.mxu0 %v3125
    %3191 = vmatpush2.bf16.msra.mxu0 %v3124
    %3192 = vmatprep.subr.bf16.mxu0 %v3123
    %3193 = vmatpush2.bf16.msra.mxu0 %v3122
    %3194 = vmatprep.subr.bf16.mxu0 %v3121
    %3195 = vmatpush2.bf16.msra.mxu0 %v3120
    %3196 = vmatprep.subr.bf16.mxu0 %v3119
    %3197 = vmatpush2.bf16.msra.mxu0 %v3118
    %3198 = vmatprep.mubr.bf16.mxu0 %v2961
    %3199 = vmatmul.mubr.bf16.gmra.mxu0 %v2960
    %v3200 = vpop.f32.mrf.mxu0
    %v3201 = vadd.f32 %v2999, %v3200
    %v3202 = vpop.f32.mrf.mxu0
    %v3203 = vadd.f32 %v3003, %v3202
    %v3204 = vpop.f32.mrf.mxu0
    %v3205 = vadd.f32 %v2999, %v3204
    %v3206 = vpop.f32.mrf.mxu0
    %v3207 = vadd.f32 %v3003, %v3206
    %3208 = vdwg.mxu0
    %v3209 = vadd.f32 %v137, %v3201
    %v3210 = vadd.f32 %v138, %v3203
    %v3211 = vadd.f32 %v139, %v3205
    %v3212 = vadd.f32 %v140, %v3207
    %v3213 = vld [vmem:[%s7] sm:$0x3]
    %v3214 = vld [vmem:[#allocation10] sm:$0x3]
    %v3215 = vadd.f32 %v3209, %v3210
    %3216 = vadd.xlane.f32.xlu0 %v3215
    %v3217 = vpop.xlane.xlu0 %3216
    %v3218 = vadd.f32 %v3211, %v3212
    %3219 = vadd.xlane.f32.xlu0 %v3218
    %v3220 = vpop.xlane.xlu0 %3219
    %v3221 = vmul.f32 %v3217, %v149
    %v3222 = vmul.f32 %v3220, %v149
    %v3223 = vsub.f32 %v3209, %v3221
    %v3224 = vsub.f32 %v3210, %v3221
    %v3225 = vsub.f32 %v3211, %v3222
    %v3226 = vsub.f32 %v3212, %v3222
    %v3227 = vmul.f32 %v3223, %v3223
    %v3228 = vmul.f32 %v3224, %v3224
    %v3229 = vmul.f32 %v3225, %v3225
    %v3230 = vmul.f32 %v3226, %v3226
    %v3231 = vadd.f32 %v3227, %v3228
    %3232 = vadd.xlane.f32.xlu0 %v3231
    %v3233 = vpop.xlane.xlu0 %3232
    %v3234 = vadd.f32 %v3229, %v3230
    %3235 = vadd.xlane.f32.xlu0 %v3234
    %v3236 = vpop.xlane.xlu0 %3235
    %v3237 = vmul.f32 %v3233, %v149
    %v3238 = vmul.f32 %v3236, %v149
    %v3239 = vadd.f32 %v3237, 1e-05
    %v3240 = vadd.f32 %v3238, 1e-05
    %v3241 = vrsqrt.pop %v3239
    %v3242 = vrsqrt.pop %v3240
    %v3243 = vmul.f32 %v3223, %v3241
    %v3244 = vmul.f32 %v3224, %v3241
    %v3245 = vmul.f32 %v3225, %v3242
    %v3246 = vmul.f32 %v3226, %v3242
    %v3248 = vlaneseq
    %v3249 = vshrl.u32 %v3248, 7
    %v3250 = vsub.s32 0, %v3249
    %v3251 = vrot.slane %v3213, %v3250
    %v3252 = vlaneseq
    %v3253 = vshrl.u32 %v3252, 7
    %v3254 = vsub.s32 1, %v3253
    %v3255 = vrot.slane %v3213, %v3254
    %v3258 = vmul.f32 %v3243, %v3251
    %v3259 = vmul.f32 %v3244, %v3255
    %v3260 = vmul.f32 %v3245, %v3251
    %v3261 = vmul.f32 %v3246, %v3255
    %v3263 = vlaneseq
    %v3264 = vshrl.u32 %v3263, 7
    %v3265 = vsub.s32 0, %v3264
    %v3266 = vrot.slane %v3214, %v3265
    %v3267 = vlaneseq
    %v3268 = vshrl.u32 %v3267, 7
    %v3269 = vsub.s32 1, %v3268
    %v3270 = vrot.slane %v3214, %v3269
    %v3273 = vadd.f32 %v3258, %v3266
    %v3274 = vadd.f32 %v3259, %v3270
    %v3275 = vadd.f32 %v3260, %v3266
    %v3276 = vadd.f32 %v3261, %v3270
    %v3277 = vpack.c.bf16 %v3275, %v3273
    %v3278 = vpack.c.bf16 %v3276, %v3274
    %v3279 = vld [vmem:[#allocation11] sm:$0xff]
    %v3280 = vld [vmem:[#allocation11 + $0x8] sm:$0xff]
    %v3281 = vld [vmem:[#allocation11 + $0x10] sm:$0xff]
    %v3282 = vld [vmem:[#allocation11 + $0x18] sm:$0xff]
    %v3283 = vld [vmem:[#allocation11 + $0x20] sm:$0xff]
    %v3284 = vld [vmem:[#allocation11 + $0x28] sm:$0xff]
    %v3285 = vld [vmem:[#allocation11 + $0x30] sm:$0xff]
    %v3286 = vld [vmem:[#allocation11 + $0x38] sm:$0xff]
    %v3287 = vld [vmem:[#allocation11 + $0x40] sm:$0xff]
    %v3288 = vld [vmem:[#allocation11 + $0x48] sm:$0xff]
    %v3289 = vld [vmem:[#allocation11 + $0x50] sm:$0xff]
    %v3290 = vld [vmem:[#allocation11 + $0x58] sm:$0xff]
    %v3291 = vld [vmem:[#allocation11 + $0x60] sm:$0xff]
    %v3292 = vld [vmem:[#allocation11 + $0x68] sm:$0xff]
    %v3293 = vld [vmem:[#allocation11 + $0x70] sm:$0xff]
    %v3294 = vld [vmem:[#allocation11 + $0x78] sm:$0xff]
    %v3295 = vld [vmem:[#allocation11 + $0x80] sm:$0xff]
    %v3296 = vld [vmem:[#allocation11 + $0x88] sm:$0xff]
    %v3297 = vld [vmem:[#allocation11 + $0x90] sm:$0xff]
    %v3298 = vld [vmem:[#allocation11 + $0x98] sm:$0xff]
    %v3299 = vld [vmem:[#allocation11 + $0xa0] sm:$0xff]
    %v3300 = vld [vmem:[#allocation11 + $0xa8] sm:$0xff]
    %v3301 = vld [vmem:[#allocation11 + $0xb0] sm:$0xff]
    %v3302 = vld [vmem:[#allocation11 + $0xb8] sm:$0xff]
    %v3303 = vld [vmem:[#allocation11 + $0xc0] sm:$0xff]
    %v3304 = vld [vmem:[#allocation11 + $0xc8] sm:$0xff]
    %v3305 = vld [vmem:[#allocation11 + $0xd0] sm:$0xff]
    %v3306 = vld [vmem:[#allocation11 + $0xd8] sm:$0xff]
    %v3307 = vld [vmem:[#allocation11 + $0xe0] sm:$0xff]
    %v3308 = vld [vmem:[#allocation11 + $0xe8] sm:$0xff]
    %v3309 = vld [vmem:[#allocation11 + $0xf0] sm:$0xff]
    %v3310 = vld [vmem:[#allocation11 + $0xf8] sm:$0xff]
    %v3311 = vld [vmem:[#allocation11 + $0x100] sm:$0xff]
    %v3312 = vld [vmem:[#allocation11 + $0x108] sm:$0xff]
    %v3313 = vld [vmem:[#allocation11 + $0x110] sm:$0xff]
    %v3314 = vld [vmem:[#allocation11 + $0x118] sm:$0xff]
    %v3315 = vld [vmem:[#allocation11 + $0x120] sm:$0xff]
    %v3316 = vld [vmem:[#allocation11 + $0x128] sm:$0xff]
    %v3317 = vld [vmem:[#allocation11 + $0x130] sm:$0xff]
    %v3318 = vld [vmem:[#allocation11 + $0x138] sm:$0xff]
    %v3319 = vld [vmem:[#allocation11 + $0x140] sm:$0xff]
    %v3320 = vld [vmem:[#allocation11 + $0x148] sm:$0xff]
    %v3321 = vld [vmem:[#allocation11 + $0x150] sm:$0xff]
    %v3322 = vld [vmem:[#allocation11 + $0x158] sm:$0xff]
    %v3323 = vld [vmem:[#allocation11 + $0x160] sm:$0xff]
    %v3324 = vld [vmem:[#allocation11 + $0x168] sm:$0xff]
    %v3325 = vld [vmem:[#allocation11 + $0x170] sm:$0xff]
    %v3326 = vld [vmem:[#allocation11 + $0x178] sm:$0xff]
    %v3327 = vld [vmem:[#allocation11 + $0x180] sm:$0xff]
    %v3328 = vld [vmem:[#allocation11 + $0x188] sm:$0xff]
    %v3329 = vld [vmem:[#allocation11 + $0x190] sm:$0xff]
    %v3330 = vld [vmem:[#allocation11 + $0x198] sm:$0xff]
    %v3331 = vld [vmem:[#allocation11 + $0x1a0] sm:$0xff]
    %v3332 = vld [vmem:[#allocation11 + $0x1a8] sm:$0xff]
    %v3333 = vld [vmem:[#allocation11 + $0x1b0] sm:$0xff]
    %v3334 = vld [vmem:[#allocation11 + $0x1b8] sm:$0xff]
    %v3335 = vld [vmem:[#allocation11 + $0x1c0] sm:$0xff]
    %v3336 = vld [vmem:[#allocation11 + $0x1c8] sm:$0xff]
    %v3337 = vld [vmem:[#allocation11 + $0x1d0] sm:$0xff]
    %v3338 = vld [vmem:[#allocation11 + $0x1d8] sm:$0xff]
    %v3339 = vld [vmem:[#allocation11 + $0x1e0] sm:$0xff]
    %v3340 = vld [vmem:[#allocation11 + $0x1e8] sm:$0xff]
    %v3341 = vld [vmem:[#allocation11 + $0x1f0] sm:$0xff]
    %v3342 = vld [vmem:[#allocation11 + $0x1f8] sm:$0xff]
    %v3343 = vld [vmem:[#allocation11 + $0x200] sm:$0xff]
    %v3344 = vld [vmem:[#allocation11 + $0x208] sm:$0xff]
    %v3345 = vld [vmem:[#allocation11 + $0x210] sm:$0xff]
    %v3346 = vld [vmem:[#allocation11 + $0x218] sm:$0xff]
    %v3347 = vld [vmem:[#allocation11 + $0x220] sm:$0xff]
    %v3348 = vld [vmem:[#allocation11 + $0x228] sm:$0xff]
    %v3349 = vld [vmem:[#allocation11 + $0x230] sm:$0xff]
    %v3350 = vld [vmem:[#allocation11 + $0x238] sm:$0xff]
    %v3351 = vld [vmem:[#allocation11 + $0x240] sm:$0xff]
    %v3352 = vld [vmem:[#allocation11 + $0x248] sm:$0xff]
    %v3353 = vld [vmem:[#allocation11 + $0x250] sm:$0xff]
    %v3354 = vld [vmem:[#allocation11 + $0x258] sm:$0xff]
    %v3355 = vld [vmem:[#allocation11 + $0x260] sm:$0xff]
    %v3356 = vld [vmem:[#allocation11 + $0x268] sm:$0xff]
    %v3357 = vld [vmem:[#allocation11 + $0x270] sm:$0xff]
    %v3358 = vld [vmem:[#allocation11 + $0x278] sm:$0xff]
    %v3359 = vld [vmem:[#allocation11 + $0x280] sm:$0xff]
    %v3360 = vld [vmem:[#allocation11 + $0x288] sm:$0xff]
    %v3361 = vld [vmem:[#allocation11 + $0x290] sm:$0xff]
    %v3362 = vld [vmem:[#allocation11 + $0x298] sm:$0xff]
    %v3363 = vld [vmem:[#allocation11 + $0x2a0] sm:$0xff]
    %v3364 = vld [vmem:[#allocation11 + $0x2a8] sm:$0xff]
    %v3365 = vld [vmem:[#allocation11 + $0x2b0] sm:$0xff]
    %v3366 = vld [vmem:[#allocation11 + $0x2b8] sm:$0xff]
    %v3367 = vld [vmem:[#allocation11 + $0x2c0] sm:$0xff]
    %v3368 = vld [vmem:[#allocation11 + $0x2c8] sm:$0xff]
    %v3369 = vld [vmem:[#allocation11 + $0x2d0] sm:$0xff]
    %v3370 = vld [vmem:[#allocation11 + $0x2d8] sm:$0xff]
    %v3371 = vld [vmem:[#allocation11 + $0x2e0] sm:$0xff]
    %v3372 = vld [vmem:[#allocation11 + $0x2e8] sm:$0xff]
    %v3373 = vld [vmem:[#allocation11 + $0x2f0] sm:$0xff]
    %v3374 = vld [vmem:[#allocation11 + $0x2f8] sm:$0xff]
    %v3375 = vld [vmem:[#allocation11 + $0x300] sm:$0xff]
    %v3376 = vld [vmem:[#allocation11 + $0x308] sm:$0xff]
    %v3377 = vld [vmem:[#allocation11 + $0x310] sm:$0xff]
    %v3378 = vld [vmem:[#allocation11 + $0x318] sm:$0xff]
    %v3379 = vld [vmem:[#allocation11 + $0x320] sm:$0xff]
    %v3380 = vld [vmem:[#allocation11 + $0x328] sm:$0xff]
    %v3381 = vld [vmem:[#allocation11 + $0x330] sm:$0xff]
    %v3382 = vld [vmem:[#allocation11 + $0x338] sm:$0xff]
    %v3383 = vld [vmem:[#allocation11 + $0x340] sm:$0xff]
    %v3384 = vld [vmem:[#allocation11 + $0x348] sm:$0xff]
    %v3385 = vld [vmem:[#allocation11 + $0x350] sm:$0xff]
    %v3386 = vld [vmem:[#allocation11 + $0x358] sm:$0xff]
    %v3387 = vld [vmem:[#allocation11 + $0x360] sm:$0xff]
    %v3388 = vld [vmem:[#allocation11 + $0x368] sm:$0xff]
    %v3389 = vld [vmem:[#allocation11 + $0x370] sm:$0xff]
    %v3390 = vld [vmem:[#allocation11 + $0x378] sm:$0xff]
    %v3391 = vld [vmem:[#allocation11 + $0x380] sm:$0xff]
    %v3392 = vld [vmem:[#allocation11 + $0x388] sm:$0xff]
    %v3393 = vld [vmem:[#allocation11 + $0x390] sm:$0xff]
    %v3394 = vld [vmem:[#allocation11 + $0x398] sm:$0xff]
    %v3395 = vld [vmem:[#allocation11 + $0x3a0] sm:$0xff]
    %v3396 = vld [vmem:[#allocation11 + $0x3a8] sm:$0xff]
    %v3397 = vld [vmem:[#allocation11 + $0x3b0] sm:$0xff]
    %v3398 = vld [vmem:[#allocation11 + $0x3b8] sm:$0xff]
    %v3399 = vld [vmem:[#allocation11 + $0x3c0] sm:$0xff]
    %v3400 = vld [vmem:[#allocation11 + $0x3c8] sm:$0xff]
    %v3401 = vld [vmem:[#allocation11 + $0x3d0] sm:$0xff]
    %v3402 = vld [vmem:[#allocation11 + $0x3d8] sm:$0xff]
    %v3403 = vld [vmem:[#allocation11 + $0x3e0] sm:$0xff]
    %v3404 = vld [vmem:[#allocation11 + $0x3e8] sm:$0xff]
    %v3405 = vld [vmem:[#allocation11 + $0x3f0] sm:$0xff]
    %v3406 = vld [vmem:[#allocation11 + $0x3f8] sm:$0xff]
    %v3407 = vld [vmem:[%s10] sm:$0xff]
    %v3409 = vlaneseq
    %v3410 = vshrl.u32 %v3409, 7
    %v3411 = vsub.s32 0, %v3410
    %v3412 = vrot.slane %v3407, %v3411
    %v3413 = vlaneseq
    %v3414 = vshrl.u32 %v3413, 7
    %v3415 = vsub.s32 1, %v3414
    %v3416 = vrot.slane %v3407, %v3415
    %v3417 = vlaneseq
    %v3418 = vshrl.u32 %v3417, 7
    %v3419 = vsub.s32 2, %v3418
    %v3420 = vrot.slane %v3407, %v3419
    %v3421 = vlaneseq
    %v3422 = vshrl.u32 %v3421, 7
    %v3423 = vsub.s32 3, %v3422
    %v3424 = vrot.slane %v3407, %v3423
    %v3425 = vlaneseq
    %v3426 = vshrl.u32 %v3425, 7
    %v3427 = vsub.s32 4, %v3426
    %v3428 = vrot.slane %v3407, %v3427
    %v3429 = vlaneseq
    %v3430 = vshrl.u32 %v3429, 7
    %v3431 = vsub.s32 5, %v3430
    %v3432 = vrot.slane %v3407, %v3431
    %v3433 = vlaneseq
    %v3434 = vshrl.u32 %v3433, 7
    %v3435 = vsub.s32 6, %v3434
    %v3436 = vrot.slane %v3407, %v3435
    %v3437 = vlaneseq
    %v3438 = vshrl.u32 %v3437, 7
    %v3439 = vsub.s32 7, %v3438
    %v3440 = vrot.slane %v3407, %v3439
    %v3577 = vunpack.c.l.b16 %v3279
    %v3578 = vunpack.c.h.b16 %v3279
    %v3579 = vunpack.c.l.b16 %v3280
    %v3580 = vunpack.c.h.b16 %v3280
    %v3581 = vunpack.c.l.b16 %v3281
    %v3582 = vunpack.c.h.b16 %v3281
    %v3583 = vunpack.c.l.b16 %v3282
    %v3584 = vunpack.c.h.b16 %v3282
    %v3585 = vunpack.c.l.b16 %v3283
    %v3586 = vunpack.c.h.b16 %v3283
    %v3587 = vunpack.c.l.b16 %v3284
    %v3588 = vunpack.c.h.b16 %v3284
    %v3589 = vunpack.c.l.b16 %v3285
    %v3590 = vunpack.c.h.b16 %v3285
    %v3591 = vunpack.c.l.b16 %v3286
    %v3592 = vunpack.c.h.b16 %v3286
    %v3593 = vunpack.c.l.b16 %v3287
    %v3594 = vunpack.c.h.b16 %v3287
    %v3595 = vunpack.c.l.b16 %v3288
    %v3596 = vunpack.c.h.b16 %v3288
    %v3597 = vunpack.c.l.b16 %v3289
    %v3598 = vunpack.c.h.b16 %v3289
    %v3599 = vunpack.c.l.b16 %v3290
    %v3600 = vunpack.c.h.b16 %v3290
    %v3601 = vunpack.c.l.b16 %v3291
    %v3602 = vunpack.c.h.b16 %v3291
    %v3603 = vunpack.c.l.b16 %v3292
    %v3604 = vunpack.c.h.b16 %v3292
    %v3605 = vunpack.c.l.b16 %v3293
    %v3606 = vunpack.c.h.b16 %v3293
    %v3607 = vunpack.c.l.b16 %v3294
    %v3608 = vunpack.c.h.b16 %v3294
    %v3609 = vunpack.c.l.b16 %v3295
    %v3610 = vunpack.c.h.b16 %v3295
    %v3611 = vunpack.c.l.b16 %v3296
    %v3612 = vunpack.c.h.b16 %v3296
    %v3613 = vunpack.c.l.b16 %v3297
    %v3614 = vunpack.c.h.b16 %v3297
    %v3615 = vunpack.c.l.b16 %v3298
    %v3616 = vunpack.c.h.b16 %v3298
    %v3617 = vunpack.c.l.b16 %v3299
    %v3618 = vunpack.c.h.b16 %v3299
    %v3619 = vunpack.c.l.b16 %v3300
    %v3620 = vunpack.c.h.b16 %v3300
    %v3621 = vunpack.c.l.b16 %v3301
    %v3622 = vunpack.c.h.b16 %v3301
    %v3623 = vunpack.c.l.b16 %v3302
    %v3624 = vunpack.c.h.b16 %v3302
    %v3625 = vunpack.c.l.b16 %v3303
    %v3626 = vunpack.c.h.b16 %v3303
    %v3627 = vunpack.c.l.b16 %v3304
    %v3628 = vunpack.c.h.b16 %v3304
    %v3629 = vunpack.c.l.b16 %v3305
    %v3630 = vunpack.c.h.b16 %v3305
    %v3631 = vunpack.c.l.b16 %v3306
    %v3632 = vunpack.c.h.b16 %v3306
    %v3633 = vunpack.c.l.b16 %v3307
    %v3634 = vunpack.c.h.b16 %v3307
    %v3635 = vunpack.c.l.b16 %v3308
    %v3636 = vunpack.c.h.b16 %v3308
    %v3637 = vunpack.c.l.b16 %v3309
    %v3638 = vunpack.c.h.b16 %v3309
    %v3639 = vunpack.c.l.b16 %v3310
    %v3640 = vunpack.c.h.b16 %v3310
    %v3641 = vunpack.c.l.b16 %v3311
    %v3642 = vunpack.c.h.b16 %v3311
    %v3643 = vunpack.c.l.b16 %v3312
    %v3644 = vunpack.c.h.b16 %v3312
    %v3645 = vunpack.c.l.b16 %v3313
    %v3646 = vunpack.c.h.b16 %v3313
    %v3647 = vunpack.c.l.b16 %v3314
    %v3648 = vunpack.c.h.b16 %v3314
    %v3649 = vunpack.c.l.b16 %v3315
    %v3650 = vunpack.c.h.b16 %v3315
    %v3651 = vunpack.c.l.b16 %v3316
    %v3652 = vunpack.c.h.b16 %v3316
    %v3653 = vunpack.c.l.b16 %v3317
    %v3654 = vunpack.c.h.b16 %v3317
    %v3655 = vunpack.c.l.b16 %v3318
    %v3656 = vunpack.c.h.b16 %v3318
    %v3657 = vunpack.c.l.b16 %v3319
    %v3658 = vunpack.c.h.b16 %v3319
    %v3659 = vunpack.c.l.b16 %v3320
    %v3660 = vunpack.c.h.b16 %v3320
    %v3661 = vunpack.c.l.b16 %v3321
    %v3662 = vunpack.c.h.b16 %v3321
    %v3663 = vunpack.c.l.b16 %v3322
    %v3664 = vunpack.c.h.b16 %v3322
    %v3665 = vunpack.c.l.b16 %v3323
    %v3666 = vunpack.c.h.b16 %v3323
    %v3667 = vunpack.c.l.b16 %v3324
    %v3668 = vunpack.c.h.b16 %v3324
    %v3669 = vunpack.c.l.b16 %v3325
    %v3670 = vunpack.c.h.b16 %v3325
    %v3671 = vunpack.c.l.b16 %v3326
    %v3672 = vunpack.c.h.b16 %v3326
    %v3673 = vunpack.c.l.b16 %v3327
    %v3674 = vunpack.c.h.b16 %v3327
    %v3675 = vunpack.c.l.b16 %v3328
    %v3676 = vunpack.c.h.b16 %v3328
    %v3677 = vunpack.c.l.b16 %v3329
    %v3678 = vunpack.c.h.b16 %v3329
    %v3679 = vunpack.c.l.b16 %v3330
    %v3680 = vunpack.c.h.b16 %v3330
    %v3681 = vunpack.c.l.b16 %v3331
    %v3682 = vunpack.c.h.b16 %v3331
    %v3683 = vunpack.c.l.b16 %v3332
    %v3684 = vunpack.c.h.b16 %v3332
    %v3685 = vunpack.c.l.b16 %v3333
    %v3686 = vunpack.c.h.b16 %v3333
    %v3687 = vunpack.c.l.b16 %v3334
    %v3688 = vunpack.c.h.b16 %v3334
    %v3689 = vunpack.c.l.b16 %v3335
    %v3690 = vunpack.c.h.b16 %v3335
    %v3691 = vunpack.c.l.b16 %v3336
    %v3692 = vunpack.c.h.b16 %v3336
    %v3693 = vunpack.c.l.b16 %v3337
    %v3694 = vunpack.c.h.b16 %v3337
    %v3695 = vunpack.c.l.b16 %v3338
    %v3696 = vunpack.c.h.b16 %v3338
    %v3697 = vunpack.c.l.b16 %v3339
    %v3698 = vunpack.c.h.b16 %v3339
    %v3699 = vunpack.c.l.b16 %v3340
    %v3700 = vunpack.c.h.b16 %v3340
    %v3701 = vunpack.c.l.b16 %v3341
    %v3702 = vunpack.c.h.b16 %v3341
    %v3703 = vunpack.c.l.b16 %v3342
    %v3704 = vunpack.c.h.b16 %v3342
    %v3705 = vunpack.c.l.b16 %v3343
    %v3706 = vunpack.c.h.b16 %v3343
    %v3707 = vunpack.c.l.b16 %v3344
    %v3708 = vunpack.c.h.b16 %v3344
    %v3709 = vunpack.c.l.b16 %v3345
    %v3710 = vunpack.c.h.b16 %v3345
    %v3711 = vunpack.c.l.b16 %v3346
    %v3712 = vunpack.c.h.b16 %v3346
    %v3713 = vunpack.c.l.b16 %v3347
    %v3714 = vunpack.c.h.b16 %v3347
    %v3715 = vunpack.c.l.b16 %v3348
    %v3716 = vunpack.c.h.b16 %v3348
    %v3717 = vunpack.c.l.b16 %v3349
    %v3718 = vunpack.c.h.b16 %v3349
    %v3719 = vunpack.c.l.b16 %v3350
    %v3720 = vunpack.c.h.b16 %v3350
    %v3721 = vunpack.c.l.b16 %v3351
    %v3722 = vunpack.c.h.b16 %v3351
    %v3723 = vunpack.c.l.b16 %v3352
    %v3724 = vunpack.c.h.b16 %v3352
    %v3725 = vunpack.c.l.b16 %v3353
    %v3726 = vunpack.c.h.b16 %v3353
    %v3727 = vunpack.c.l.b16 %v3354
    %v3728 = vunpack.c.h.b16 %v3354
    %v3729 = vunpack.c.l.b16 %v3355
    %v3730 = vunpack.c.h.b16 %v3355
    %v3731 = vunpack.c.l.b16 %v3356
    %v3732 = vunpack.c.h.b16 %v3356
    %v3733 = vunpack.c.l.b16 %v3357
    %v3734 = vunpack.c.h.b16 %v3357
    %v3735 = vunpack.c.l.b16 %v3358
    %v3736 = vunpack.c.h.b16 %v3358
    %v3737 = vunpack.c.l.b16 %v3359
    %v3738 = vunpack.c.h.b16 %v3359
    %v3739 = vunpack.c.l.b16 %v3360
    %v3740 = vunpack.c.h.b16 %v3360
    %v3741 = vunpack.c.l.b16 %v3361
    %v3742 = vunpack.c.h.b16 %v3361
    %v3743 = vunpack.c.l.b16 %v3362
    %v3744 = vunpack.c.h.b16 %v3362
    %v3745 = vunpack.c.l.b16 %v3363
    %v3746 = vunpack.c.h.b16 %v3363
    %v3747 = vunpack.c.l.b16 %v3364
    %v3748 = vunpack.c.h.b16 %v3364
    %v3749 = vunpack.c.l.b16 %v3365
    %v3750 = vunpack.c.h.b16 %v3365
    %v3751 = vunpack.c.l.b16 %v3366
    %v3752 = vunpack.c.h.b16 %v3366
    %v3753 = vunpack.c.l.b16 %v3367
    %v3754 = vunpack.c.h.b16 %v3367
    %v3755 = vunpack.c.l.b16 %v3368
    %v3756 = vunpack.c.h.b16 %v3368
    %v3757 = vunpack.c.l.b16 %v3369
    %v3758 = vunpack.c.h.b16 %v3369
    %v3759 = vunpack.c.l.b16 %v3370
    %v3760 = vunpack.c.h.b16 %v3370
    %v3761 = vunpack.c.l.b16 %v3371
    %v3762 = vunpack.c.h.b16 %v3371
    %v3763 = vunpack.c.l.b16 %v3372
    %v3764 = vunpack.c.h.b16 %v3372
    %v3765 = vunpack.c.l.b16 %v3373
    %v3766 = vunpack.c.h.b16 %v3373
    %v3767 = vunpack.c.l.b16 %v3374
    %v3768 = vunpack.c.h.b16 %v3374
    %v3769 = vunpack.c.l.b16 %v3375
    %v3770 = vunpack.c.h.b16 %v3375
    %v3771 = vunpack.c.l.b16 %v3376
    %v3772 = vunpack.c.h.b16 %v3376
    %v3773 = vunpack.c.l.b16 %v3377
    %v3774 = vunpack.c.h.b16 %v3377
    %v3775 = vunpack.c.l.b16 %v3378
    %v3776 = vunpack.c.h.b16 %v3378
    %v3777 = vunpack.c.l.b16 %v3379
    %v3778 = vunpack.c.h.b16 %v3379
    %v3779 = vunpack.c.l.b16 %v3380
    %v3780 = vunpack.c.h.b16 %v3380
    %v3781 = vunpack.c.l.b16 %v3381
    %v3782 = vunpack.c.h.b16 %v3381
    %v3783 = vunpack.c.l.b16 %v3382
    %v3784 = vunpack.c.h.b16 %v3382
    %v3785 = vunpack.c.l.b16 %v3383
    %v3786 = vunpack.c.h.b16 %v3383
    %v3787 = vunpack.c.l.b16 %v3384
    %v3788 = vunpack.c.h.b16 %v3384
    %v3789 = vunpack.c.l.b16 %v3385
    %v3790 = vunpack.c.h.b16 %v3385
    %v3791 = vunpack.c.l.b16 %v3386
    %v3792 = vunpack.c.h.b16 %v3386
    %v3793 = vunpack.c.l.b16 %v3387
    %v3794 = vunpack.c.h.b16 %v3387
    %v3795 = vunpack.c.l.b16 %v3388
    %v3796 = vunpack.c.h.b16 %v3388
    %v3797 = vunpack.c.l.b16 %v3389
    %v3798 = vunpack.c.h.b16 %v3389
    %v3799 = vunpack.c.l.b16 %v3390
    %v3800 = vunpack.c.h.b16 %v3390
    %v3801 = vunpack.c.l.b16 %v3391
    %v3802 = vunpack.c.h.b16 %v3391
    %v3803 = vunpack.c.l.b16 %v3392
    %v3804 = vunpack.c.h.b16 %v3392
    %v3805 = vunpack.c.l.b16 %v3393
    %v3806 = vunpack.c.h.b16 %v3393
    %v3807 = vunpack.c.l.b16 %v3394
    %v3808 = vunpack.c.h.b16 %v3394
    %v3809 = vunpack.c.l.b16 %v3395
    %v3810 = vunpack.c.h.b16 %v3395
    %v3811 = vunpack.c.l.b16 %v3396
    %v3812 = vunpack.c.h.b16 %v3396
    %v3813 = vunpack.c.l.b16 %v3397
    %v3814 = vunpack.c.h.b16 %v3397
    %v3815 = vunpack.c.l.b16 %v3398
    %v3816 = vunpack.c.h.b16 %v3398
    %v3817 = vunpack.c.l.b16 %v3399
    %v3818 = vunpack.c.h.b16 %v3399
    %v3819 = vunpack.c.l.b16 %v3400
    %v3820 = vunpack.c.h.b16 %v3400
    %v3821 = vunpack.c.l.b16 %v3401
    %v3822 = vunpack.c.h.b16 %v3401
    %v3823 = vunpack.c.l.b16 %v3402
    %v3824 = vunpack.c.h.b16 %v3402
    %v3825 = vunpack.c.l.b16 %v3403
    %v3826 = vunpack.c.h.b16 %v3403
    %v3827 = vunpack.c.l.b16 %v3404
    %v3828 = vunpack.c.h.b16 %v3404
    %v3829 = vunpack.c.l.b16 %v3405
    %v3830 = vunpack.c.h.b16 %v3405
    %v3831 = vunpack.c.l.b16 %v3406
    %v3832 = vunpack.c.h.b16 %v3406
    %v3833 = vpack.c.b16 %v3585, %v3577
    %v3834 = vpack.c.b16 %v3586, %v3578
    %v3835 = vpack.c.b16 %v3587, %v3579
    %v3836 = vpack.c.b16 %v3588, %v3580
    %v3837 = vpack.c.b16 %v3589, %v3581
    %v3838 = vpack.c.b16 %v3590, %v3582
    %v3839 = vpack.c.b16 %v3591, %v3583
    %v3840 = vpack.c.b16 %v3592, %v3584
    %v3841 = vpack.c.b16 %v3601, %v3593
    %v3842 = vpack.c.b16 %v3602, %v3594
    %v3843 = vpack.c.b16 %v3603, %v3595
    %v3844 = vpack.c.b16 %v3604, %v3596
    %v3845 = vpack.c.b16 %v3605, %v3597
    %v3846 = vpack.c.b16 %v3606, %v3598
    %v3847 = vpack.c.b16 %v3607, %v3599
    %v3848 = vpack.c.b16 %v3608, %v3600
    %v3849 = vpack.c.b16 %v3617, %v3609
    %v3850 = vpack.c.b16 %v3618, %v3610
    %v3851 = vpack.c.b16 %v3619, %v3611
    %v3852 = vpack.c.b16 %v3620, %v3612
    %v3853 = vpack.c.b16 %v3621, %v3613
    %v3854 = vpack.c.b16 %v3622, %v3614
    %v3855 = vpack.c.b16 %v3623, %v3615
    %v3856 = vpack.c.b16 %v3624, %v3616
    %v3857 = vpack.c.b16 %v3633, %v3625
    %v3858 = vpack.c.b16 %v3634, %v3626
    %v3859 = vpack.c.b16 %v3635, %v3627
    %v3860 = vpack.c.b16 %v3636, %v3628
    %v3861 = vpack.c.b16 %v3637, %v3629
    %v3862 = vpack.c.b16 %v3638, %v3630
    %v3863 = vpack.c.b16 %v3639, %v3631
    %v3864 = vpack.c.b16 %v3640, %v3632
    %v3865 = vpack.c.b16 %v3649, %v3641
    %v3866 = vpack.c.b16 %v3650, %v3642
    %v3867 = vpack.c.b16 %v3651, %v3643
    %v3868 = vpack.c.b16 %v3652, %v3644
    %v3869 = vpack.c.b16 %v3653, %v3645
    %v3870 = vpack.c.b16 %v3654, %v3646
    %v3871 = vpack.c.b16 %v3655, %v3647
    %v3872 = vpack.c.b16 %v3656, %v3648
    %v3873 = vpack.c.b16 %v3665, %v3657
    %v3874 = vpack.c.b16 %v3666, %v3658
    %v3875 = vpack.c.b16 %v3667, %v3659
    %v3876 = vpack.c.b16 %v3668, %v3660
    %v3877 = vpack.c.b16 %v3669, %v3661
    %v3878 = vpack.c.b16 %v3670, %v3662
    %v3879 = vpack.c.b16 %v3671, %v3663
    %v3880 = vpack.c.b16 %v3672, %v3664
    %v3881 = vpack.c.b16 %v3681, %v3673
    %v3882 = vpack.c.b16 %v3682, %v3674
    %v3883 = vpack.c.b16 %v3683, %v3675
    %v3884 = vpack.c.b16 %v3684, %v3676
    %v3885 = vpack.c.b16 %v3685, %v3677
    %v3886 = vpack.c.b16 %v3686, %v3678
    %v3887 = vpack.c.b16 %v3687, %v3679
    %v3888 = vpack.c.b16 %v3688, %v3680
    %v3889 = vpack.c.b16 %v3697, %v3689
    %v3890 = vpack.c.b16 %v3698, %v3690
    %v3891 = vpack.c.b16 %v3699, %v3691
    %v3892 = vpack.c.b16 %v3700, %v3692
    %v3893 = vpack.c.b16 %v3701, %v3693
    %v3894 = vpack.c.b16 %v3702, %v3694
    %v3895 = vpack.c.b16 %v3703, %v3695
    %v3896 = vpack.c.b16 %v3704, %v3696
    %v3897 = vpack.c.b16 %v3713, %v3705
    %v3898 = vpack.c.b16 %v3714, %v3706
    %v3899 = vpack.c.b16 %v3715, %v3707
    %v3900 = vpack.c.b16 %v3716, %v3708
    %v3901 = vpack.c.b16 %v3717, %v3709
    %v3902 = vpack.c.b16 %v3718, %v3710
    %v3903 = vpack.c.b16 %v3719, %v3711
    %v3904 = vpack.c.b16 %v3720, %v3712
    %v3905 = vpack.c.b16 %v3729, %v3721
    %v3906 = vpack.c.b16 %v3730, %v3722
    %v3907 = vpack.c.b16 %v3731, %v3723
    %v3908 = vpack.c.b16 %v3732, %v3724
    %v3909 = vpack.c.b16 %v3733, %v3725
    %v3910 = vpack.c.b16 %v3734, %v3726
    %v3911 = vpack.c.b16 %v3735, %v3727
    %v3912 = vpack.c.b16 %v3736, %v3728
    %v3913 = vpack.c.b16 %v3745, %v3737
    %v3914 = vpack.c.b16 %v3746, %v3738
    %v3915 = vpack.c.b16 %v3747, %v3739
    %v3916 = vpack.c.b16 %v3748, %v3740
    %v3917 = vpack.c.b16 %v3749, %v3741
    %v3918 = vpack.c.b16 %v3750, %v3742
    %v3919 = vpack.c.b16 %v3751, %v3743
    %v3920 = vpack.c.b16 %v3752, %v3744
    %v3921 = vpack.c.b16 %v3761, %v3753
    %v3922 = vpack.c.b16 %v3762, %v3754
    %v3923 = vpack.c.b16 %v3763, %v3755
    %v3924 = vpack.c.b16 %v3764, %v3756
    %v3925 = vpack.c.b16 %v3765, %v3757
    %v3926 = vpack.c.b16 %v3766, %v3758
    %v3927 = vpack.c.b16 %v3767, %v3759
    %v3928 = vpack.c.b16 %v3768, %v3760
    %v3929 = vpack.c.b16 %v3777, %v3769
    %v3930 = vpack.c.b16 %v3778, %v3770
    %v3931 = vpack.c.b16 %v3779, %v3771
    %v3932 = vpack.c.b16 %v3780, %v3772
    %v3933 = vpack.c.b16 %v3781, %v3773
    %v3934 = vpack.c.b16 %v3782, %v3774
    %v3935 = vpack.c.b16 %v3783, %v3775
    %v3936 = vpack.c.b16 %v3784, %v3776
    %v3937 = vpack.c.b16 %v3793, %v3785
    %v3938 = vpack.c.b16 %v3794, %v3786
    %v3939 = vpack.c.b16 %v3795, %v3787
    %v3940 = vpack.c.b16 %v3796, %v3788
    %v3941 = vpack.c.b16 %v3797, %v3789
    %v3942 = vpack.c.b16 %v3798, %v3790
    %v3943 = vpack.c.b16 %v3799, %v3791
    %v3944 = vpack.c.b16 %v3800, %v3792
    %v3945 = vpack.c.b16 %v3809, %v3801
    %v3946 = vpack.c.b16 %v3810, %v3802
    %v3947 = vpack.c.b16 %v3811, %v3803
    %v3948 = vpack.c.b16 %v3812, %v3804
    %v3949 = vpack.c.b16 %v3813, %v3805
    %v3950 = vpack.c.b16 %v3814, %v3806
    %v3951 = vpack.c.b16 %v3815, %v3807
    %v3952 = vpack.c.b16 %v3816, %v3808
    %v3953 = vpack.c.b16 %v3825, %v3817
    %v3954 = vpack.c.b16 %v3826, %v3818
    %v3955 = vpack.c.b16 %v3827, %v3819
    %v3956 = vpack.c.b16 %v3828, %v3820
    %v3957 = vpack.c.b16 %v3829, %v3821
    %v3958 = vpack.c.b16 %v3830, %v3822
    %v3959 = vpack.c.b16 %v3831, %v3823
    %v3960 = vpack.c.b16 %v3832, %v3824
    %4089 = vmatprep.subr.bf16.mxu0 %v3890
    %4090 = vmatpush1.bf16.msra.mxu0 %v3889
    %4091 = vmatprep.subr.bf16.mxu0 %v3882
    %4092 = vmatpush1.bf16.msra.mxu0 %v3881
    %4093 = vmatprep.subr.bf16.mxu0 %v3874
    %4094 = vmatpush1.bf16.msra.mxu0 %v3873
    %4095 = vmatprep.subr.bf16.mxu0 %v3866
    %4096 = vmatpush1.bf16.msra.mxu0 %v3865
    %4097 = vmatprep.subr.bf16.mxu0 %v3858
    %4098 = vmatpush1.bf16.msra.mxu0 %v3857
    %4099 = vmatprep.subr.bf16.mxu0 %v3850
    %4100 = vmatpush1.bf16.msra.mxu0 %v3849
    %4101 = vmatprep.subr.bf16.mxu0 %v3842
    %4102 = vmatpush1.bf16.msra.mxu0 %v3841
    %4103 = vmatprep.subr.bf16.mxu0 %v3834
    %4104 = vmatpush1.bf16.msra.mxu0 %v3833
    %4105 = vmatprep.subr.bf16.mxu0 %v3954
    %4106 = vmatpush2.bf16.msra.mxu0 %v3953
    %4107 = vmatprep.subr.bf16.mxu0 %v3946
    %4108 = vmatpush2.bf16.msra.mxu0 %v3945
    %4109 = vmatprep.subr.bf16.mxu0 %v3938
    %4110 = vmatpush2.bf16.msra.mxu0 %v3937
    %4111 = vmatprep.subr.bf16.mxu0 %v3930
    %4112 = vmatpush2.bf16.msra.mxu0 %v3929
    %4113 = vmatprep.subr.bf16.mxu0 %v3922
    %4114 = vmatpush2.bf16.msra.mxu0 %v3921
    %4115 = vmatprep.subr.bf16.mxu0 %v3914
    %4116 = vmatpush2.bf16.msra.mxu0 %v3913
    %4117 = vmatprep.subr.bf16.mxu0 %v3906
    %4118 = vmatpush2.bf16.msra.mxu0 %v3905
    %4119 = vmatprep.subr.bf16.mxu0 %v3898
    %4120 = vmatpush2.bf16.msra.mxu0 %v3897
    %4121 = vmatprep.mubr.bf16.mxu0 %v3278
    %4122 = vmatmul.mubr.bf16.gmra.mxu0 %v3277
    %v4123 = vpop.f32.mrf.mxu0
    %v4124 = vadd.f32 %v3412, %v4123
    %v4125 = vpop.f32.mrf.mxu0
    %v4126 = vadd.f32 %v3416, %v4125
    %v4127 = vpop.f32.mrf.mxu0
    %v4128 = vadd.f32 %v3412, %v4127
    %v4129 = vpop.f32.mrf.mxu0
    %v4130 = vadd.f32 %v3416, %v4129
    %4131 = vdwg.mxu0
    %4132 = vmatprep.subr.bf16.mxu0 %v3892
    %4133 = vmatpush1.bf16.msra.mxu0 %v3891
    %4134 = vmatprep.subr.bf16.mxu0 %v3884
    %4135 = vmatpush1.bf16.msra.mxu0 %v3883
    %4136 = vmatprep.subr.bf16.mxu0 %v3876
    %4137 = vmatpush1.bf16.msra.mxu0 %v3875
    %4138 = vmatprep.subr.bf16.mxu0 %v3868
    %4139 = vmatpush1.bf16.msra.mxu0 %v3867
    %4140 = vmatprep.subr.bf16.mxu0 %v3860
    %4141 = vmatpush1.bf16.msra.mxu0 %v3859
    %4142 = vmatprep.subr.bf16.mxu0 %v3852
    %4143 = vmatpush1.bf16.msra.mxu0 %v3851
    %4144 = vmatprep.subr.bf16.mxu0 %v3844
    %4145 = vmatpush1.bf16.msra.mxu0 %v3843
    %4146 = vmatprep.subr.bf16.mxu0 %v3836
    %4147 = vmatpush1.bf16.msra.mxu0 %v3835
    %4148 = vmatprep.subr.bf16.mxu0 %v3956
    %4149 = vmatpush2.bf16.msra.mxu0 %v3955
    %4150 = vmatprep.subr.bf16.mxu0 %v3948
    %4151 = vmatpush2.bf16.msra.mxu0 %v3947
    %4152 = vmatprep.subr.bf16.mxu0 %v3940
    %4153 = vmatpush2.bf16.msra.mxu0 %v3939
    %4154 = vmatprep.subr.bf16.mxu0 %v3932
    %4155 = vmatpush2.bf16.msra.mxu0 %v3931
    %4156 = vmatprep.subr.bf16.mxu0 %v3924
    %4157 = vmatpush2.bf16.msra.mxu0 %v3923
    %4158 = vmatprep.subr.bf16.mxu0 %v3916
    %4159 = vmatpush2.bf16.msra.mxu0 %v3915
    %4160 = vmatprep.subr.bf16.mxu0 %v3908
    %4161 = vmatpush2.bf16.msra.mxu0 %v3907
    %4162 = vmatprep.subr.bf16.mxu0 %v3900
    %4163 = vmatpush2.bf16.msra.mxu0 %v3899
    %4164 = vmatprep.mubr.bf16.mxu0 %v3278
    %4165 = vmatmul.mubr.bf16.gmra.mxu0 %v3277
    %v4166 = vpop.f32.mrf.mxu0
    %v4167 = vadd.f32 %v3420, %v4166
    %v4168 = vpop.f32.mrf.mxu0
    %v4169 = vadd.f32 %v3424, %v4168
    %v4170 = vpop.f32.mrf.mxu0
    %v4171 = vadd.f32 %v3420, %v4170
    %v4172 = vpop.f32.mrf.mxu0
    %v4173 = vadd.f32 %v3424, %v4172
    %4174 = vdwg.mxu0
    %4175 = vmatprep.subr.bf16.mxu0 %v3894
    %4176 = vmatpush1.bf16.msra.mxu0 %v3893
    %4177 = vmatprep.subr.bf16.mxu0 %v3886
    %4178 = vmatpush1.bf16.msra.mxu0 %v3885
    %4179 = vmatprep.subr.bf16.mxu0 %v3878
    %4180 = vmatpush1.bf16.msra.mxu0 %v3877
    %4181 = vmatprep.subr.bf16.mxu0 %v3870
    %4182 = vmatpush1.bf16.msra.mxu0 %v3869
    %4183 = vmatprep.subr.bf16.mxu0 %v3862
    %4184 = vmatpush1.bf16.msra.mxu0 %v3861
    %4185 = vmatprep.subr.bf16.mxu0 %v3854
    %4186 = vmatpush1.bf16.msra.mxu0 %v3853
    %4187 = vmatprep.subr.bf16.mxu0 %v3846
    %4188 = vmatpush1.bf16.msra.mxu0 %v3845
    %4189 = vmatprep.subr.bf16.mxu0 %v3838
    %4190 = vmatpush1.bf16.msra.mxu0 %v3837
    %4191 = vmatprep.subr.bf16.mxu0 %v3958
    %4192 = vmatpush2.bf16.msra.mxu0 %v3957
    %4193 = vmatprep.subr.bf16.mxu0 %v3950
    %4194 = vmatpush2.bf16.msra.mxu0 %v3949
    %4195 = vmatprep.subr.bf16.mxu0 %v3942
    %4196 = vmatpush2.bf16.msra.mxu0 %v3941
    %4197 = vmatprep.subr.bf16.mxu0 %v3934
    %4198 = vmatpush2.bf16.msra.mxu0 %v3933
    %4199 = vmatprep.subr.bf16.mxu0 %v3926
    %4200 = vmatpush2.bf16.msra.mxu0 %v3925
    %4201 = vmatprep.subr.bf16.mxu0 %v3918
    %4202 = vmatpush2.bf16.msra.mxu0 %v3917
    %4203 = vmatprep.subr.bf16.mxu0 %v3910
    %4204 = vmatpush2.bf16.msra.mxu0 %v3909
    %4205 = vmatprep.subr.bf16.mxu0 %v3902
    %4206 = vmatpush2.bf16.msra.mxu0 %v3901
    %4207 = vmatprep.mubr.bf16.mxu0 %v3278
    %4208 = vmatmul.mubr.bf16.gmra.mxu0 %v3277
    %v4209 = vpop.f32.mrf.mxu0
    %v4210 = vadd.f32 %v3428, %v4209
    %v4211 = vpop.f32.mrf.mxu0
    %v4212 = vadd.f32 %v3432, %v4211
    %v4213 = vpop.f32.mrf.mxu0
    %v4214 = vadd.f32 %v3428, %v4213
    %v4215 = vpop.f32.mrf.mxu0
    %v4216 = vadd.f32 %v3432, %v4215
    %4217 = vdwg.mxu0
    %4218 = vmatprep.subr.bf16.mxu0 %v3896
    %4219 = vmatpush1.bf16.msra.mxu0 %v3895
    %4220 = vmatprep.subr.bf16.mxu0 %v3888
    %4221 = vmatpush1.bf16.msra.mxu0 %v3887
    %4222 = vmatprep.subr.bf16.mxu0 %v3880
    %4223 = vmatpush1.bf16.msra.mxu0 %v3879
    %4224 = vmatprep.subr.bf16.mxu0 %v3872
    %4225 = vmatpush1.bf16.msra.mxu0 %v3871
    %4226 = vmatprep.subr.bf16.mxu0 %v3864
    %4227 = vmatpush1.bf16.msra.mxu0 %v3863
    %4228 = vmatprep.subr.bf16.mxu0 %v3856
    %4229 = vmatpush1.bf16.msra.mxu0 %v3855
    %4230 = vmatprep.subr.bf16.mxu0 %v3848
    %4231 = vmatpush1.bf16.msra.mxu0 %v3847
    %4232 = vmatprep.subr.bf16.mxu0 %v3840
    %4233 = vmatpush1.bf16.msra.mxu0 %v3839
    %4234 = vmatprep.subr.bf16.mxu0 %v3960
    %4235 = vmatpush2.bf16.msra.mxu0 %v3959
    %4236 = vmatprep.subr.bf16.mxu0 %v3952
    %4237 = vmatpush2.bf16.msra.mxu0 %v3951
    %4238 = vmatprep.subr.bf16.mxu0 %v3944
    %4239 = vmatpush2.bf16.msra.mxu0 %v3943
    %4240 = vmatprep.subr.bf16.mxu0 %v3936
    %4241 = vmatpush2.bf16.msra.mxu0 %v3935
    %4242 = vmatprep.subr.bf16.mxu0 %v3928
    %4243 = vmatpush2.bf16.msra.mxu0 %v3927
    %4244 = vmatprep.subr.bf16.mxu0 %v3920
    %4245 = vmatpush2.bf16.msra.mxu0 %v3919
    %4246 = vmatprep.subr.bf16.mxu0 %v3912
    %4247 = vmatpush2.bf16.msra.mxu0 %v3911
    %4248 = vmatprep.subr.bf16.mxu0 %v3904
    %4249 = vmatpush2.bf16.msra.mxu0 %v3903
    %4250 = vmatprep.mubr.bf16.mxu0 %v3278
    %4251 = vmatmul.mubr.bf16.gmra.mxu0 %v3277
    %v4252 = vpop.f32.mrf.mxu0
    %v4253 = vadd.f32 %v3436, %v4252
    %v4254 = vpop.f32.mrf.mxu0
    %v4255 = vadd.f32 %v3440, %v4254
    %v4256 = vpop.f32.mrf.mxu0
    %v4257 = vadd.f32 %v3436, %v4256
    %v4258 = vpop.f32.mrf.mxu0
    %v4259 = vadd.f32 %v3440, %v4258
    %4260 = vdwg.mxu0
    %v4261 = vmul.f32 %v4124, 1.702
    %v4262 = vmul.f32 %v4126, 1.702
    %v4263 = vmul.f32 %v4167, 1.702
    %v4264 = vmul.f32 %v4169, 1.702
    %v4265 = vmul.f32 %v4210, 1.702
    %v4266 = vmul.f32 %v4212, 1.702
    %v4267 = vmul.f32 %v4253, 1.702
    %v4268 = vmul.f32 %v4255, 1.702
    %v4269 = vmul.f32 %v4128, 1.702
    %v4270 = vmul.f32 %v4130, 1.702
    %v4271 = vmul.f32 %v4171, 1.702
    %v4272 = vmul.f32 %v4173, 1.702
    %v4273 = vmul.f32 %v4214, 1.702
    %v4274 = vmul.f32 %v4216, 1.702
    %v4275 = vmul.f32 %v4257, 1.702
    %v4276 = vmul.f32 %v4259, 1.702
    %v4277 = vxor.u32 %v4261, 2147483648
    %v4278 = vxor.u32 %v4262, 2147483648
    %v4279 = vxor.u32 %v4263, 2147483648
    %v4280 = vxor.u32 %v4264, 2147483648
    %v4281 = vxor.u32 %v4265, 2147483648
    %v4282 = vxor.u32 %v4266, 2147483648
    %v4283 = vxor.u32 %v4267, 2147483648
    %v4284 = vxor.u32 %v4268, 2147483648
    %v4285 = vxor.u32 %v4269, 2147483648
    %v4286 = vxor.u32 %v4270, 2147483648
    %v4287 = vxor.u32 %v4271, 2147483648
    %v4288 = vxor.u32 %v4272, 2147483648
    %v4289 = vxor.u32 %v4273, 2147483648
    %v4290 = vxor.u32 %v4274, 2147483648
    %v4291 = vxor.u32 %v4275, 2147483648
    %v4292 = vxor.u32 %v4276, 2147483648
    %v4293 = vmul.f32 %v4277, 1.442695
    %v4294 = vpow.pop %v4293
    %v4295 = vmul.f32 %v4278, 1.442695
    %v4296 = vpow.pop %v4295
    %v4297 = vmul.f32 %v4279, 1.442695
    %v4298 = vpow.pop %v4297
    %v4299 = vmul.f32 %v4280, 1.442695
    %v4300 = vpow.pop %v4299
    %v4301 = vmul.f32 %v4281, 1.442695
    %v4302 = vpow.pop %v4301
    %v4303 = vmul.f32 %v4282, 1.442695
    %v4304 = vpow.pop %v4303
    %v4305 = vmul.f32 %v4283, 1.442695
    %v4306 = vpow.pop %v4305
    %v4307 = vmul.f32 %v4284, 1.442695
    %v4308 = vpow.pop %v4307
    %v4309 = vmul.f32 %v4285, 1.442695
    %v4310 = vpow.pop %v4309
    %v4311 = vmul.f32 %v4286, 1.442695
    %v4312 = vpow.pop %v4311
    %v4313 = vmul.f32 %v4287, 1.442695
    %v4314 = vpow.pop %v4313
    %v4315 = vmul.f32 %v4288, 1.442695
    %v4316 = vpow.pop %v4315
    %v4317 = vmul.f32 %v4289, 1.442695
    %v4318 = vpow.pop %v4317
    %v4319 = vmul.f32 %v4290, 1.442695
    %v4320 = vpow.pop %v4319
    %v4321 = vmul.f32 %v4291, 1.442695
    %v4322 = vpow.pop %v4321
    %v4323 = vmul.f32 %v4292, 1.442695
    %v4324 = vpow.pop %v4323
    %v4325 = vadd.f32 %v4294, 1.0
    %v4326 = vadd.f32 %v4296, 1.0
    %v4327 = vadd.f32 %v4298, 1.0
    %v4328 = vadd.f32 %v4300, 1.0
    %v4329 = vadd.f32 %v4302, 1.0
    %v4330 = vadd.f32 %v4304, 1.0
    %v4331 = vadd.f32 %v4306, 1.0
    %v4332 = vadd.f32 %v4308, 1.0
    %v4333 = vadd.f32 %v4310, 1.0
    %v4334 = vadd.f32 %v4312, 1.0
    %v4335 = vadd.f32 %v4314, 1.0
    %v4336 = vadd.f32 %v4316, 1.0
    %v4337 = vadd.f32 %v4318, 1.0
    %v4338 = vadd.f32 %v4320, 1.0
    %v4339 = vadd.f32 %v4322, 1.0
    %v4340 = vadd.f32 %v4324, 1.0
    %v4341 = vrcp.pop %v4325
    %v4342 = vmul.f32 1.0, %v4341
    %v4343 = vrcp.pop %v4326
    %v4344 = vmul.f32 1.0, %v4343
    %v4345 = vrcp.pop %v4327
    %v4346 = vmul.f32 1.0, %v4345
    %v4347 = vrcp.pop %v4328
    %v4348 = vmul.f32 1.0, %v4347
    %v4349 = vrcp.pop %v4329
    %v4350 = vmul.f32 1.0, %v4349
    %v4351 = vrcp.pop %v4330
    %v4352 = vmul.f32 1.0, %v4351
    %v4353 = vrcp.pop %v4331
    %v4354 = vmul.f32 1.0, %v4353
    %v4355 = vrcp.pop %v4332
    %v4356 = vmul.f32 1.0, %v4355
    %v4357 = vrcp.pop %v4333
    %v4358 = vmul.f32 1.0, %v4357
    %v4359 = vrcp.pop %v4334
    %v4360 = vmul.f32 1.0, %v4359
    %v4361 = vrcp.pop %v4335
    %v4362 = vmul.f32 1.0, %v4361
    %v4363 = vrcp.pop %v4336
    %v4364 = vmul.f32 1.0, %v4363
    %v4365 = vrcp.pop %v4337
    %v4366 = vmul.f32 1.0, %v4365
    %v4367 = vrcp.pop %v4338
    %v4368 = vmul.f32 1.0, %v4367
    %v4369 = vrcp.pop %v4339
    %v4370 = vmul.f32 1.0, %v4369
    %v4371 = vrcp.pop %v4340
    %v4372 = vmul.f32 1.0, %v4371
    %v4373 = vmul.f32 %v4124, %v4342
    %v4374 = vmul.f32 %v4126, %v4344
    %v4375 = vmul.f32 %v4167, %v4346
    %v4376 = vmul.f32 %v4169, %v4348
    %v4377 = vmul.f32 %v4210, %v4350
    %v4378 = vmul.f32 %v4212, %v4352
    %v4379 = vmul.f32 %v4253, %v4354
    %v4380 = vmul.f32 %v4255, %v4356
    %v4381 = vmul.f32 %v4128, %v4358
    %v4382 = vmul.f32 %v4130, %v4360
    %v4383 = vmul.f32 %v4171, %v4362
    %v4384 = vmul.f32 %v4173, %v4364
    %v4385 = vmul.f32 %v4214, %v4366
    %v4386 = vmul.f32 %v4216, %v4368
    %v4387 = vmul.f32 %v4257, %v4370
    %v4388 = vmul.f32 %v4259, %v4372
    %v4389 = vpack.c.bf16 %v4381, %v4373
    %v4390 = vpack.c.bf16 %v4382, %v4374
    %v4391 = vpack.c.bf16 %v4383, %v4375
    %v4392 = vpack.c.bf16 %v4384, %v4376
    %v4393 = vpack.c.bf16 %v4385, %v4377
    %v4394 = vpack.c.bf16 %v4386, %v4378
    %v4395 = vpack.c.bf16 %v4387, %v4379
    %v4396 = vpack.c.bf16 %v4388, %v4380
    %v4397 = vld [vmem:[#allocation13] sm:$0xff]
    %v4398 = vld [vmem:[#allocation13 + $0x8] sm:$0xff]
    %v4399 = vld [vmem:[#allocation13 + $0x10] sm:$0xff]
    %v4400 = vld [vmem:[#allocation13 + $0x18] sm:$0xff]
    %v4401 = vld [vmem:[#allocation13 + $0x20] sm:$0xff]
    %v4402 = vld [vmem:[#allocation13 + $0x28] sm:$0xff]
    %v4403 = vld [vmem:[#allocation13 + $0x30] sm:$0xff]
    %v4404 = vld [vmem:[#allocation13 + $0x38] sm:$0xff]
    %v4405 = vld [vmem:[#allocation13 + $0x40] sm:$0xff]
    %v4406 = vld [vmem:[#allocation13 + $0x48] sm:$0xff]
    %v4407 = vld [vmem:[#allocation13 + $0x50] sm:$0xff]
    %v4408 = vld [vmem:[#allocation13 + $0x58] sm:$0xff]
    %v4409 = vld [vmem:[#allocation13 + $0x60] sm:$0xff]
    %v4410 = vld [vmem:[#allocation13 + $0x68] sm:$0xff]
    %v4411 = vld [vmem:[#allocation13 + $0x70] sm:$0xff]
    %v4412 = vld [vmem:[#allocation13 + $0x78] sm:$0xff]
    %v4413 = vld [vmem:[#allocation13 + $0x80] sm:$0xff]
    %v4414 = vld [vmem:[#allocation13 + $0x88] sm:$0xff]
    %v4415 = vld [vmem:[#allocation13 + $0x90] sm:$0xff]
    %v4416 = vld [vmem:[#allocation13 + $0x98] sm:$0xff]
    %v4417 = vld [vmem:[#allocation13 + $0xa0] sm:$0xff]
    %v4418 = vld [vmem:[#allocation13 + $0xa8] sm:$0xff]
    %v4419 = vld [vmem:[#allocation13 + $0xb0] sm:$0xff]
    %v4420 = vld [vmem:[#allocation13 + $0xb8] sm:$0xff]
    %v4421 = vld [vmem:[#allocation13 + $0xc0] sm:$0xff]
    %v4422 = vld [vmem:[#allocation13 + $0xc8] sm:$0xff]
    %v4423 = vld [vmem:[#allocation13 + $0xd0] sm:$0xff]
    %v4424 = vld [vmem:[#allocation13 + $0xd8] sm:$0xff]
    %v4425 = vld [vmem:[#allocation13 + $0xe0] sm:$0xff]
    %v4426 = vld [vmem:[#allocation13 + $0xe8] sm:$0xff]
    %v4427 = vld [vmem:[#allocation13 + $0xf0] sm:$0xff]
    %v4428 = vld [vmem:[#allocation13 + $0xf8] sm:$0xff]
    %v4429 = vld [vmem:[#allocation13 + $0x100] sm:$0xff]
    %v4430 = vld [vmem:[#allocation13 + $0x108] sm:$0xff]
    %v4431 = vld [vmem:[#allocation13 + $0x110] sm:$0xff]
    %v4432 = vld [vmem:[#allocation13 + $0x118] sm:$0xff]
    %v4433 = vld [vmem:[#allocation13 + $0x120] sm:$0xff]
    %v4434 = vld [vmem:[#allocation13 + $0x128] sm:$0xff]
    %v4435 = vld [vmem:[#allocation13 + $0x130] sm:$0xff]
    %v4436 = vld [vmem:[#allocation13 + $0x138] sm:$0xff]
    %v4437 = vld [vmem:[#allocation13 + $0x140] sm:$0xff]
    %v4438 = vld [vmem:[#allocation13 + $0x148] sm:$0xff]
    %v4439 = vld [vmem:[#allocation13 + $0x150] sm:$0xff]
    %v4440 = vld [vmem:[#allocation13 + $0x158] sm:$0xff]
    %v4441 = vld [vmem:[#allocation13 + $0x160] sm:$0xff]
    %v4442 = vld [vmem:[#allocation13 + $0x168] sm:$0xff]
    %v4443 = vld [vmem:[#allocation13 + $0x170] sm:$0xff]
    %v4444 = vld [vmem:[#allocation13 + $0x178] sm:$0xff]
    %v4445 = vld [vmem:[#allocation13 + $0x180] sm:$0xff]
    %v4446 = vld [vmem:[#allocation13 + $0x188] sm:$0xff]
    %v4447 = vld [vmem:[#allocation13 + $0x190] sm:$0xff]
    %v4448 = vld [vmem:[#allocation13 + $0x198] sm:$0xff]
    %v4449 = vld [vmem:[#allocation13 + $0x1a0] sm:$0xff]
    %v4450 = vld [vmem:[#allocation13 + $0x1a8] sm:$0xff]
    %v4451 = vld [vmem:[#allocation13 + $0x1b0] sm:$0xff]
    %v4452 = vld [vmem:[#allocation13 + $0x1b8] sm:$0xff]
    %v4453 = vld [vmem:[#allocation13 + $0x1c0] sm:$0xff]
    %v4454 = vld [vmem:[#allocation13 + $0x1c8] sm:$0xff]
    %v4455 = vld [vmem:[#allocation13 + $0x1d0] sm:$0xff]
    %v4456 = vld [vmem:[#allocation13 + $0x1d8] sm:$0xff]
    %v4457 = vld [vmem:[#allocation13 + $0x1e0] sm:$0xff]
    %v4458 = vld [vmem:[#allocation13 + $0x1e8] sm:$0xff]
    %v4459 = vld [vmem:[#allocation13 + $0x1f0] sm:$0xff]
    %v4460 = vld [vmem:[#allocation13 + $0x1f8] sm:$0xff]
    %v4461 = vld [vmem:[#allocation13 + $0x200] sm:$0xff]
    %v4462 = vld [vmem:[#allocation13 + $0x208] sm:$0xff]
    %v4463 = vld [vmem:[#allocation13 + $0x210] sm:$0xff]
    %v4464 = vld [vmem:[#allocation13 + $0x218] sm:$0xff]
    %v4465 = vld [vmem:[#allocation13 + $0x220] sm:$0xff]
    %v4466 = vld [vmem:[#allocation13 + $0x228] sm:$0xff]
    %v4467 = vld [vmem:[#allocation13 + $0x230] sm:$0xff]
    %v4468 = vld [vmem:[#allocation13 + $0x238] sm:$0xff]
    %v4469 = vld [vmem:[#allocation13 + $0x240] sm:$0xff]
    %v4470 = vld [vmem:[#allocation13 + $0x248] sm:$0xff]
    %v4471 = vld [vmem:[#allocation13 + $0x250] sm:$0xff]
    %v4472 = vld [vmem:[#allocation13 + $0x258] sm:$0xff]
    %v4473 = vld [vmem:[#allocation13 + $0x260] sm:$0xff]
    %v4474 = vld [vmem:[#allocation13 + $0x268] sm:$0xff]
    %v4475 = vld [vmem:[#allocation13 + $0x270] sm:$0xff]
    %v4476 = vld [vmem:[#allocation13 + $0x278] sm:$0xff]
    %v4477 = vld [vmem:[#allocation13 + $0x280] sm:$0xff]
    %v4478 = vld [vmem:[#allocation13 + $0x288] sm:$0xff]
    %v4479 = vld [vmem:[#allocation13 + $0x290] sm:$0xff]
    %v4480 = vld [vmem:[#allocation13 + $0x298] sm:$0xff]
    %v4481 = vld [vmem:[#allocation13 + $0x2a0] sm:$0xff]
    %v4482 = vld [vmem:[#allocation13 + $0x2a8] sm:$0xff]
    %v4483 = vld [vmem:[#allocation13 + $0x2b0] sm:$0xff]
    %v4484 = vld [vmem:[#allocation13 + $0x2b8] sm:$0xff]
    %v4485 = vld [vmem:[#allocation13 + $0x2c0] sm:$0xff]
    %v4486 = vld [vmem:[#allocation13 + $0x2c8] sm:$0xff]
    %v4487 = vld [vmem:[#allocation13 + $0x2d0] sm:$0xff]
    %v4488 = vld [vmem:[#allocation13 + $0x2d8] sm:$0xff]
    %v4489 = vld [vmem:[#allocation13 + $0x2e0] sm:$0xff]
    %v4490 = vld [vmem:[#allocation13 + $0x2e8] sm:$0xff]
    %v4491 = vld [vmem:[#allocation13 + $0x2f0] sm:$0xff]
    %v4492 = vld [vmem:[#allocation13 + $0x2f8] sm:$0xff]
    %v4493 = vld [vmem:[#allocation13 + $0x300] sm:$0xff]
    %v4494 = vld [vmem:[#allocation13 + $0x308] sm:$0xff]
    %v4495 = vld [vmem:[#allocation13 + $0x310] sm:$0xff]
    %v4496 = vld [vmem:[#allocation13 + $0x318] sm:$0xff]
    %v4497 = vld [vmem:[#allocation13 + $0x320] sm:$0xff]
    %v4498 = vld [vmem:[#allocation13 + $0x328] sm:$0xff]
    %v4499 = vld [vmem:[#allocation13 + $0x330] sm:$0xff]
    %v4500 = vld [vmem:[#allocation13 + $0x338] sm:$0xff]
    %v4501 = vld [vmem:[#allocation13 + $0x340] sm:$0xff]
    %v4502 = vld [vmem:[#allocation13 + $0x348] sm:$0xff]
    %v4503 = vld [vmem:[#allocation13 + $0x350] sm:$0xff]
    %v4504 = vld [vmem:[#allocation13 + $0x358] sm:$0xff]
    %v4505 = vld [vmem:[#allocation13 + $0x360] sm:$0xff]
    %v4506 = vld [vmem:[#allocation13 + $0x368] sm:$0xff]
    %v4507 = vld [vmem:[#allocation13 + $0x370] sm:$0xff]
    %v4508 = vld [vmem:[#allocation13 + $0x378] sm:$0xff]
    %v4509 = vld [vmem:[#allocation13 + $0x380] sm:$0xff]
    %v4510 = vld [vmem:[#allocation13 + $0x388] sm:$0xff]
    %v4511 = vld [vmem:[#allocation13 + $0x390] sm:$0xff]
    %v4512 = vld [vmem:[#allocation13 + $0x398] sm:$0xff]
    %v4513 = vld [vmem:[#allocation13 + $0x3a0] sm:$0xff]
    %v4514 = vld [vmem:[#allocation13 + $0x3a8] sm:$0xff]
    %v4515 = vld [vmem:[#allocation13 + $0x3b0] sm:$0xff]
    %v4516 = vld [vmem:[#allocation13 + $0x3b8] sm:$0xff]
    %v4517 = vld [vmem:[#allocation13 + $0x3c0] sm:$0xff]
    %v4518 = vld [vmem:[#allocation13 + $0x3c8] sm:$0xff]
    %v4519 = vld [vmem:[#allocation13 + $0x3d0] sm:$0xff]
    %v4520 = vld [vmem:[#allocation13 + $0x3d8] sm:$0xff]
    %v4521 = vld [vmem:[#allocation13 + $0x3e0] sm:$0xff]
    %v4522 = vld [vmem:[#allocation13 + $0x3e8] sm:$0xff]
    %v4523 = vld [vmem:[#allocation13 + $0x3f0] sm:$0xff]
    %v4524 = vld [vmem:[#allocation13 + $0x3f8] sm:$0xff]
    %v4525 = vld [vmem:[%s12] sm:$0x3]
    %v4527 = vlaneseq
    %v4528 = vshrl.u32 %v4527, 7
    %v4529 = vsub.s32 0, %v4528
    %v4530 = vrot.slane %v4525, %v4529
    %v4531 = vlaneseq
    %v4532 = vshrl.u32 %v4531, 7
    %v4533 = vsub.s32 1, %v4532
    %v4534 = vrot.slane %v4525, %v4533
    %v4665 = vunpack.c.l.b16 %v4397
    %v4666 = vunpack.c.h.b16 %v4397
    %v4667 = vunpack.c.l.b16 %v4398
    %v4668 = vunpack.c.h.b16 %v4398
    %v4669 = vunpack.c.l.b16 %v4399
    %v4670 = vunpack.c.h.b16 %v4399
    %v4671 = vunpack.c.l.b16 %v4400
    %v4672 = vunpack.c.h.b16 %v4400
    %v4673 = vunpack.c.l.b16 %v4401
    %v4674 = vunpack.c.h.b16 %v4401
    %v4675 = vunpack.c.l.b16 %v4402
    %v4676 = vunpack.c.h.b16 %v4402
    %v4677 = vunpack.c.l.b16 %v4403
    %v4678 = vunpack.c.h.b16 %v4403
    %v4679 = vunpack.c.l.b16 %v4404
    %v4680 = vunpack.c.h.b16 %v4404
    %v4681 = vunpack.c.l.b16 %v4405
    %v4682 = vunpack.c.h.b16 %v4405
    %v4683 = vunpack.c.l.b16 %v4406
    %v4684 = vunpack.c.h.b16 %v4406
    %v4685 = vunpack.c.l.b16 %v4407
    %v4686 = vunpack.c.h.b16 %v4407
    %v4687 = vunpack.c.l.b16 %v4408
    %v4688 = vunpack.c.h.b16 %v4408
    %v4689 = vunpack.c.l.b16 %v4409
    %v4690 = vunpack.c.h.b16 %v4409
    %v4691 = vunpack.c.l.b16 %v4410
    %v4692 = vunpack.c.h.b16 %v4410
    %v4693 = vunpack.c.l.b16 %v4411
    %v4694 = vunpack.c.h.b16 %v4411
    %v4695 = vunpack.c.l.b16 %v4412
    %v4696 = vunpack.c.h.b16 %v4412
    %v4697 = vunpack.c.l.b16 %v4413
    %v4698 = vunpack.c.h.b16 %v4413
    %v4699 = vunpack.c.l.b16 %v4414
    %v4700 = vunpack.c.h.b16 %v4414
    %v4701 = vunpack.c.l.b16 %v4415
    %v4702 = vunpack.c.h.b16 %v4415
    %v4703 = vunpack.c.l.b16 %v4416
    %v4704 = vunpack.c.h.b16 %v4416
    %v4705 = vunpack.c.l.b16 %v4417
    %v4706 = vunpack.c.h.b16 %v4417
    %v4707 = vunpack.c.l.b16 %v4418
    %v4708 = vunpack.c.h.b16 %v4418
    %v4709 = vunpack.c.l.b16 %v4419
    %v4710 = vunpack.c.h.b16 %v4419
    %v4711 = vunpack.c.l.b16 %v4420
    %v4712 = vunpack.c.h.b16 %v4420
    %v4713 = vunpack.c.l.b16 %v4421
    %v4714 = vunpack.c.h.b16 %v4421
    %v4715 = vunpack.c.l.b16 %v4422
    %v4716 = vunpack.c.h.b16 %v4422
    %v4717 = vunpack.c.l.b16 %v4423
    %v4718 = vunpack.c.h.b16 %v4423
    %v4719 = vunpack.c.l.b16 %v4424
    %v4720 = vunpack.c.h.b16 %v4424
    %v4721 = vunpack.c.l.b16 %v4425
    %v4722 = vunpack.c.h.b16 %v4425
    %v4723 = vunpack.c.l.b16 %v4426
    %v4724 = vunpack.c.h.b16 %v4426
    %v4725 = vunpack.c.l.b16 %v4427
    %v4726 = vunpack.c.h.b16 %v4427
    %v4727 = vunpack.c.l.b16 %v4428
    %v4728 = vunpack.c.h.b16 %v4428
    %v4729 = vunpack.c.l.b16 %v4429
    %v4730 = vunpack.c.h.b16 %v4429
    %v4731 = vunpack.c.l.b16 %v4430
    %v4732 = vunpack.c.h.b16 %v4430
    %v4733 = vunpack.c.l.b16 %v4431
    %v4734 = vunpack.c.h.b16 %v4431
    %v4735 = vunpack.c.l.b16 %v4432
    %v4736 = vunpack.c.h.b16 %v4432
    %v4737 = vunpack.c.l.b16 %v4433
    %v4738 = vunpack.c.h.b16 %v4433
    %v4739 = vunpack.c.l.b16 %v4434
    %v4740 = vunpack.c.h.b16 %v4434
    %v4741 = vunpack.c.l.b16 %v4435
    %v4742 = vunpack.c.h.b16 %v4435
    %v4743 = vunpack.c.l.b16 %v4436
    %v4744 = vunpack.c.h.b16 %v4436
    %v4745 = vunpack.c.l.b16 %v4437
    %v4746 = vunpack.c.h.b16 %v4437
    %v4747 = vunpack.c.l.b16 %v4438
    %v4748 = vunpack.c.h.b16 %v4438
    %v4749 = vunpack.c.l.b16 %v4439
    %v4750 = vunpack.c.h.b16 %v4439
    %v4751 = vunpack.c.l.b16 %v4440
    %v4752 = vunpack.c.h.b16 %v4440
    %v4753 = vunpack.c.l.b16 %v4441
    %v4754 = vunpack.c.h.b16 %v4441
    %v4755 = vunpack.c.l.b16 %v4442
    %v4756 = vunpack.c.h.b16 %v4442
    %v4757 = vunpack.c.l.b16 %v4443
    %v4758 = vunpack.c.h.b16 %v4443
    %v4759 = vunpack.c.l.b16 %v4444
    %v4760 = vunpack.c.h.b16 %v4444
    %v4761 = vunpack.c.l.b16 %v4445
    %v4762 = vunpack.c.h.b16 %v4445
    %v4763 = vunpack.c.l.b16 %v4446
    %v4764 = vunpack.c.h.b16 %v4446
    %v4765 = vunpack.c.l.b16 %v4447
    %v4766 = vunpack.c.h.b16 %v4447
    %v4767 = vunpack.c.l.b16 %v4448
    %v4768 = vunpack.c.h.b16 %v4448
    %v4769 = vunpack.c.l.b16 %v4449
    %v4770 = vunpack.c.h.b16 %v4449
    %v4771 = vunpack.c.l.b16 %v4450
    %v4772 = vunpack.c.h.b16 %v4450
    %v4773 = vunpack.c.l.b16 %v4451
    %v4774 = vunpack.c.h.b16 %v4451
    %v4775 = vunpack.c.l.b16 %v4452
    %v4776 = vunpack.c.h.b16 %v4452
    %v4777 = vunpack.c.l.b16 %v4453
    %v4778 = vunpack.c.h.b16 %v4453
    %v4779 = vunpack.c.l.b16 %v4454
    %v4780 = vunpack.c.h.b16 %v4454
    %v4781 = vunpack.c.l.b16 %v4455
    %v4782 = vunpack.c.h.b16 %v4455
    %v4783 = vunpack.c.l.b16 %v4456
    %v4784 = vunpack.c.h.b16 %v4456
    %v4785 = vunpack.c.l.b16 %v4457
    %v4786 = vunpack.c.h.b16 %v4457
    %v4787 = vunpack.c.l.b16 %v4458
    %v4788 = vunpack.c.h.b16 %v4458
    %v4789 = vunpack.c.l.b16 %v4459
    %v4790 = vunpack.c.h.b16 %v4459
    %v4791 = vunpack.c.l.b16 %v4460
    %v4792 = vunpack.c.h.b16 %v4460
    %v4793 = vunpack.c.l.b16 %v4461
    %v4794 = vunpack.c.h.b16 %v4461
    %v4795 = vunpack.c.l.b16 %v4462
    %v4796 = vunpack.c.h.b16 %v4462
    %v4797 = vunpack.c.l.b16 %v4463
    %v4798 = vunpack.c.h.b16 %v4463
    %v4799 = vunpack.c.l.b16 %v4464
    %v4800 = vunpack.c.h.b16 %v4464
    %v4801 = vunpack.c.l.b16 %v4465
    %v4802 = vunpack.c.h.b16 %v4465
    %v4803 = vunpack.c.l.b16 %v4466
    %v4804 = vunpack.c.h.b16 %v4466
    %v4805 = vunpack.c.l.b16 %v4467
    %v4806 = vunpack.c.h.b16 %v4467
    %v4807 = vunpack.c.l.b16 %v4468
    %v4808 = vunpack.c.h.b16 %v4468
    %v4809 = vunpack.c.l.b16 %v4469
    %v4810 = vunpack.c.h.b16 %v4469
    %v4811 = vunpack.c.l.b16 %v4470
    %v4812 = vunpack.c.h.b16 %v4470
    %v4813 = vunpack.c.l.b16 %v4471
    %v4814 = vunpack.c.h.b16 %v4471
    %v4815 = vunpack.c.l.b16 %v4472
    %v4816 = vunpack.c.h.b16 %v4472
    %v4817 = vunpack.c.l.b16 %v4473
    %v4818 = vunpack.c.h.b16 %v4473
    %v4819 = vunpack.c.l.b16 %v4474
    %v4820 = vunpack.c.h.b16 %v4474
    %v4821 = vunpack.c.l.b16 %v4475
    %v4822 = vunpack.c.h.b16 %v4475
    %v4823 = vunpack.c.l.b16 %v4476
    %v4824 = vunpack.c.h.b16 %v4476
    %v4825 = vunpack.c.l.b16 %v4477
    %v4826 = vunpack.c.h.b16 %v4477
    %v4827 = vunpack.c.l.b16 %v4478
    %v4828 = vunpack.c.h.b16 %v4478
    %v4829 = vunpack.c.l.b16 %v4479
    %v4830 = vunpack.c.h.b16 %v4479
    %v4831 = vunpack.c.l.b16 %v4480
    %v4832 = vunpack.c.h.b16 %v4480
    %v4833 = vunpack.c.l.b16 %v4481
    %v4834 = vunpack.c.h.b16 %v4481
    %v4835 = vunpack.c.l.b16 %v4482
    %v4836 = vunpack.c.h.b16 %v4482
    %v4837 = vunpack.c.l.b16 %v4483
    %v4838 = vunpack.c.h.b16 %v4483
    %v4839 = vunpack.c.l.b16 %v4484
    %v4840 = vunpack.c.h.b16 %v4484
    %v4841 = vunpack.c.l.b16 %v4485
    %v4842 = vunpack.c.h.b16 %v4485
    %v4843 = vunpack.c.l.b16 %v4486
    %v4844 = vunpack.c.h.b16 %v4486
    %v4845 = vunpack.c.l.b16 %v4487
    %v4846 = vunpack.c.h.b16 %v4487
    %v4847 = vunpack.c.l.b16 %v4488
    %v4848 = vunpack.c.h.b16 %v4488
    %v4849 = vunpack.c.l.b16 %v4489
    %v4850 = vunpack.c.h.b16 %v4489
    %v4851 = vunpack.c.l.b16 %v4490
    %v4852 = vunpack.c.h.b16 %v4490
    %v4853 = vunpack.c.l.b16 %v4491
    %v4854 = vunpack.c.h.b16 %v4491
    %v4855 = vunpack.c.l.b16 %v4492
    %v4856 = vunpack.c.h.b16 %v4492
    %v4857 = vunpack.c.l.b16 %v4493
    %v4858 = vunpack.c.h.b16 %v4493
    %v4859 = vunpack.c.l.b16 %v4494
    %v4860 = vunpack.c.h.b16 %v4494
    %v4861 = vunpack.c.l.b16 %v4495
    %v4862 = vunpack.c.h.b16 %v4495
    %v4863 = vunpack.c.l.b16 %v4496
    %v4864 = vunpack.c.h.b16 %v4496
    %v4865 = vunpack.c.l.b16 %v4497
    %v4866 = vunpack.c.h.b16 %v4497
    %v4867 = vunpack.c.l.b16 %v4498
    %v4868 = vunpack.c.h.b16 %v4498
    %v4869 = vunpack.c.l.b16 %v4499
    %v4870 = vunpack.c.h.b16 %v4499
    %v4871 = vunpack.c.l.b16 %v4500
    %v4872 = vunpack.c.h.b16 %v4500
    %v4873 = vunpack.c.l.b16 %v4501
    %v4874 = vunpack.c.h.b16 %v4501
    %v4875 = vunpack.c.l.b16 %v4502
    %v4876 = vunpack.c.h.b16 %v4502
    %v4877 = vunpack.c.l.b16 %v4503
    %v4878 = vunpack.c.h.b16 %v4503
    %v4879 = vunpack.c.l.b16 %v4504
    %v4880 = vunpack.c.h.b16 %v4504
    %v4881 = vunpack.c.l.b16 %v4505
    %v4882 = vunpack.c.h.b16 %v4505
    %v4883 = vunpack.c.l.b16 %v4506
    %v4884 = vunpack.c.h.b16 %v4506
    %v4885 = vunpack.c.l.b16 %v4507
    %v4886 = vunpack.c.h.b16 %v4507
    %v4887 = vunpack.c.l.b16 %v4508
    %v4888 = vunpack.c.h.b16 %v4508
    %v4889 = vunpack.c.l.b16 %v4509
    %v4890 = vunpack.c.h.b16 %v4509
    %v4891 = vunpack.c.l.b16 %v4510
    %v4892 = vunpack.c.h.b16 %v4510
    %v4893 = vunpack.c.l.b16 %v4511
    %v4894 = vunpack.c.h.b16 %v4511
    %v4895 = vunpack.c.l.b16 %v4512
    %v4896 = vunpack.c.h.b16 %v4512
    %v4897 = vunpack.c.l.b16 %v4513
    %v4898 = vunpack.c.h.b16 %v4513
    %v4899 = vunpack.c.l.b16 %v4514
    %v4900 = vunpack.c.h.b16 %v4514
    %v4901 = vunpack.c.l.b16 %v4515
    %v4902 = vunpack.c.h.b16 %v4515
    %v4903 = vunpack.c.l.b16 %v4516
    %v4904 = vunpack.c.h.b16 %v4516
    %v4905 = vunpack.c.l.b16 %v4517
    %v4906 = vunpack.c.h.b16 %v4517
    %v4907 = vunpack.c.l.b16 %v4518
    %v4908 = vunpack.c.h.b16 %v4518
    %v4909 = vunpack.c.l.b16 %v4519
    %v4910 = vunpack.c.h.b16 %v4519
    %v4911 = vunpack.c.l.b16 %v4520
    %v4912 = vunpack.c.h.b16 %v4520
    %v4913 = vunpack.c.l.b16 %v4521
    %v4914 = vunpack.c.h.b16 %v4521
    %v4915 = vunpack.c.l.b16 %v4522
    %v4916 = vunpack.c.h.b16 %v4522
    %v4917 = vunpack.c.l.b16 %v4523
    %v4918 = vunpack.c.h.b16 %v4523
    %v4919 = vunpack.c.l.b16 %v4524
    %v4920 = vunpack.c.h.b16 %v4524
    %v4921 = vpack.c.b16 %v4667, %v4665
    %v4922 = vpack.c.b16 %v4668, %v4666
    %v4923 = vpack.c.b16 %v4671, %v4669
    %v4924 = vpack.c.b16 %v4672, %v4670
    %v4925 = vpack.c.b16 %v4675, %v4673
    %v4926 = vpack.c.b16 %v4676, %v4674
    %v4927 = vpack.c.b16 %v4679, %v4677
    %v4928 = vpack.c.b16 %v4680, %v4678
    %v4929 = vpack.c.b16 %v4683, %v4681
    %v4930 = vpack.c.b16 %v4684, %v4682
    %v4931 = vpack.c.b16 %v4687, %v4685
    %v4932 = vpack.c.b16 %v4688, %v4686
    %v4933 = vpack.c.b16 %v4691, %v4689
    %v4934 = vpack.c.b16 %v4692, %v4690
    %v4935 = vpack.c.b16 %v4695, %v4693
    %v4936 = vpack.c.b16 %v4696, %v4694
    %v4937 = vpack.c.b16 %v4699, %v4697
    %v4938 = vpack.c.b16 %v4700, %v4698
    %v4939 = vpack.c.b16 %v4703, %v4701
    %v4940 = vpack.c.b16 %v4704, %v4702
    %v4941 = vpack.c.b16 %v4707, %v4705
    %v4942 = vpack.c.b16 %v4708, %v4706
    %v4943 = vpack.c.b16 %v4711, %v4709
    %v4944 = vpack.c.b16 %v4712, %v4710
    %v4945 = vpack.c.b16 %v4715, %v4713
    %v4946 = vpack.c.b16 %v4716, %v4714
    %v4947 = vpack.c.b16 %v4719, %v4717
    %v4948 = vpack.c.b16 %v4720, %v4718
    %v4949 = vpack.c.b16 %v4723, %v4721
    %v4950 = vpack.c.b16 %v4724, %v4722
    %v4951 = vpack.c.b16 %v4727, %v4725
    %v4952 = vpack.c.b16 %v4728, %v4726
    %v4953 = vpack.c.b16 %v4731, %v4729
    %v4954 = vpack.c.b16 %v4732, %v4730
    %v4955 = vpack.c.b16 %v4735, %v4733
    %v4956 = vpack.c.b16 %v4736, %v4734
    %v4957 = vpack.c.b16 %v4739, %v4737
    %v4958 = vpack.c.b16 %v4740, %v4738
    %v4959 = vpack.c.b16 %v4743, %v4741
    %v4960 = vpack.c.b16 %v4744, %v4742
    %v4961 = vpack.c.b16 %v4747, %v4745
    %v4962 = vpack.c.b16 %v4748, %v4746
    %v4963 = vpack.c.b16 %v4751, %v4749
    %v4964 = vpack.c.b16 %v4752, %v4750
    %v4965 = vpack.c.b16 %v4755, %v4753
    %v4966 = vpack.c.b16 %v4756, %v4754
    %v4967 = vpack.c.b16 %v4759, %v4757
    %v4968 = vpack.c.b16 %v4760, %v4758
    %v4969 = vpack.c.b16 %v4763, %v4761
    %v4970 = vpack.c.b16 %v4764, %v4762
    %v4971 = vpack.c.b16 %v4767, %v4765
    %v4972 = vpack.c.b16 %v4768, %v4766
    %v4973 = vpack.c.b16 %v4771, %v4769
    %v4974 = vpack.c.b16 %v4772, %v4770
    %v4975 = vpack.c.b16 %v4775, %v4773
    %v4976 = vpack.c.b16 %v4776, %v4774
    %v4977 = vpack.c.b16 %v4779, %v4777
    %v4978 = vpack.c.b16 %v4780, %v4778
    %v4979 = vpack.c.b16 %v4783, %v4781
    %v4980 = vpack.c.b16 %v4784, %v4782
    %v4981 = vpack.c.b16 %v4787, %v4785
    %v4982 = vpack.c.b16 %v4788, %v4786
    %v4983 = vpack.c.b16 %v4791, %v4789
    %v4984 = vpack.c.b16 %v4792, %v4790
    %v4985 = vpack.c.b16 %v4795, %v4793
    %v4986 = vpack.c.b16 %v4796, %v4794
    %v4987 = vpack.c.b16 %v4799, %v4797
    %v4988 = vpack.c.b16 %v4800, %v4798
    %v4989 = vpack.c.b16 %v4803, %v4801
    %v4990 = vpack.c.b16 %v4804, %v4802
    %v4991 = vpack.c.b16 %v4807, %v4805
    %v4992 = vpack.c.b16 %v4808, %v4806
    %v4993 = vpack.c.b16 %v4811, %v4809
    %v4994 = vpack.c.b16 %v4812, %v4810
    %v4995 = vpack.c.b16 %v4815, %v4813
    %v4996 = vpack.c.b16 %v4816, %v4814
    %v4997 = vpack.c.b16 %v4819, %v4817
    %v4998 = vpack.c.b16 %v4820, %v4818
    %v4999 = vpack.c.b16 %v4823, %v4821
    %v5000 = vpack.c.b16 %v4824, %v4822
    %v5001 = vpack.c.b16 %v4827, %v4825
    %v5002 = vpack.c.b16 %v4828, %v4826
    %v5003 = vpack.c.b16 %v4831, %v4829
    %v5004 = vpack.c.b16 %v4832, %v4830
    %v5005 = vpack.c.b16 %v4835, %v4833
    %v5006 = vpack.c.b16 %v4836, %v4834
    %v5007 = vpack.c.b16 %v4839, %v4837
    %v5008 = vpack.c.b16 %v4840, %v4838
    %v5009 = vpack.c.b16 %v4843, %v4841
    %v5010 = vpack.c.b16 %v4844, %v4842
    %v5011 = vpack.c.b16 %v4847, %v4845
    %v5012 = vpack.c.b16 %v4848, %v4846
    %v5013 = vpack.c.b16 %v4851, %v4849
    %v5014 = vpack.c.b16 %v4852, %v4850
    %v5015 = vpack.c.b16 %v4855, %v4853
    %v5016 = vpack.c.b16 %v4856, %v4854
    %v5017 = vpack.c.b16 %v4859, %v4857
    %v5018 = vpack.c.b16 %v4860, %v4858
    %v5019 = vpack.c.b16 %v4863, %v4861
    %v5020 = vpack.c.b16 %v4864, %v4862
    %v5021 = vpack.c.b16 %v4867, %v4865
    %v5022 = vpack.c.b16 %v4868, %v4866
    %v5023 = vpack.c.b16 %v4871, %v4869
    %v5024 = vpack.c.b16 %v4872, %v4870
    %v5025 = vpack.c.b16 %v4875, %v4873
    %v5026 = vpack.c.b16 %v4876, %v4874
    %v5027 = vpack.c.b16 %v4879, %v4877
    %v5028 = vpack.c.b16 %v4880, %v4878
    %v5029 = vpack.c.b16 %v4883, %v4881
    %v5030 = vpack.c.b16 %v4884, %v4882
    %v5031 = vpack.c.b16 %v4887, %v4885
    %v5032 = vpack.c.b16 %v4888, %v4886
    %v5033 = vpack.c.b16 %v4891, %v4889
    %v5034 = vpack.c.b16 %v4892, %v4890
    %v5035 = vpack.c.b16 %v4895, %v4893
    %v5036 = vpack.c.b16 %v4896, %v4894
    %v5037 = vpack.c.b16 %v4899, %v4897
    %v5038 = vpack.c.b16 %v4900, %v4898
    %v5039 = vpack.c.b16 %v4903, %v4901
    %v5040 = vpack.c.b16 %v4904, %v4902
    %v5041 = vpack.c.b16 %v4907, %v4905
    %v5042 = vpack.c.b16 %v4908, %v4906
    %v5043 = vpack.c.b16 %v4911, %v4909
    %v5044 = vpack.c.b16 %v4912, %v4910
    %v5045 = vpack.c.b16 %v4915, %v4913
    %v5046 = vpack.c.b16 %v4916, %v4914
    %v5047 = vpack.c.b16 %v4919, %v4917
    %v5048 = vpack.c.b16 %v4920, %v4918
    %5177 = vmatprep.subr.bf16.mxu0 %v4936
    %5178 = vmatpush1.bf16.msra.mxu0 %v4935
    %5179 = vmatprep.subr.bf16.mxu0 %v4934
    %5180 = vmatpush1.bf16.msra.mxu0 %v4933
    %5181 = vmatprep.subr.bf16.mxu0 %v4932
    %5182 = vmatpush1.bf16.msra.mxu0 %v4931
    %5183 = vmatprep.subr.bf16.mxu0 %v4930
    %5184 = vmatpush1.bf16.msra.mxu0 %v4929
    %5185 = vmatprep.subr.bf16.mxu0 %v4928
    %5186 = vmatpush1.bf16.msra.mxu0 %v4927
    %5187 = vmatprep.subr.bf16.mxu0 %v4926
    %5188 = vmatpush1.bf16.msra.mxu0 %v4925
    %5189 = vmatprep.subr.bf16.mxu0 %v4924
    %5190 = vmatpush1.bf16.msra.mxu0 %v4923
    %5191 = vmatprep.subr.bf16.mxu0 %v4922
    %5192 = vmatpush1.bf16.msra.mxu0 %v4921
    %5193 = vmatprep.subr.bf16.mxu0 %v4952
    %5194 = vmatpush2.bf16.msra.mxu0 %v4951
    %5195 = vmatprep.subr.bf16.mxu0 %v4950
    %5196 = vmatpush2.bf16.msra.mxu0 %v4949
    %5197 = vmatprep.subr.bf16.mxu0 %v4948
    %5198 = vmatpush2.bf16.msra.mxu0 %v4947
    %5199 = vmatprep.subr.bf16.mxu0 %v4946
    %5200 = vmatpush2.bf16.msra.mxu0 %v4945
    %5201 = vmatprep.subr.bf16.mxu0 %v4944
    %5202 = vmatpush2.bf16.msra.mxu0 %v4943
    %5203 = vmatprep.subr.bf16.mxu0 %v4942
    %5204 = vmatpush2.bf16.msra.mxu0 %v4941
    %5205 = vmatprep.subr.bf16.mxu0 %v4940
    %5206 = vmatpush2.bf16.msra.mxu0 %v4939
    %5207 = vmatprep.subr.bf16.mxu0 %v4938
    %5208 = vmatpush2.bf16.msra.mxu0 %v4937
    %5209 = vmatprep.mubr.bf16.mxu0 %v4390
    %5210 = vmatmul.mubr.bf16.gmra.mxu0 %v4389
    %v5211 = vpop.f32.mrf.mxu0
    %v5212 = vadd.f32 %v4530, %v5211
    %v5213 = vpop.f32.mrf.mxu0
    %v5214 = vadd.f32 %v4534, %v5213
    %v5215 = vpop.f32.mrf.mxu0
    %v5216 = vadd.f32 %v4530, %v5215
    %v5217 = vpop.f32.mrf.mxu0
    %v5218 = vadd.f32 %v4534, %v5217
    %5219 = vdwg.mxu0
    %5220 = vmatprep.subr.bf16.mxu0 %v4968
    %5221 = vmatpush1.bf16.msra.mxu0 %v4967
    %5222 = vmatprep.subr.bf16.mxu0 %v4966
    %5223 = vmatpush1.bf16.msra.mxu0 %v4965
    %5224 = vmatprep.subr.bf16.mxu0 %v4964
    %5225 = vmatpush1.bf16.msra.mxu0 %v4963
    %5226 = vmatprep.subr.bf16.mxu0 %v4962
    %5227 = vmatpush1.bf16.msra.mxu0 %v4961
    %5228 = vmatprep.subr.bf16.mxu0 %v4960
    %5229 = vmatpush1.bf16.msra.mxu0 %v4959
    %5230 = vmatprep.subr.bf16.mxu0 %v4958
    %5231 = vmatpush1.bf16.msra.mxu0 %v4957
    %5232 = vmatprep.subr.bf16.mxu0 %v4956
    %5233 = vmatpush1.bf16.msra.mxu0 %v4955
    %5234 = vmatprep.subr.bf16.mxu0 %v4954
    %5235 = vmatpush1.bf16.msra.mxu0 %v4953
    %5236 = vmatprep.subr.bf16.mxu0 %v4984
    %5237 = vmatpush2.bf16.msra.mxu0 %v4983
    %5238 = vmatprep.subr.bf16.mxu0 %v4982
    %5239 = vmatpush2.bf16.msra.mxu0 %v4981
    %5240 = vmatprep.subr.bf16.mxu0 %v4980
    %5241 = vmatpush2.bf16.msra.mxu0 %v4979
    %5242 = vmatprep.subr.bf16.mxu0 %v4978
    %5243 = vmatpush2.bf16.msra.mxu0 %v4977
    %5244 = vmatprep.subr.bf16.mxu0 %v4976
    %5245 = vmatpush2.bf16.msra.mxu0 %v4975
    %5246 = vmatprep.subr.bf16.mxu0 %v4974
    %5247 = vmatpush2.bf16.msra.mxu0 %v4973
    %5248 = vmatprep.subr.bf16.mxu0 %v4972
    %5249 = vmatpush2.bf16.msra.mxu0 %v4971
    %5250 = vmatprep.subr.bf16.mxu0 %v4970
    %5251 = vmatpush2.bf16.msra.mxu0 %v4969
    %5252 = vmatprep.mubr.bf16.mxu0 %v4392
    %5253 = vmatmul.mubr.bf16.gmra.mxu0 %v4391
    %v5254 = vpop.f32.mrf.mxu0
    %v5255 = vadd.f32 %v5212, %v5254
    %v5256 = vpop.f32.mrf.mxu0
    %v5257 = vadd.f32 %v5214, %v5256
    %v5258 = vpop.f32.mrf.mxu0
    %v5259 = vadd.f32 %v5216, %v5258
    %v5260 = vpop.f32.mrf.mxu0
    %v5261 = vadd.f32 %v5218, %v5260
    %5262 = vdwg.mxu0
    %5263 = vmatprep.subr.bf16.mxu0 %v5000
    %5264 = vmatpush1.bf16.msra.mxu0 %v4999
    %5265 = vmatprep.subr.bf16.mxu0 %v4998
    %5266 = vmatpush1.bf16.msra.mxu0 %v4997
    %5267 = vmatprep.subr.bf16.mxu0 %v4996
    %5268 = vmatpush1.bf16.msra.mxu0 %v4995
    %5269 = vmatprep.subr.bf16.mxu0 %v4994
    %5270 = vmatpush1.bf16.msra.mxu0 %v4993
    %5271 = vmatprep.subr.bf16.mxu0 %v4992
    %5272 = vmatpush1.bf16.msra.mxu0 %v4991
    %5273 = vmatprep.subr.bf16.mxu0 %v4990
    %5274 = vmatpush1.bf16.msra.mxu0 %v4989
    %5275 = vmatprep.subr.bf16.mxu0 %v4988
    %5276 = vmatpush1.bf16.msra.mxu0 %v4987
    %5277 = vmatprep.subr.bf16.mxu0 %v4986
    %5278 = vmatpush1.bf16.msra.mxu0 %v4985
    %5279 = vmatprep.subr.bf16.mxu0 %v5016
    %5280 = vmatpush2.bf16.msra.mxu0 %v5015
    %5281 = vmatprep.subr.bf16.mxu0 %v5014
    %5282 = vmatpush2.bf16.msra.mxu0 %v5013
    %5283 = vmatprep.subr.bf16.mxu0 %v5012
    %5284 = vmatpush2.bf16.msra.mxu0 %v5011
    %5285 = vmatprep.subr.bf16.mxu0 %v5010
    %5286 = vmatpush2.bf16.msra.mxu0 %v5009
    %5287 = vmatprep.subr.bf16.mxu0 %v5008
    %5288 = vmatpush2.bf16.msra.mxu0 %v5007
    %5289 = vmatprep.subr.bf16.mxu0 %v5006
    %5290 = vmatpush2.bf16.msra.mxu0 %v5005
    %5291 = vmatprep.subr.bf16.mxu0 %v5004
    %5292 = vmatpush2.bf16.msra.mxu0 %v5003
    %5293 = vmatprep.subr.bf16.mxu0 %v5002
    %5294 = vmatpush2.bf16.msra.mxu0 %v5001
    %5295 = vmatprep.mubr.bf16.mxu0 %v4394
    %5296 = vmatmul.mubr.bf16.gmra.mxu0 %v4393
    %v5297 = vpop.f32.mrf.mxu0
    %v5298 = vadd.f32 %v5255, %v5297
    %v5299 = vpop.f32.mrf.mxu0
    %v5300 = vadd.f32 %v5257, %v5299
    %v5301 = vpop.f32.mrf.mxu0
    %v5302 = vadd.f32 %v5259, %v5301
    %v5303 = vpop.f32.mrf.mxu0
    %v5304 = vadd.f32 %v5261, %v5303
    %5305 = vdwg.mxu0
    %5306 = vmatprep.subr.bf16.mxu0 %v5032
    %5307 = vmatpush1.bf16.msra.mxu0 %v5031
    %5308 = vmatprep.subr.bf16.mxu0 %v5030
    %5309 = vmatpush1.bf16.msra.mxu0 %v5029
    %5310 = vmatprep.subr.bf16.mxu0 %v5028
    %5311 = vmatpush1.bf16.msra.mxu0 %v5027
    %5312 = vmatprep.subr.bf16.mxu0 %v5026
    %5313 = vmatpush1.bf16.msra.mxu0 %v5025
    %5314 = vmatprep.subr.bf16.mxu0 %v5024
    %5315 = vmatpush1.bf16.msra.mxu0 %v5023
    %5316 = vmatprep.subr.bf16.mxu0 %v5022
    %5317 = vmatpush1.bf16.msra.mxu0 %v5021
    %5318 = vmatprep.subr.bf16.mxu0 %v5020
    %5319 = vmatpush1.bf16.msra.mxu0 %v5019
    %5320 = vmatprep.subr.bf16.mxu0 %v5018
    %5321 = vmatpush1.bf16.msra.mxu0 %v5017
    %5322 = vmatprep.subr.bf16.mxu0 %v5048
    %5323 = vmatpush2.bf16.msra.mxu0 %v5047
    %5324 = vmatprep.subr.bf16.mxu0 %v5046
    %5325 = vmatpush2.bf16.msra.mxu0 %v5045
    %5326 = vmatprep.subr.bf16.mxu0 %v5044
    %5327 = vmatpush2.bf16.msra.mxu0 %v5043
    %5328 = vmatprep.subr.bf16.mxu0 %v5042
    %5329 = vmatpush2.bf16.msra.mxu0 %v5041
    %5330 = vmatprep.subr.bf16.mxu0 %v5040
    %5331 = vmatpush2.bf16.msra.mxu0 %v5039
    %5332 = vmatprep.subr.bf16.mxu0 %v5038
    %5333 = vmatpush2.bf16.msra.mxu0 %v5037
    %5334 = vmatprep.subr.bf16.mxu0 %v5036
    %5335 = vmatpush2.bf16.msra.mxu0 %v5035
    %5336 = vmatprep.subr.bf16.mxu0 %v5034
    %5337 = vmatpush2.bf16.msra.mxu0 %v5033
    %5338 = vmatprep.mubr.bf16.mxu0 %v4396
    %5339 = vmatmul.mubr.bf16.gmra.mxu0 %v4395
    %v5340 = vpop.f32.mrf.mxu0
    %v5341 = vadd.f32 %v5298, %v5340
    %v5342 = vpop.f32.mrf.mxu0
    %v5343 = vadd.f32 %v5300, %v5342
    %v5344 = vpop.f32.mrf.mxu0
    %v5345 = vadd.f32 %v5302, %v5344
    %v5346 = vpop.f32.mrf.mxu0
    %v5347 = vadd.f32 %v5304, %v5346
    %5348 = vdwg.mxu0
    %v5349 = vadd.f32 %v3209, %v5341
    %v5350 = vadd.f32 %v3210, %v5343
    %v5351 = vadd.f32 %v3211, %v5345
    %v5352 = vadd.f32 %v3212, %v5347
    %5353 = vst [vmem:[#allocation14] sm:$0xff] %v5349
    %5354 = vst [vmem:[#allocation14 + $0x8] sm:$0xff] %v5350
    %5355 = vst [vmem:[#allocation14 + $0x10] sm:$0xff] %v5351
    %5356 = vst [vmem:[#allocation14 + $0x18] sm:$0xff] %v5352
    // Predicated region
    $region82: #{tpu_custom_call.1} parent=1 // pred_check
      _
    $region83: #{tpu_custom_call.1} parent=1 // pred_check_branch
      %5358 = sbr.rel (0) target = $region85
    $region84: #{tpu_custom_call.1} parent=1 // pred_region
      %s5360 = ssub.s32 512, 512
      %5361 = vsyncadd [#allocation4], %s5360
      %s5362 = sshll.u32 [#allocation14], 4
      %s5363 = int_to_ptr.vmem [resolvable:$true] %s5362
      %5368 = dma.vmem_to_hbm [thread:$0]  %s5363, 512, %s13, [#allocation4], 256, 256, 16
    $region85: #{tpu_custom_call.1} parent=1 // pred_fallthru
      _
    // Predicated region
    $region86: #{tpu_custom_call.1} parent=1 // pred_check
      _
    $region87: #{tpu_custom_call.1} parent=1 // pred_check_branch
      %5370 = sbr.rel (0) target = $region89
    $region88: #{tpu_custom_call.1} parent=1 // pred_region
      %5371 = dma.done [#allocation4], 512
    $region89: #{tpu_custom_call.1} parent=1 // pred_fallthru
      _
    %5372 = vsyncpa [#allocation3], 1
    %5373 = vsyncpa [#allocation6], 1
    %5374 = vsyncpa [#allocation9], 1
    %5375 = vsyncpa [#allocation12], 1
    %5376 = vsyncpa [#allocation4], 1

</llo_original>
